<compile_context>
chip_gen: v5e
topology: v5e:2x2
jax: 0.10.0
libtpu: 0.0.40
codegen_flags: <defaults>
</compile_context>

<pallas_src>
import jax
import jax.numpy as jnp
from jax import lax
from jax.experimental import pallas as pl
from jax.experimental.pallas import tpu as pltpu


# ---------------------------------------------------------------------------
# in-kernel helpers (operate on the fused (C, N*L) tile)
# ---------------------------------------------------------------------------
def _leaky_relu(x):
    return jnp.where(x > 0, x, 0.01 * x)


def _shift_mats(nl, L, N):
    # x @ p_prev -> x[:, j-1] (0 at each sample's first column)
    # x @ p_next -> x[:, j+1] (0 at each sample's last column)
    # Built once per block; shared by both convs of the block.
    row = lax.broadcasted_iota(jnp.int32, (nl, nl), 0)
    col = lax.broadcasted_iota(jnp.int32, (nl, nl), 1)
    start = col == 0
    end = col == L - 1
    for n in range(1, N):
        start = start | (col == n * L)
        end = end | (col == n * L + L - 1)
    p_prev = ((row == col - 1) & jnp.logical_not(start)).astype(jnp.float32)
    p_next = ((row == col + 1) & jnp.logical_not(end)).astype(jnp.float32)
    return p_prev, p_next


def _interleave_mats(nl):
    # ConvTranspose1d(kernel=2, stride=2) even/odd column scatter matrices.
    row = lax.broadcasted_iota(jnp.int32, (nl, 2 * nl), 0)
    col = lax.broadcasted_iota(jnp.int32, (nl, 2 * nl), 1)
    s0 = (col == 2 * row).astype(jnp.float32)
    s1 = (col == 2 * row + 1).astype(jnp.float32)
    return s0, s1


def _conv3_fused(x, w_im, bias, p_prev, p_next):
    # 3-tap same-length Conv1d via im2col: one (Cout, 3Cin) x (3Cin, NL) dot.
    xm = jnp.dot(x, p_prev, preferred_element_type=jnp.float32)   # x[:, j-1]
    xp = jnp.dot(x, p_next, preferred_element_type=jnp.float32)   # x[:, j+1]
    xim = jnp.concatenate([xm, x, xp], axis=0)                    # (3Cin, NL)
    return jnp.dot(w_im, xim, preferred_element_type=jnp.float32) + bias


def _batchnorm(y, gamma, beta, cnt, eps=1e-5):
    # training-mode BatchNorm1d: biased stats over all N*L lanes per channel
    # (two-pass / centered form for numerical robustness).
    mean = jnp.sum(y, axis=1, keepdims=True) * (1.0 / cnt)
    c = y - mean
    var = jnp.sum(c * c, axis=1, keepdims=True) * (1.0 / cnt)
    return c * (gamma * lax.rsqrt(var + eps)) + beta


def _upconv2x_fused(x, w0, w1, bias, s0, s1):
    # ConvTranspose1d(kernel=2, stride=2):  y[:, 2j+k] = w_k @ x[:, j] + b
    y0 = jnp.dot(w0, x, preferred_element_type=jnp.float32)       # (C, NL)
    y1 = jnp.dot(w1, x, preferred_element_type=jnp.float32)       # (C, NL)
    y = (jnp.dot(y0, s0, preferred_element_type=jnp.float32)
         + jnp.dot(y1, s1, preferred_element_type=jnp.float32))   # (C, 2NL)
    return y + bias


# ---------------------------------------------------------------------------
# the Pallas kernel: full Generator forward (Linear + 5 UpBlocks + final conv)
# ---------------------------------------------------------------------------
def _make_kernel(N, L0, n_blk):
    def kernel(zexp_ref, wlin_ref, blin_ref,
               c1w_ref, c1b_ref, g1_ref, be1_ref,
               c2w_ref, c2b_ref, g2_ref, be2_ref,
               upw_ref, upb_ref, fw_ref, fb_ref, out_ref):
        # Linear + Unflatten, already lane-batched: (C, N*L0)
        x = (jnp.dot(wlin_ref[...], zexp_ref[...],
                     preferred_element_type=jnp.float32) + blin_ref[...])

        L = L0
        for i in range(n_blk):
            nl = N * L
            p_prev, p_next = _shift_mats(nl, L, N)     # built once per block
            s0, s1 = _interleave_mats(nl)
            cnt = float(nl)
            y = _conv3_fused(x, c1w_ref[i], c1b_ref[i], p_prev, p_next)
            y = _leaky_relu(_batchnorm(y, g1_ref[i], be1_ref[i], cnt))
            y = _conv3_fused(y, c2w_ref[i], c2b_ref[i], p_prev, p_next)
            y = _batchnorm(y, g2_ref[i], be2_ref[i], cnt)
            y = _leaky_relu(y + x)                     # residual
            x = _upconv2x_fused(y, upw_ref[i, 0], upw_ref[i, 1], upb_ref[i],
                                s0, s1)
            L = 2 * L

        # final Conv1d (hidden -> out_channels), lane-dense (out_ch, N*Lf)
        nl = N * L
        p_prev, p_next = _shift_mats(nl, L, N)
        yf = _conv3_fused(x, fw_ref[...], fb_ref[...], p_prev, p_next)
        out_ref[...] = yf.astype(out_ref.dtype)

    return kernel


# ---------------------------------------------------------------------------
# wrapper (glue: parameter re-layout, pallas_call, output flatten)
# ---------------------------------------------------------------------------
def generator_forward(z, p):
    N, latent = z.shape
    blocks = p["blocks"]
    n_blk = len(blocks)
    C, _, K = blocks[0]["c1_w"].shape
    # TODO(synk): general kernel_size not supported; residual UpBlock needs K=3.
    assert K == 3, "residual UpBlock requires kernel_size == 3"
    L0 = p["lin_w"].shape[1] // C
    out_ch = p["f_w"].shape[0]
    Lf = L0 * (2 ** n_blk)

    # --- glue: lane-batched / im2col parameter layout ----------------------
    # expand z so Linear+Unflatten is one in-kernel matmul producing the fused
    # (C, N*L0) tile directly (pure layout plumbing of the input).
    eye = jnp.eye(L0, dtype=jnp.float32)
    zexp = (z.T[:, None, :, None] * eye[None, :, None, :]
            ).reshape(latent * L0, N * L0)                         # (D*L0, N*L0)
    wlin = jnp.transpose(p["lin_w"].reshape(latent, C, L0),
                         (1, 0, 2)).reshape(C, latent * L0)        # (C, D*L0)
    blin = jnp.tile(p["lin_b"].reshape(C, L0), (1, N))             # (C, N*L0)

    def im2col_w(w):                                  # (Cout,Cin,K)->(Cout,K*Cin)
        return jnp.transpose(w, (0, 2, 1)).reshape(w.shape[0], K * w.shape[1])

    c1w = jnp.stack([im2col_w(b["c1_w"]) for b in blocks])         # (nb, C, 3C)
    c2w = jnp.stack([im2col_w(b["c2_w"]) for b in blocks])
    upw = jnp.stack([jnp.transpose(b["up_w"], (2, 1, 0))
                     for b in blocks])                             # (nb,2,Cout,Cin)
    c1b = jnp.stack([b["c1_b"] for b in blocks])[:, :, None]
    c2b = jnp.stack([b["c2_b"] for b in blocks])[:, :, None]
    upb = jnp.stack([b["up_b"] for b in blocks])[:, :, None]
    g1 = jnp.stack([b["g1"] for b in blocks])[:, :, None]
    be1 = jnp.stack([b["b1"] for b in blocks])[:, :, None]
    g2 = jnp.stack([b["g2"] for b in blocks])[:, :, None]
    be2 = jnp.stack([b["b2"] for b in blocks])[:, :, None]
    fw = im2col_w(p["f_w"])                                        # (out_ch, 3C)
    fb = p["f_b"][:, None]

    inputs = (zexp, wlin, blin, c1w, c1b, g1, be1, c2w, c2b, g2, be2,
              upw, upb, fw, fb)
    y = pl.pallas_call(
        _make_kernel(N, L0, n_blk),
        out_shape=jax.ShapeDtypeStruct((out_ch, N * Lf), jnp.float32),
        in_specs=[pl.BlockSpec(memory_space=pltpu.MemorySpace.VMEM)
                  for _ in inputs],
        out_specs=pl.BlockSpec(memory_space=pltpu.MemorySpace.VMEM),
    )(*inputs)
    # glue (reshape_output): (out_ch, N*Lf) -> (N, out_ch*Lf)
    return jnp.transpose(y.reshape(out_ch, N, Lf), (1, 0, 2)
                         ).reshape(N, out_ch * Lf)


# ---------------------------------------------------------------------------
# deterministic parameter init (shapes match the torch module's __init__)
# ---------------------------------------------------------------------------
def init_params(key, latent_dim, out_dim, hidden, out_ch, K, n_blocks=5):
    L0 = out_dim // 32
    ks = jax.random.split(key, 5)

    def convw(k, cout, cin, kk):
        return jax.random.normal(k, (cout, cin, kk), jnp.float32) / jnp.sqrt(cin * kk)

    p = {
        "lin_w": jax.random.normal(ks[0], (latent_dim, hidden * L0),
                                   jnp.float32) / jnp.sqrt(latent_dim),
        "lin_b": 0.05 * jax.random.normal(ks[1], (hidden * L0,), jnp.float32),
        "f_w": convw(ks[2], out_ch, hidden, K),
        "f_b": 0.05 * jax.random.normal(ks[3], (out_ch,), jnp.float32),
    }
    blocks = []
    for kb in jax.random.split(ks[4], n_blocks):
        kk = jax.random.split(kb, 10)
        blocks.append(dict(
            c1_w=convw(kk[0], hidden, hidden, K),
            c1_b=0.05 * jax.random.normal(kk[1], (hidden,), jnp.float32),
            g1=1.0 + 0.1 * jax.random.normal(kk[2], (hidden,), jnp.float32),
            b1=0.1 * jax.random.normal(kk[3], (hidden,), jnp.float32),
            c2_w=convw(kk[4], hidden, hidden, K),
            c2_b=0.05 * jax.random.normal(kk[5], (hidden,), jnp.float32),
            g2=1.0 + 0.1 * jax.random.normal(kk[6], (hidden,), jnp.float32),
            b2=0.1 * jax.random.normal(kk[7], (hidden,), jnp.float32),
            up_w=jax.random.normal(kk[8], (hidden, hidden, 2),
                                   jnp.float32) / jnp.sqrt(hidden * 2),
            up_b=0.05 * jax.random.normal(kk[9], (hidden,), jnp.float32),
        ))
    p["blocks"] = blocks
    return p


# ---------------------------------------------------------------------------
# pure-JAX reference (NCL layout, mirrors the torch forward exactly)
# ---------------------------------------------------------------------------
def _ref_conv1d(x, w, b, pad):
    K, L = w.shape[2], x.shape[2]
    lout = L + 2 * pad - K + 1
    xp = jnp.pad(x, ((0, 0), (0, 0), (pad, pad)))
    y = sum(jnp.einsum('oc,ncl->nol', w[:, :, k], xp[:, :, k:k + lout])
            for k in range(K))
    return y + b[None, :, None]


def _ref_bn(x, g, b, eps=1e-5):
    mean = x.mean(axis=(0, 2), keepdims=True)
    var = ((x - mean) ** 2).mean(axis=(0, 2), keepdims=True)
    return (x - mean) / jnp.sqrt(var + eps) * g[None, :, None] + b[None, :, None]


def _ref_upconv(x, w, b):
    N, C, L = x.shape
    t = jnp.einsum('ncl,cok->nokl', x, w)            # (N, Cout, 2, L)
    y = jnp.transpose(t, (0, 1, 3, 2)).reshape(N, w.shape[1], 2 * L)
    return y + b[None, :, None]


def reference_forward(z, p):
    N = z.shape[0]
    C, _, K = p["blocks"][0]["c1_w"].shape
    pad = K - 2
    L0 = p["lin_w"].shape[1] // C
    leaky = lambda x: jnp.where(x > 0, x, 0.01 * x)
    x = (z @ p["lin_w"] + p["lin_b"]).reshape(N, C, L0)
    for b in p["blocks"]:
        x1 = _ref_conv1d(x, b["c1_w"], b["c1_b"], pad)
        x1 = _ref_bn(x1, b["g1"], b["b1"])
        x1 = leaky(x1)
        x1 = _ref_conv1d(x1, b["c2_w"], b["c2_b"], pad)
        x1 = _ref_bn(x1, b["g2"], b["b2"])
        x1 = x1 + x
        x1 = leaky(x1)
        x = _ref_upconv(x1, b["up_w"], b["up_b"])
    y = _ref_conv1d(x, p["f_w"], p["f_b"], pad)
    return y.reshape(N, -1)


# ---------------------------------------------------------------------------
if __name__ == "__main__":
    # residual add in UpBlock requires kernel_size == 3 (length-preserving conv)
    N, latent_dim, out_dim, hidden, out_ch, K = 2, 16, 64, 32, 4, 3
    key = jax.random.PRNGKey(0)
    kp, kz = jax.random.split(key)
    params = init_params(kp, latent_dim, out_dim, hidden, out_ch, K)
    z = jax.random.normal(kz, (N, latent_dim), jnp.float32)

    y = jax.block_until_ready(generator_forward(z, params))
    y_ref = jax.block_until_ready(reference_forward(z, params))

    assert y.shape == (N, out_ch * out_dim), y.shape
    err = float(jnp.max(jnp.abs(y - y_ref)))
    if err > 5e-2:
        raise AssertionError(f"mismatch vs reference: max abs err {err}")
    print("KERNEL_OK")
</pallas_src>

<mosaic_0001>
module attributes {stable_mosaic.version = 11 : i64} {
  func.func @kernel(%arg0: memref<32x4xf32, #tpu.memory_space<vmem>>, %arg1: memref<32x32xf32, #tpu.memory_space<vmem>>, %arg2: memref<32x4xf32, #tpu.memory_space<vmem>>, %arg3: memref<5x32x96xf32, #tpu.memory_space<vmem>>, %arg4: memref<5x32x1xf32, #tpu.memory_space<vmem>>, %arg5: memref<5x32x1xf32, #tpu.memory_space<vmem>>, %arg6: memref<5x32x1xf32, #tpu.memory_space<vmem>>, %arg7: memref<5x32x96xf32, #tpu.memory_space<vmem>>, %arg8: memref<5x32x1xf32, #tpu.memory_space<vmem>>, %arg9: memref<5x32x1xf32, #tpu.memory_space<vmem>>, %arg10: memref<5x32x1xf32, #tpu.memory_space<vmem>>, %arg11: memref<5x2x32x32xf32, #tpu.memory_space<vmem>>, %arg12: memref<5x32x1xf32, #tpu.memory_space<vmem>>, %arg13: memref<4x96xf32, #tpu.memory_space<vmem>>, %arg14: memref<4x1xf32, #tpu.memory_space<vmem>>, %arg15: memref<4x128xf32, #tpu.memory_space<vmem>>) attributes {dimension_semantics = [], scalar_prefetch = 0 : i64, scratch_operands = 0 : i64, tpu.core_type = #tpu.core_type<tc>} {
    %c0 = arith.constant 0 : index
    %c0_0 = arith.constant 0 : index
    %0 = vector.load %arg1[%c0, %c0_0] : memref<32x32xf32, #tpu.memory_space<vmem>>, vector<32x32xf32>
    %c0_1 = arith.constant 0 : index
    %c0_2 = arith.constant 0 : index
    %1 = vector.load %arg0[%c0_1, %c0_2] : memref<32x4xf32, #tpu.memory_space<vmem>>, vector<32x4xf32>
    %cst = arith.constant dense<0.000000e+00> : vector<32x4xf32>
    %2 = tpu.matmul %0, %1, %cst {dimension_numbers = #tpu.dot_dimension_numbers<[1], [0], [0], [1], [0, 0, 1, 1], [], []>} : vector<32x32xf32>, vector<32x4xf32>, vector<32x4xf32> -> vector<32x4xf32>
    %c0_3 = arith.constant 0 : index
    %c0_4 = arith.constant 0 : index
    %3 = vector.load %arg2[%c0_3, %c0_4] : memref<32x4xf32, #tpu.memory_space<vmem>>, vector<32x4xf32>
    %4 = arith.addf %2, %3 : vector<32x4xf32>
    %5 = tpu.iota {dimensions = array<i32: 0>} : vector<4x4xi32>
    %6 = tpu.iota {dimensions = array<i32: 1>} : vector<4x4xi32>
    %c0_i32 = arith.constant 0 : i32
    %7 = vector.broadcast %c0_i32 : i32 to vector<4x4xi32>
    %8 = arith.cmpi eq, %6, %7 : vector<4x4xi32>
    %c1_i32 = arith.constant 1 : i32
    %9 = vector.broadcast %c1_i32 : i32 to vector<4x4xi32>
    %10 = arith.cmpi eq, %6, %9 : vector<4x4xi32>
    %c2_i32 = arith.constant 2 : i32
    %11 = vector.broadcast %c2_i32 : i32 to vector<4x4xi32>
    %12 = arith.cmpi eq, %6, %11 : vector<4x4xi32>
    %13 = arith.ori %8, %12 : vector<4x4xi1>
    %c3_i32 = arith.constant 3 : i32
    %14 = vector.broadcast %c3_i32 : i32 to vector<4x4xi32>
    %15 = arith.cmpi eq, %6, %14 : vector<4x4xi32>
    %16 = arith.ori %10, %15 : vector<4x4xi1>
    %c1_i32_5 = arith.constant 1 : i32
    %17 = vector.broadcast %c1_i32_5 : i32 to vector<4x4xi32>
    %18 = arith.subi %6, %17 : vector<4x4xi32>
    %19 = arith.cmpi eq, %5, %18 : vector<4x4xi32>
    %cst_6 = arith.constant dense<true> : vector<4x4xi1>
    %20 = arith.xori %13, %cst_6 : vector<4x4xi1>
    %21 = arith.andi %19, %20 : vector<4x4xi1>
    %22 = arith.extui %21 : vector<4x4xi1> to vector<4x4xi32>
    %23 = arith.sitofp %22 : vector<4x4xi32> to vector<4x4xf32>
    %c1_i32_7 = arith.constant 1 : i32
    %24 = vector.broadcast %c1_i32_7 : i32 to vector<4x4xi32>
    %25 = arith.addi %6, %24 : vector<4x4xi32>
    %26 = arith.cmpi eq, %5, %25 : vector<4x4xi32>
    %cst_8 = arith.constant dense<true> : vector<4x4xi1>
    %27 = arith.xori %16, %cst_8 : vector<4x4xi1>
    %28 = arith.andi %26, %27 : vector<4x4xi1>
    %29 = arith.extui %28 : vector<4x4xi1> to vector<4x4xi32>
    %30 = arith.sitofp %29 : vector<4x4xi32> to vector<4x4xf32>
    %31 = tpu.iota {dimensions = array<i32: 0>} : vector<4x8xi32>
    %32 = tpu.iota {dimensions = array<i32: 1>} : vector<4x8xi32>
    %c2_i32_9 = arith.constant 2 : i32
    %33 = vector.broadcast %c2_i32_9 : i32 to vector<4x8xi32>
    %34 = arith.muli %33, %31 : vector<4x8xi32>
    %35 = arith.cmpi eq, %32, %34 : vector<4x8xi32>
    %36 = arith.extui %35 : vector<4x8xi1> to vector<4x8xi32>
    %37 = arith.sitofp %36 : vector<4x8xi32> to vector<4x8xf32>
    %c2_i32_10 = arith.constant 2 : i32
    %38 = vector.broadcast %c2_i32_10 : i32 to vector<4x8xi32>
    %39 = arith.muli %38, %31 : vector<4x8xi32>
    %c1_i32_11 = arith.constant 1 : i32
    %40 = vector.broadcast %c1_i32_11 : i32 to vector<4x8xi32>
    %41 = arith.addi %39, %40 : vector<4x8xi32>
    %42 = arith.cmpi eq, %32, %41 : vector<4x8xi32>
    %43 = arith.extui %42 : vector<4x8xi1> to vector<4x8xi32>
    %44 = arith.sitofp %43 : vector<4x8xi32> to vector<4x8xf32>
    %c0_12 = arith.constant 0 : index
    %c0_13 = arith.constant 0 : index
    %c0_14 = arith.constant 0 : index
    %45 = vector.load %arg3[%c0_12, %c0_13, %c0_14] : memref<5x32x96xf32, #tpu.memory_space<vmem>>, vector<1x32x96xf32>
    %46 = vector.shape_cast %45 : vector<1x32x96xf32> to vector<32x96xf32>
    %c0_15 = arith.constant 0 : index
    %c0_16 = arith.constant 0 : index
    %c0_17 = arith.constant 0 : index
    %47 = vector.load %arg4[%c0_15, %c0_16, %c0_17] : memref<5x32x1xf32, #tpu.memory_space<vmem>>, vector<1x32x1xf32>
    %48 = vector.shape_cast %47 : vector<1x32x1xf32> to vector<32x1xf32>
    %cst_18 = arith.constant dense<0.000000e+00> : vector<32x4xf32>
    %49 = tpu.matmul %4, %23, %cst_18 {dimension_numbers = #tpu.dot_dimension_numbers<[1], [0], [0], [1], [0, 0, 1, 1], [], []>} : vector<32x4xf32>, vector<4x4xf32>, vector<32x4xf32> -> vector<32x4xf32>
    %cst_19 = arith.constant dense<0.000000e+00> : vector<32x4xf32>
    %50 = tpu.matmul %4, %30, %cst_19 {dimension_numbers = #tpu.dot_dimension_numbers<[1], [0], [0], [1], [0, 0, 1, 1], [], []>} : vector<32x4xf32>, vector<4x4xf32>, vector<32x4xf32> -> vector<32x4xf32>
    %51 = tpu.concatenate %49, %4, %50 in 0 : vector<32x4xf32>, vector<32x4xf32>, vector<32x4xf32> -> vector<96x4xf32>
    %cst_20 = arith.constant dense<0.000000e+00> : vector<32x4xf32>
    %52 = tpu.matmul %46, %51, %cst_20 {dimension_numbers = #tpu.dot_dimension_numbers<[1], [0], [0], [1], [0, 0, 1, 1], [], []>} : vector<32x96xf32>, vector<96x4xf32>, vector<32x4xf32> -> vector<32x4xf32>
    %53 = vector.broadcast %48 : vector<32x1xf32> to vector<32x4xf32>
    %54 = arith.addf %52, %53 : vector<32x4xf32>
    %c0_21 = arith.constant 0 : index
    %c0_22 = arith.constant 0 : index
    %c0_23 = arith.constant 0 : index
    %55 = vector.load %arg5[%c0_21, %c0_22, %c0_23] : memref<5x32x1xf32, #tpu.memory_space<vmem>>, vector<1x32x1xf32>
    %56 = vector.shape_cast %55 : vector<1x32x1xf32> to vector<32x1xf32>
    %c0_24 = arith.constant 0 : index
    %c0_25 = arith.constant 0 : index
    %c0_26 = arith.constant 0 : index
    %57 = vector.load %arg6[%c0_24, %c0_25, %c0_26] : memref<5x32x1xf32, #tpu.memory_space<vmem>>, vector<1x32x1xf32>
    %58 = vector.shape_cast %57 : vector<1x32x1xf32> to vector<32x1xf32>
    %cst_27 = arith.constant dense<0.000000e+00> : vector<32xf32>
    %59 = vector.multi_reduction <add>, %54, %cst_27 [1] : vector<32x4xf32> to vector<32xf32>
    %60 = vector.shape_cast %59 : vector<32xf32> to vector<32x1xf32>
    %cst_28 = arith.constant 2.500000e-01 : f32
    %61 = vector.broadcast %cst_28 : f32 to vector<32x1xf32>
    %62 = arith.mulf %60, %61 : vector<32x1xf32>
    %63 = vector.broadcast %62 : vector<32x1xf32> to vector<32x4xf32>
    %64 = arith.subf %54, %63 : vector<32x4xf32>
    %65 = arith.mulf %64, %64 : vector<32x4xf32>
    %cst_29 = arith.constant dense<0.000000e+00> : vector<32xf32>
    %66 = vector.multi_reduction <add>, %65, %cst_29 [1] : vector<32x4xf32> to vector<32xf32>
    %67 = vector.shape_cast %66 : vector<32xf32> to vector<32x1xf32>
    %cst_30 = arith.constant 2.500000e-01 : f32
    %68 = vector.broadcast %cst_30 : f32 to vector<32x1xf32>
    %69 = arith.mulf %67, %68 : vector<32x1xf32>
    %cst_31 = arith.constant 9.99999974E-6 : f32
    %70 = vector.broadcast %cst_31 : f32 to vector<32x1xf32>
    %71 = arith.addf %69, %70 : vector<32x1xf32>
    %72 = math.rsqrt %71 : vector<32x1xf32>
    %73 = arith.mulf %56, %72 : vector<32x1xf32>
    %74 = vector.broadcast %73 : vector<32x1xf32> to vector<32x4xf32>
    %75 = arith.mulf %64, %74 : vector<32x4xf32>
    %76 = vector.broadcast %58 : vector<32x1xf32> to vector<32x4xf32>
    %77 = arith.addf %75, %76 : vector<32x4xf32>
    %cst_32 = arith.constant 0.000000e+00 : f32
    %78 = vector.broadcast %cst_32 : f32 to vector<32x4xf32>
    %79 = arith.cmpf ogt, %77, %78 : vector<32x4xf32>
    %cst_33 = arith.constant 0.00999999977 : f32
    %80 = vector.broadcast %cst_33 : f32 to vector<32x4xf32>
    %81 = arith.mulf %80, %77 : vector<32x4xf32>
    %82 = arith.select %79, %77, %81 : vector<32x4xi1>, vector<32x4xf32>
    %c0_34 = arith.constant 0 : index
    %c0_35 = arith.constant 0 : index
    %c0_36 = arith.constant 0 : index
    %83 = vector.load %arg7[%c0_34, %c0_35, %c0_36] : memref<5x32x96xf32, #tpu.memory_space<vmem>>, vector<1x32x96xf32>
    %84 = vector.shape_cast %83 : vector<1x32x96xf32> to vector<32x96xf32>
    %c0_37 = arith.constant 0 : index
    %c0_38 = arith.constant 0 : index
    %c0_39 = arith.constant 0 : index
    %85 = vector.load %arg8[%c0_37, %c0_38, %c0_39] : memref<5x32x1xf32, #tpu.memory_space<vmem>>, vector<1x32x1xf32>
    %86 = vector.shape_cast %85 : vector<1x32x1xf32> to vector<32x1xf32>
    %cst_40 = arith.constant dense<0.000000e+00> : vector<32x4xf32>
    %87 = tpu.matmul %82, %23, %cst_40 {dimension_numbers = #tpu.dot_dimension_numbers<[1], [0], [0], [1], [0, 0, 1, 1], [], []>} : vector<32x4xf32>, vector<4x4xf32>, vector<32x4xf32> -> vector<32x4xf32>
    %cst_41 = arith.constant dense<0.000000e+00> : vector<32x4xf32>
    %88 = tpu.matmul %82, %30, %cst_41 {dimension_numbers = #tpu.dot_dimension_numbers<[1], [0], [0], [1], [0, 0, 1, 1], [], []>} : vector<32x4xf32>, vector<4x4xf32>, vector<32x4xf32> -> vector<32x4xf32>
    %89 = tpu.concatenate %87, %82, %88 in 0 : vector<32x4xf32>, vector<32x4xf32>, vector<32x4xf32> -> vector<96x4xf32>
    %cst_42 = arith.constant dense<0.000000e+00> : vector<32x4xf32>
    %90 = tpu.matmul %84, %89, %cst_42 {dimension_numbers = #tpu.dot_dimension_numbers<[1], [0], [0], [1], [0, 0, 1, 1], [], []>} : vector<32x96xf32>, vector<96x4xf32>, vector<32x4xf32> -> vector<32x4xf32>
    %91 = vector.broadcast %86 : vector<32x1xf32> to vector<32x4xf32>
    %92 = arith.addf %90, %91 : vector<32x4xf32>
    %c0_43 = arith.constant 0 : index
    %c0_44 = arith.constant 0 : index
    %c0_45 = arith.constant 0 : index
    %93 = vector.load %arg9[%c0_43, %c0_44, %c0_45] : memref<5x32x1xf32, #tpu.memory_space<vmem>>, vector<1x32x1xf32>
    %94 = vector.shape_cast %93 : vector<1x32x1xf32> to vector<32x1xf32>
    %c0_46 = arith.constant 0 : index
    %c0_47 = arith.constant 0 : index
    %c0_48 = arith.constant 0 : index
    %95 = vector.load %arg10[%c0_46, %c0_47, %c0_48] : memref<5x32x1xf32, #tpu.memory_space<vmem>>, vector<1x32x1xf32>
    %96 = vector.shape_cast %95 : vector<1x32x1xf32> to vector<32x1xf32>
    %cst_49 = arith.constant dense<0.000000e+00> : vector<32xf32>
    %97 = vector.multi_reduction <add>, %92, %cst_49 [1] : vector<32x4xf32> to vector<32xf32>
    %98 = vector.shape_cast %97 : vector<32xf32> to vector<32x1xf32>
    %cst_50 = arith.constant 2.500000e-01 : f32
    %99 = vector.broadcast %cst_50 : f32 to vector<32x1xf32>
    %100 = arith.mulf %98, %99 : vector<32x1xf32>
    %101 = vector.broadcast %100 : vector<32x1xf32> to vector<32x4xf32>
    %102 = arith.subf %92, %101 : vector<32x4xf32>
    %103 = arith.mulf %102, %102 : vector<32x4xf32>
    %cst_51 = arith.constant dense<0.000000e+00> : vector<32xf32>
    %104 = vector.multi_reduction <add>, %103, %cst_51 [1] : vector<32x4xf32> to vector<32xf32>
    %105 = vector.shape_cast %104 : vector<32xf32> to vector<32x1xf32>
    %cst_52 = arith.constant 2.500000e-01 : f32
    %106 = vector.broadcast %cst_52 : f32 to vector<32x1xf32>
    %107 = arith.mulf %105, %106 : vector<32x1xf32>
    %cst_53 = arith.constant 9.99999974E-6 : f32
    %108 = vector.broadcast %cst_53 : f32 to vector<32x1xf32>
    %109 = arith.addf %107, %108 : vector<32x1xf32>
    %110 = math.rsqrt %109 : vector<32x1xf32>
    %111 = arith.mulf %94, %110 : vector<32x1xf32>
    %112 = vector.broadcast %111 : vector<32x1xf32> to vector<32x4xf32>
    %113 = arith.mulf %102, %112 : vector<32x4xf32>
    %114 = vector.broadcast %96 : vector<32x1xf32> to vector<32x4xf32>
    %115 = arith.addf %113, %114 : vector<32x4xf32>
    %116 = arith.addf %115, %4 : vector<32x4xf32>
    %cst_54 = arith.constant 0.000000e+00 : f32
    %117 = vector.broadcast %cst_54 : f32 to vector<32x4xf32>
    %118 = arith.cmpf ogt, %116, %117 : vector<32x4xf32>
    %cst_55 = arith.constant 0.00999999977 : f32
    %119 = vector.broadcast %cst_55 : f32 to vector<32x4xf32>
    %120 = arith.mulf %119, %116 : vector<32x4xf32>
    %121 = arith.select %118, %116, %120 : vector<32x4xi1>, vector<32x4xf32>
    %c0_56 = arith.constant 0 : index
    %c0_57 = arith.constant 0 : index
    %c0_58 = arith.constant 0 : index
    %c0_59 = arith.constant 0 : index
    %122 = vector.load %arg11[%c0_56, %c0_57, %c0_58, %c0_59] : memref<5x2x32x32xf32, #tpu.memory_space<vmem>>, vector<1x1x32x32xf32>
    %123 = vector.shape_cast %122 : vector<1x1x32x32xf32> to vector<32x32xf32>
    %c0_60 = arith.constant 0 : index
    %c1 = arith.constant 1 : index
    %c0_61 = arith.constant 0 : index
    %c0_62 = arith.constant 0 : index
    %124 = vector.load %arg11[%c0_60, %c1, %c0_61, %c0_62] : memref<5x2x32x32xf32, #tpu.memory_space<vmem>>, vector<1x1x32x32xf32>
    %125 = vector.shape_cast %124 : vector<1x1x32x32xf32> to vector<32x32xf32>
    %c0_63 = arith.constant 0 : index
    %c0_64 = arith.constant 0 : index
    %c0_65 = arith.constant 0 : index
    %126 = vector.load %arg12[%c0_63, %c0_64, %c0_65] : memref<5x32x1xf32, #tpu.memory_space<vmem>>, vector<1x32x1xf32>
    %127 = vector.shape_cast %126 : vector<1x32x1xf32> to vector<32x1xf32>
    %cst_66 = arith.constant dense<0.000000e+00> : vector<32x4xf32>
    %128 = tpu.matmul %123, %121, %cst_66 {dimension_numbers = #tpu.dot_dimension_numbers<[1], [0], [0], [1], [0, 0, 1, 1], [], []>} : vector<32x32xf32>, vector<32x4xf32>, vector<32x4xf32> -> vector<32x4xf32>
    %cst_67 = arith.constant dense<0.000000e+00> : vector<32x4xf32>
    %129 = tpu.matmul %125, %121, %cst_67 {dimension_numbers = #tpu.dot_dimension_numbers<[1], [0], [0], [1], [0, 0, 1, 1], [], []>} : vector<32x32xf32>, vector<32x4xf32>, vector<32x4xf32> -> vector<32x4xf32>
    %cst_68 = arith.constant dense<0.000000e+00> : vector<32x8xf32>
    %130 = tpu.matmul %128, %37, %cst_68 {dimension_numbers = #tpu.dot_dimension_numbers<[1], [0], [0], [1], [0, 0, 1, 1], [], []>} : vector<32x4xf32>, vector<4x8xf32>, vector<32x8xf32> -> vector<32x8xf32>
    %cst_69 = arith.constant dense<0.000000e+00> : vector<32x8xf32>
    %131 = tpu.matmul %129, %44, %cst_69 {dimension_numbers = #tpu.dot_dimension_numbers<[1], [0], [0], [1], [0, 0, 1, 1], [], []>} : vector<32x4xf32>, vector<4x8xf32>, vector<32x8xf32> -> vector<32x8xf32>
    %132 = arith.addf %130, %131 : vector<32x8xf32>
    %133 = vector.broadcast %127 : vector<32x1xf32> to vector<32x8xf32>
    %134 = arith.addf %132, %133 : vector<32x8xf32>
    %135 = tpu.iota {dimensions = array<i32: 0>} : vector<8x8xi32>
    %136 = tpu.iota {dimensions = array<i32: 1>} : vector<8x8xi32>
    %c0_i32_70 = arith.constant 0 : i32
    %137 = vector.broadcast %c0_i32_70 : i32 to vector<8x8xi32>
    %138 = arith.cmpi eq, %136, %137 : vector<8x8xi32>
    %c3_i32_71 = arith.constant 3 : i32
    %139 = vector.broadcast %c3_i32_71 : i32 to vector<8x8xi32>
    %140 = arith.cmpi eq, %136, %139 : vector<8x8xi32>
    %c4_i32 = arith.constant 4 : i32
    %141 = vector.broadcast %c4_i32 : i32 to vector<8x8xi32>
    %142 = arith.cmpi eq, %136, %141 : vector<8x8xi32>
    %143 = arith.ori %138, %142 : vector<8x8xi1>
    %c7_i32 = arith.constant 7 : i32
    %144 = vector.broadcast %c7_i32 : i32 to vector<8x8xi32>
    %145 = arith.cmpi eq, %136, %144 : vector<8x8xi32>
    %146 = arith.ori %140, %145 : vector<8x8xi1>
    %c1_i32_72 = arith.constant 1 : i32
    %147 = vector.broadcast %c1_i32_72 : i32 to vector<8x8xi32>
    %148 = arith.subi %136, %147 : vector<8x8xi32>
    %149 = arith.cmpi eq, %135, %148 : vector<8x8xi32>
    %cst_73 = arith.constant dense<true> : vector<8x8xi1>
    %150 = arith.xori %143, %cst_73 : vector<8x8xi1>
    %151 = arith.andi %149, %150 : vector<8x8xi1>
    %152 = arith.extui %151 : vector<8x8xi1> to vector<8x8xi32>
    %153 = arith.sitofp %152 : vector<8x8xi32> to vector<8x8xf32>
    %c1_i32_74 = arith.constant 1 : i32
    %154 = vector.broadcast %c1_i32_74 : i32 to vector<8x8xi32>
    %155 = arith.addi %136, %154 : vector<8x8xi32>
    %156 = arith.cmpi eq, %135, %155 : vector<8x8xi32>
    %cst_75 = arith.constant dense<true> : vector<8x8xi1>
    %157 = arith.xori %146, %cst_75 : vector<8x8xi1>
    %158 = arith.andi %156, %157 : vector<8x8xi1>
    %159 = arith.extui %158 : vector<8x8xi1> to vector<8x8xi32>
    %160 = arith.sitofp %159 : vector<8x8xi32> to vector<8x8xf32>
    %161 = tpu.iota {dimensions = array<i32: 0>} : vector<8x16xi32>
    %162 = tpu.iota {dimensions = array<i32: 1>} : vector<8x16xi32>
    %c2_i32_76 = arith.constant 2 : i32
    %163 = vector.broadcast %c2_i32_76 : i32 to vector<8x16xi32>
    %164 = arith.muli %163, %161 : vector<8x16xi32>
    %165 = arith.cmpi eq, %162, %164 : vector<8x16xi32>
    %166 = arith.extui %165 : vector<8x16xi1> to vector<8x16xi32>
    %167 = arith.sitofp %166 : vector<8x16xi32> to vector<8x16xf32>
    %c2_i32_77 = arith.constant 2 : i32
    %168 = vector.broadcast %c2_i32_77 : i32 to vector<8x16xi32>
    %169 = arith.muli %168, %161 : vector<8x16xi32>
    %c1_i32_78 = arith.constant 1 : i32
    %170 = vector.broadcast %c1_i32_78 : i32 to vector<8x16xi32>
    %171 = arith.addi %169, %170 : vector<8x16xi32>
    %172 = arith.cmpi eq, %162, %171 : vector<8x16xi32>
    %173 = arith.extui %172 : vector<8x16xi1> to vector<8x16xi32>
    %174 = arith.sitofp %173 : vector<8x16xi32> to vector<8x16xf32>
    %c1_79 = arith.constant 1 : index
    %c0_80 = arith.constant 0 : index
    %c0_81 = arith.constant 0 : index
    %175 = vector.load %arg3[%c1_79, %c0_80, %c0_81] : memref<5x32x96xf32, #tpu.memory_space<vmem>>, vector<1x32x96xf32>
    %176 = vector.shape_cast %175 : vector<1x32x96xf32> to vector<32x96xf32>
    %c1_82 = arith.constant 1 : index
    %c0_83 = arith.constant 0 : index
    %c0_84 = arith.constant 0 : index
    %177 = vector.load %arg4[%c1_82, %c0_83, %c0_84] : memref<5x32x1xf32, #tpu.memory_space<vmem>>, vector<1x32x1xf32>
    %178 = vector.shape_cast %177 : vector<1x32x1xf32> to vector<32x1xf32>
    %cst_85 = arith.constant dense<0.000000e+00> : vector<32x8xf32>
    %179 = tpu.matmul %134, %153, %cst_85 {dimension_numbers = #tpu.dot_dimension_numbers<[1], [0], [0], [1], [0, 0, 1, 1], [], []>} : vector<32x8xf32>, vector<8x8xf32>, vector<32x8xf32> -> vector<32x8xf32>
    %cst_86 = arith.constant dense<0.000000e+00> : vector<32x8xf32>
    %180 = tpu.matmul %134, %160, %cst_86 {dimension_numbers = #tpu.dot_dimension_numbers<[1], [0], [0], [1], [0, 0, 1, 1], [], []>} : vector<32x8xf32>, vector<8x8xf32>, vector<32x8xf32> -> vector<32x8xf32>
    %181 = tpu.concatenate %179, %134, %180 in 0 : vector<32x8xf32>, vector<32x8xf32>, vector<32x8xf32> -> vector<96x8xf32>
    %cst_87 = arith.constant dense<0.000000e+00> : vector<32x8xf32>
    %182 = tpu.matmul %176, %181, %cst_87 {dimension_numbers = #tpu.dot_dimension_numbers<[1], [0], [0], [1], [0, 0, 1, 1], [], []>} : vector<32x96xf32>, vector<96x8xf32>, vector<32x8xf32> -> vector<32x8xf32>
    %183 = vector.broadcast %178 : vector<32x1xf32> to vector<32x8xf32>
    %184 = arith.addf %182, %183 : vector<32x8xf32>
    %c1_88 = arith.constant 1 : index
    %c0_89 = arith.constant 0 : index
    %c0_90 = arith.constant 0 : index
    %185 = vector.load %arg5[%c1_88, %c0_89, %c0_90] : memref<5x32x1xf32, #tpu.memory_space<vmem>>, vector<1x32x1xf32>
    %186 = vector.shape_cast %185 : vector<1x32x1xf32> to vector<32x1xf32>
    %c1_91 = arith.constant 1 : index
    %c0_92 = arith.constant 0 : index
    %c0_93 = arith.constant 0 : index
    %187 = vector.load %arg6[%c1_91, %c0_92, %c0_93] : memref<5x32x1xf32, #tpu.memory_space<vmem>>, vector<1x32x1xf32>
    %188 = vector.shape_cast %187 : vector<1x32x1xf32> to vector<32x1xf32>
    %cst_94 = arith.constant dense<0.000000e+00> : vector<32xf32>
    %189 = vector.multi_reduction <add>, %184, %cst_94 [1] : vector<32x8xf32> to vector<32xf32>
    %190 = vector.shape_cast %189 : vector<32xf32> to vector<32x1xf32>
    %cst_95 = arith.constant 1.250000e-01 : f32
    %191 = vector.broadcast %cst_95 : f32 to vector<32x1xf32>
    %192 = arith.mulf %190, %191 : vector<32x1xf32>
    %193 = vector.broadcast %192 : vector<32x1xf32> to vector<32x8xf32>
    %194 = arith.subf %184, %193 : vector<32x8xf32>
    %195 = arith.mulf %194, %194 : vector<32x8xf32>
    %cst_96 = arith.constant dense<0.000000e+00> : vector<32xf32>
    %196 = vector.multi_reduction <add>, %195, %cst_96 [1] : vector<32x8xf32> to vector<32xf32>
    %197 = vector.shape_cast %196 : vector<32xf32> to vector<32x1xf32>
    %cst_97 = arith.constant 1.250000e-01 : f32
    %198 = vector.broadcast %cst_97 : f32 to vector<32x1xf32>
    %199 = arith.mulf %197, %198 : vector<32x1xf32>
    %cst_98 = arith.constant 9.99999974E-6 : f32
    %200 = vector.broadcast %cst_98 : f32 to vector<32x1xf32>
    %201 = arith.addf %199, %200 : vector<32x1xf32>
    %202 = math.rsqrt %201 : vector<32x1xf32>
    %203 = arith.mulf %186, %202 : vector<32x1xf32>
    %204 = vector.broadcast %203 : vector<32x1xf32> to vector<32x8xf32>
    %205 = arith.mulf %194, %204 : vector<32x8xf32>
    %206 = vector.broadcast %188 : vector<32x1xf32> to vector<32x8xf32>
    %207 = arith.addf %205, %206 : vector<32x8xf32>
    %cst_99 = arith.constant 0.000000e+00 : f32
    %208 = vector.broadcast %cst_99 : f32 to vector<32x8xf32>
    %209 = arith.cmpf ogt, %207, %208 : vector<32x8xf32>
    %cst_100 = arith.constant 0.00999999977 : f32
    %210 = vector.broadcast %cst_100 : f32 to vector<32x8xf32>
    %211 = arith.mulf %210, %207 : vector<32x8xf32>
    %212 = arith.select %209, %207, %211 : vector<32x8xi1>, vector<32x8xf32>
    %c1_101 = arith.constant 1 : index
    %c0_102 = arith.constant 0 : index
    %c0_103 = arith.constant 0 : index
    %213 = vector.load %arg7[%c1_101, %c0_102, %c0_103] : memref<5x32x96xf32, #tpu.memory_space<vmem>>, vector<1x32x96xf32>
    %214 = vector.shape_cast %213 : vector<1x32x96xf32> to vector<32x96xf32>
    %c1_104 = arith.constant 1 : index
    %c0_105 = arith.constant 0 : index
    %c0_106 = arith.constant 0 : index
    %215 = vector.load %arg8[%c1_104, %c0_105, %c0_106] : memref<5x32x1xf32, #tpu.memory_space<vmem>>, vector<1x32x1xf32>
    %216 = vector.shape_cast %215 : vector<1x32x1xf32> to vector<32x1xf32>
    %cst_107 = arith.constant dense<0.000000e+00> : vector<32x8xf32>
    %217 = tpu.matmul %212, %153, %cst_107 {dimension_numbers = #tpu.dot_dimension_numbers<[1], [0], [0], [1], [0, 0, 1, 1], [], []>} : vector<32x8xf32>, vector<8x8xf32>, vector<32x8xf32> -> vector<32x8xf32>
    %cst_108 = arith.constant dense<0.000000e+00> : vector<32x8xf32>
    %218 = tpu.matmul %212, %160, %cst_108 {dimension_numbers = #tpu.dot_dimension_numbers<[1], [0], [0], [1], [0, 0, 1, 1], [], []>} : vector<32x8xf32>, vector<8x8xf32>, vector<32x8xf32> -> vector<32x8xf32>
    %219 = tpu.concatenate %217, %212, %218 in 0 : vector<32x8xf32>, vector<32x8xf32>, vector<32x8xf32> -> vector<96x8xf32>
    %cst_109 = arith.constant dense<0.000000e+00> : vector<32x8xf32>
    %220 = tpu.matmul %214, %219, %cst_109 {dimension_numbers = #tpu.dot_dimension_numbers<[1], [0], [0], [1], [0, 0, 1, 1], [], []>} : vector<32x96xf32>, vector<96x8xf32>, vector<32x8xf32> -> vector<32x8xf32>
    %221 = vector.broadcast %216 : vector<32x1xf32> to vector<32x8xf32>
    %222 = arith.addf %220, %221 : vector<32x8xf32>
    %c1_110 = arith.constant 1 : index
    %c0_111 = arith.constant 0 : index
    %c0_112 = arith.constant 0 : index
    %223 = vector.load %arg9[%c1_110, %c0_111, %c0_112] : memref<5x32x1xf32, #tpu.memory_space<vmem>>, vector<1x32x1xf32>
    %224 = vector.shape_cast %223 : vector<1x32x1xf32> to vector<32x1xf32>
    %c1_113 = arith.constant 1 : index
    %c0_114 = arith.constant 0 : index
    %c0_115 = arith.constant 0 : index
    %225 = vector.load %arg10[%c1_113, %c0_114, %c0_115] : memref<5x32x1xf32, #tpu.memory_space<vmem>>, vector<1x32x1xf32>
    %226 = vector.shape_cast %225 : vector<1x32x1xf32> to vector<32x1xf32>
    %cst_116 = arith.constant dense<0.000000e+00> : vector<32xf32>
    %227 = vector.multi_reduction <add>, %222, %cst_116 [1] : vector<32x8xf32> to vector<32xf32>
    %228 = vector.shape_cast %227 : vector<32xf32> to vector<32x1xf32>
    %cst_117 = arith.constant 1.250000e-01 : f32
    %229 = vector.broadcast %cst_117 : f32 to vector<32x1xf32>
    %230 = arith.mulf %228, %229 : vector<32x1xf32>
    %231 = vector.broadcast %230 : vector<32x1xf32> to vector<32x8xf32>
    %232 = arith.subf %222, %231 : vector<32x8xf32>
    %233 = arith.mulf %232, %232 : vector<32x8xf32>
    %cst_118 = arith.constant dense<0.000000e+00> : vector<32xf32>
    %234 = vector.multi_reduction <add>, %233, %cst_118 [1] : vector<32x8xf32> to vector<32xf32>
    %235 = vector.shape_cast %234 : vector<32xf32> to vector<32x1xf32>
    %cst_119 = arith.constant 1.250000e-01 : f32
    %236 = vector.broadcast %cst_119 : f32 to vector<32x1xf32>
    %237 = arith.mulf %235, %236 : vector<32x1xf32>
    %cst_120 = arith.constant 9.99999974E-6 : f32
    %238 = vector.broadcast %cst_120 : f32 to vector<32x1xf32>
    %239 = arith.addf %237, %238 : vector<32x1xf32>
    %240 = math.rsqrt %239 : vector<32x1xf32>
    %241 = arith.mulf %224, %240 : vector<32x1xf32>
    %242 = vector.broadcast %241 : vector<32x1xf32> to vector<32x8xf32>
    %243 = arith.mulf %232, %242 : vector<32x8xf32>
    %244 = vector.broadcast %226 : vector<32x1xf32> to vector<32x8xf32>
    %245 = arith.addf %243, %244 : vector<32x8xf32>
    %246 = arith.addf %245, %134 : vector<32x8xf32>
    %cst_121 = arith.constant 0.000000e+00 : f32
    %247 = vector.broadcast %cst_121 : f32 to vector<32x8xf32>
    %248 = arith.cmpf ogt, %246, %247 : vector<32x8xf32>
    %cst_122 = arith.constant 0.00999999977 : f32
    %249 = vector.broadcast %cst_122 : f32 to vector<32x8xf32>
    %250 = arith.mulf %249, %246 : vector<32x8xf32>
    %251 = arith.select %248, %246, %250 : vector<32x8xi1>, vector<32x8xf32>
    %c1_123 = arith.constant 1 : index
    %c0_124 = arith.constant 0 : index
    %c0_125 = arith.constant 0 : index
    %c0_126 = arith.constant 0 : index
    %252 = vector.load %arg11[%c1_123, %c0_124, %c0_125, %c0_126] : memref<5x2x32x32xf32, #tpu.memory_space<vmem>>, vector<1x1x32x32xf32>
    %253 = vector.shape_cast %252 : vector<1x1x32x32xf32> to vector<32x32xf32>
    %c1_127 = arith.constant 1 : index
    %c1_128 = arith.constant 1 : index
    %c0_129 = arith.constant 0 : index
    %c0_130 = arith.constant 0 : index
    %254 = vector.load %arg11[%c1_127, %c1_128, %c0_129, %c0_130] : memref<5x2x32x32xf32, #tpu.memory_space<vmem>>, vector<1x1x32x32xf32>
    %255 = vector.shape_cast %254 : vector<1x1x32x32xf32> to vector<32x32xf32>
    %c1_131 = arith.constant 1 : index
    %c0_132 = arith.constant 0 : index
    %c0_133 = arith.constant 0 : index
    %256 = vector.load %arg12[%c1_131, %c0_132, %c0_133] : memref<5x32x1xf32, #tpu.memory_space<vmem>>, vector<1x32x1xf32>
    %257 = vector.shape_cast %256 : vector<1x32x1xf32> to vector<32x1xf32>
    %cst_134 = arith.constant dense<0.000000e+00> : vector<32x8xf32>
    %258 = tpu.matmul %253, %251, %cst_134 {dimension_numbers = #tpu.dot_dimension_numbers<[1], [0], [0], [1], [0, 0, 1, 1], [], []>} : vector<32x32xf32>, vector<32x8xf32>, vector<32x8xf32> -> vector<32x8xf32>
    %cst_135 = arith.constant dense<0.000000e+00> : vector<32x8xf32>
    %259 = tpu.matmul %255, %251, %cst_135 {dimension_numbers = #tpu.dot_dimension_numbers<[1], [0], [0], [1], [0, 0, 1, 1], [], []>} : vector<32x32xf32>, vector<32x8xf32>, vector<32x8xf32> -> vector<32x8xf32>
    %cst_136 = arith.constant dense<0.000000e+00> : vector<32x16xf32>
    %260 = tpu.matmul %258, %167, %cst_136 {dimension_numbers = #tpu.dot_dimension_numbers<[1], [0], [0], [1], [0, 0, 1, 1], [], []>} : vector<32x8xf32>, vector<8x16xf32>, vector<32x16xf32> -> vector<32x16xf32>
    %cst_137 = arith.constant dense<0.000000e+00> : vector<32x16xf32>
    %261 = tpu.matmul %259, %174, %cst_137 {dimension_numbers = #tpu.dot_dimension_numbers<[1], [0], [0], [1], [0, 0, 1, 1], [], []>} : vector<32x8xf32>, vector<8x16xf32>, vector<32x16xf32> -> vector<32x16xf32>
    %262 = arith.addf %260, %261 : vector<32x16xf32>
    %263 = vector.broadcast %257 : vector<32x1xf32> to vector<32x16xf32>
    %264 = arith.addf %262, %263 : vector<32x16xf32>
    %265 = tpu.iota {dimensions = array<i32: 0>} : vector<16x16xi32>
    %266 = tpu.iota {dimensions = array<i32: 1>} : vector<16x16xi32>
    %c0_i32_138 = arith.constant 0 : i32
    %267 = vector.broadcast %c0_i32_138 : i32 to vector<16x16xi32>
    %268 = arith.cmpi eq, %266, %267 : vector<16x16xi32>
    %c7_i32_139 = arith.constant 7 : i32
    %269 = vector.broadcast %c7_i32_139 : i32 to vector<16x16xi32>
    %270 = arith.cmpi eq, %266, %269 : vector<16x16xi32>
    %c8_i32 = arith.constant 8 : i32
    %271 = vector.broadcast %c8_i32 : i32 to vector<16x16xi32>
    %272 = arith.cmpi eq, %266, %271 : vector<16x16xi32>
    %273 = arith.ori %268, %272 : vector<16x16xi1>
    %c15_i32 = arith.constant 15 : i32
    %274 = vector.broadcast %c15_i32 : i32 to vector<16x16xi32>
    %275 = arith.cmpi eq, %266, %274 : vector<16x16xi32>
    %276 = arith.ori %270, %275 : vector<16x16xi1>
    %c1_i32_140 = arith.constant 1 : i32
    %277 = vector.broadcast %c1_i32_140 : i32 to vector<16x16xi32>
    %278 = arith.subi %266, %277 : vector<16x16xi32>
    %279 = arith.cmpi eq, %265, %278 : vector<16x16xi32>
    %cst_141 = arith.constant dense<true> : vector<16x16xi1>
    %280 = arith.xori %273, %cst_141 : vector<16x16xi1>
    %281 = arith.andi %279, %280 : vector<16x16xi1>
    %282 = arith.extui %281 : vector<16x16xi1> to vector<16x16xi32>
    %283 = arith.sitofp %282 : vector<16x16xi32> to vector<16x16xf32>
    %c1_i32_142 = arith.constant 1 : i32
    %284 = vector.broadcast %c1_i32_142 : i32 to vector<16x16xi32>
    %285 = arith.addi %266, %284 : vector<16x16xi32>
    %286 = arith.cmpi eq, %265, %285 : vector<16x16xi32>
    %cst_143 = arith.constant dense<true> : vector<16x16xi1>
    %287 = arith.xori %276, %cst_143 : vector<16x16xi1>
    %288 = arith.andi %286, %287 : vector<16x16xi1>
    %289 = arith.extui %288 : vector<16x16xi1> to vector<16x16xi32>
    %290 = arith.sitofp %289 : vector<16x16xi32> to vector<16x16xf32>
    %291 = tpu.iota {dimensions = array<i32: 0>} : vector<16x32xi32>
    %292 = tpu.iota {dimensions = array<i32: 1>} : vector<16x32xi32>
    %c2_i32_144 = arith.constant 2 : i32
    %293 = vector.broadcast %c2_i32_144 : i32 to vector<16x32xi32>
    %294 = arith.muli %293, %291 : vector<16x32xi32>
    %295 = arith.cmpi eq, %292, %294 : vector<16x32xi32>
    %296 = arith.extui %295 : vector<16x32xi1> to vector<16x32xi32>
    %297 = arith.sitofp %296 : vector<16x32xi32> to vector<16x32xf32>
    %c2_i32_145 = arith.constant 2 : i32
    %298 = vector.broadcast %c2_i32_145 : i32 to vector<16x32xi32>
    %299 = arith.muli %298, %291 : vector<16x32xi32>
    %c1_i32_146 = arith.constant 1 : i32
    %300 = vector.broadcast %c1_i32_146 : i32 to vector<16x32xi32>
    %301 = arith.addi %299, %300 : vector<16x32xi32>
    %302 = arith.cmpi eq, %292, %301 : vector<16x32xi32>
    %303 = arith.extui %302 : vector<16x32xi1> to vector<16x32xi32>
    %304 = arith.sitofp %303 : vector<16x32xi32> to vector<16x32xf32>
    %c2 = arith.constant 2 : index
    %c0_147 = arith.constant 0 : index
    %c0_148 = arith.constant 0 : index
    %305 = vector.load %arg3[%c2, %c0_147, %c0_148] : memref<5x32x96xf32, #tpu.memory_space<vmem>>, vector<1x32x96xf32>
    %306 = vector.shape_cast %305 : vector<1x32x96xf32> to vector<32x96xf32>
    %c2_149 = arith.constant 2 : index
    %c0_150 = arith.constant 0 : index
    %c0_151 = arith.constant 0 : index
    %307 = vector.load %arg4[%c2_149, %c0_150, %c0_151] : memref<5x32x1xf32, #tpu.memory_space<vmem>>, vector<1x32x1xf32>
    %308 = vector.shape_cast %307 : vector<1x32x1xf32> to vector<32x1xf32>
    %cst_152 = arith.constant dense<0.000000e+00> : vector<32x16xf32>
    %309 = tpu.matmul %264, %283, %cst_152 {dimension_numbers = #tpu.dot_dimension_numbers<[1], [0], [0], [1], [0, 0, 1, 1], [], []>} : vector<32x16xf32>, vector<16x16xf32>, vector<32x16xf32> -> vector<32x16xf32>
    %cst_153 = arith.constant dense<0.000000e+00> : vector<32x16xf32>
    %310 = tpu.matmul %264, %290, %cst_153 {dimension_numbers = #tpu.dot_dimension_numbers<[1], [0], [0], [1], [0, 0, 1, 1], [], []>} : vector<32x16xf32>, vector<16x16xf32>, vector<32x16xf32> -> vector<32x16xf32>
    %311 = tpu.concatenate %309, %264, %310 in 0 : vector<32x16xf32>, vector<32x16xf32>, vector<32x16xf32> -> vector<96x16xf32>
    %cst_154 = arith.constant dense<0.000000e+00> : vector<32x16xf32>
    %312 = tpu.matmul %306, %311, %cst_154 {dimension_numbers = #tpu.dot_dimension_numbers<[1], [0], [0], [1], [0, 0, 1, 1], [], []>} : vector<32x96xf32>, vector<96x16xf32>, vector<32x16xf32> -> vector<32x16xf32>
    %313 = vector.broadcast %308 : vector<32x1xf32> to vector<32x16xf32>
    %314 = arith.addf %312, %313 : vector<32x16xf32>
    %c2_155 = arith.constant 2 : index
    %c0_156 = arith.constant 0 : index
    %c0_157 = arith.constant 0 : index
    %315 = vector.load %arg5[%c2_155, %c0_156, %c0_157] : memref<5x32x1xf32, #tpu.memory_space<vmem>>, vector<1x32x1xf32>
    %316 = vector.shape_cast %315 : vector<1x32x1xf32> to vector<32x1xf32>
    %c2_158 = arith.constant 2 : index
    %c0_159 = arith.constant 0 : index
    %c0_160 = arith.constant 0 : index
    %317 = vector.load %arg6[%c2_158, %c0_159, %c0_160] : memref<5x32x1xf32, #tpu.memory_space<vmem>>, vector<1x32x1xf32>
    %318 = vector.shape_cast %317 : vector<1x32x1xf32> to vector<32x1xf32>
    %cst_161 = arith.constant dense<0.000000e+00> : vector<32xf32>
    %319 = vector.multi_reduction <add>, %314, %cst_161 [1] : vector<32x16xf32> to vector<32xf32>
    %320 = vector.shape_cast %319 : vector<32xf32> to vector<32x1xf32>
    %cst_162 = arith.constant 6.250000e-02 : f32
    %321 = vector.broadcast %cst_162 : f32 to vector<32x1xf32>
    %322 = arith.mulf %320, %321 : vector<32x1xf32>
    %323 = vector.broadcast %322 : vector<32x1xf32> to vector<32x16xf32>
    %324 = arith.subf %314, %323 : vector<32x16xf32>
    %325 = arith.mulf %324, %324 : vector<32x16xf32>
    %cst_163 = arith.constant dense<0.000000e+00> : vector<32xf32>
    %326 = vector.multi_reduction <add>, %325, %cst_163 [1] : vector<32x16xf32> to vector<32xf32>
    %327 = vector.shape_cast %326 : vector<32xf32> to vector<32x1xf32>
    %cst_164 = arith.constant 6.250000e-02 : f32
    %328 = vector.broadcast %cst_164 : f32 to vector<32x1xf32>
    %329 = arith.mulf %327, %328 : vector<32x1xf32>
    %cst_165 = arith.constant 9.99999974E-6 : f32
    %330 = vector.broadcast %cst_165 : f32 to vector<32x1xf32>
    %331 = arith.addf %329, %330 : vector<32x1xf32>
    %332 = math.rsqrt %331 : vector<32x1xf32>
    %333 = arith.mulf %316, %332 : vector<32x1xf32>
    %334 = vector.broadcast %333 : vector<32x1xf32> to vector<32x16xf32>
    %335 = arith.mulf %324, %334 : vector<32x16xf32>
    %336 = vector.broadcast %318 : vector<32x1xf32> to vector<32x16xf32>
    %337 = arith.addf %335, %336 : vector<32x16xf32>
    %cst_166 = arith.constant 0.000000e+00 : f32
    %338 = vector.broadcast %cst_166 : f32 to vector<32x16xf32>
    %339 = arith.cmpf ogt, %337, %338 : vector<32x16xf32>
    %cst_167 = arith.constant 0.00999999977 : f32
    %340 = vector.broadcast %cst_167 : f32 to vector<32x16xf32>
    %341 = arith.mulf %340, %337 : vector<32x16xf32>
    %342 = arith.select %339, %337, %341 : vector<32x16xi1>, vector<32x16xf32>
    %c2_168 = arith.constant 2 : index
    %c0_169 = arith.constant 0 : index
    %c0_170 = arith.constant 0 : index
    %343 = vector.load %arg7[%c2_168, %c0_169, %c0_170] : memref<5x32x96xf32, #tpu.memory_space<vmem>>, vector<1x32x96xf32>
    %344 = vector.shape_cast %343 : vector<1x32x96xf32> to vector<32x96xf32>
    %c2_171 = arith.constant 2 : index
    %c0_172 = arith.constant 0 : index
    %c0_173 = arith.constant 0 : index
    %345 = vector.load %arg8[%c2_171, %c0_172, %c0_173] : memref<5x32x1xf32, #tpu.memory_space<vmem>>, vector<1x32x1xf32>
    %346 = vector.shape_cast %345 : vector<1x32x1xf32> to vector<32x1xf32>
    %cst_174 = arith.constant dense<0.000000e+00> : vector<32x16xf32>
    %347 = tpu.matmul %342, %283, %cst_174 {dimension_numbers = #tpu.dot_dimension_numbers<[1], [0], [0], [1], [0, 0, 1, 1], [], []>} : vector<32x16xf32>, vector<16x16xf32>, vector<32x16xf32> -> vector<32x16xf32>
    %cst_175 = arith.constant dense<0.000000e+00> : vector<32x16xf32>
    %348 = tpu.matmul %342, %290, %cst_175 {dimension_numbers = #tpu.dot_dimension_numbers<[1], [0], [0], [1], [0, 0, 1, 1], [], []>} : vector<32x16xf32>, vector<16x16xf32>, vector<32x16xf32> -> vector<32x16xf32>
    %349 = tpu.concatenate %347, %342, %348 in 0 : vector<32x16xf32>, vector<32x16xf32>, vector<32x16xf32> -> vector<96x16xf32>
    %cst_176 = arith.constant dense<0.000000e+00> : vector<32x16xf32>
    %350 = tpu.matmul %344, %349, %cst_176 {dimension_numbers = #tpu.dot_dimension_numbers<[1], [0], [0], [1], [0, 0, 1, 1], [], []>} : vector<32x96xf32>, vector<96x16xf32>, vector<32x16xf32> -> vector<32x16xf32>
    %351 = vector.broadcast %346 : vector<32x1xf32> to vector<32x16xf32>
    %352 = arith.addf %350, %351 : vector<32x16xf32>
    %c2_177 = arith.constant 2 : index
    %c0_178 = arith.constant 0 : index
    %c0_179 = arith.constant 0 : index
    %353 = vector.load %arg9[%c2_177, %c0_178, %c0_179] : memref<5x32x1xf32, #tpu.memory_space<vmem>>, vector<1x32x1xf32>
    %354 = vector.shape_cast %353 : vector<1x32x1xf32> to vector<32x1xf32>
    %c2_180 = arith.constant 2 : index
    %c0_181 = arith.constant 0 : index
    %c0_182 = arith.constant 0 : index
    %355 = vector.load %arg10[%c2_180, %c0_181, %c0_182] : memref<5x32x1xf32, #tpu.memory_space<vmem>>, vector<1x32x1xf32>
    %356 = vector.shape_cast %355 : vector<1x32x1xf32> to vector<32x1xf32>
    %cst_183 = arith.constant dense<0.000000e+00> : vector<32xf32>
    %357 = vector.multi_reduction <add>, %352, %cst_183 [1] : vector<32x16xf32> to vector<32xf32>
    %358 = vector.shape_cast %357 : vector<32xf32> to vector<32x1xf32>
    %cst_184 = arith.constant 6.250000e-02 : f32
    %359 = vector.broadcast %cst_184 : f32 to vector<32x1xf32>
    %360 = arith.mulf %358, %359 : vector<32x1xf32>
    %361 = vector.broadcast %360 : vector<32x1xf32> to vector<32x16xf32>
    %362 = arith.subf %352, %361 : vector<32x16xf32>
    %363 = arith.mulf %362, %362 : vector<32x16xf32>
    %cst_185 = arith.constant dense<0.000000e+00> : vector<32xf32>
    %364 = vector.multi_reduction <add>, %363, %cst_185 [1] : vector<32x16xf32> to vector<32xf32>
    %365 = vector.shape_cast %364 : vector<32xf32> to vector<32x1xf32>
    %cst_186 = arith.constant 6.250000e-02 : f32
    %366 = vector.broadcast %cst_186 : f32 to vector<32x1xf32>
    %367 = arith.mulf %365, %366 : vector<32x1xf32>
    %cst_187 = arith.constant 9.99999974E-6 : f32
    %368 = vector.broadcast %cst_187 : f32 to vector<32x1xf32>
    %369 = arith.addf %367, %368 : vector<32x1xf32>
    %370 = math.rsqrt %369 : vector<32x1xf32>
    %371 = arith.mulf %354, %370 : vector<32x1xf32>
    %372 = vector.broadcast %371 : vector<32x1xf32> to vector<32x16xf32>
    %373 = arith.mulf %362, %372 : vector<32x16xf32>
    %374 = vector.broadcast %356 : vector<32x1xf32> to vector<32x16xf32>
    %375 = arith.addf %373, %374 : vector<32x16xf32>
    %376 = arith.addf %375, %264 : vector<32x16xf32>
    %cst_188 = arith.constant 0.000000e+00 : f32
    %377 = vector.broadcast %cst_188 : f32 to vector<32x16xf32>
    %378 = arith.cmpf ogt, %376, %377 : vector<32x16xf32>
    %cst_189 = arith.constant 0.00999999977 : f32
    %379 = vector.broadcast %cst_189 : f32 to vector<32x16xf32>
    %380 = arith.mulf %379, %376 : vector<32x16xf32>
    %381 = arith.select %378, %376, %380 : vector<32x16xi1>, vector<32x16xf32>
    %c2_190 = arith.constant 2 : index
    %c0_191 = arith.constant 0 : index
    %c0_192 = arith.constant 0 : index
    %c0_193 = arith.constant 0 : index
    %382 = vector.load %arg11[%c2_190, %c0_191, %c0_192, %c0_193] : memref<5x2x32x32xf32, #tpu.memory_space<vmem>>, vector<1x1x32x32xf32>
    %383 = vector.shape_cast %382 : vector<1x1x32x32xf32> to vector<32x32xf32>
    %c2_194 = arith.constant 2 : index
    %c1_195 = arith.constant 1 : index
    %c0_196 = arith.constant 0 : index
    %c0_197 = arith.constant 0 : index
    %384 = vector.load %arg11[%c2_194, %c1_195, %c0_196, %c0_197] : memref<5x2x32x32xf32, #tpu.memory_space<vmem>>, vector<1x1x32x32xf32>
    %385 = vector.shape_cast %384 : vector<1x1x32x32xf32> to vector<32x32xf32>
    %c2_198 = arith.constant 2 : index
    %c0_199 = arith.constant 0 : index
    %c0_200 = arith.constant 0 : index
    %386 = vector.load %arg12[%c2_198, %c0_199, %c0_200] : memref<5x32x1xf32, #tpu.memory_space<vmem>>, vector<1x32x1xf32>
    %387 = vector.shape_cast %386 : vector<1x32x1xf32> to vector<32x1xf32>
    %cst_201 = arith.constant dense<0.000000e+00> : vector<32x16xf32>
    %388 = tpu.matmul %383, %381, %cst_201 {dimension_numbers = #tpu.dot_dimension_numbers<[1], [0], [0], [1], [0, 0, 1, 1], [], []>} : vector<32x32xf32>, vector<32x16xf32>, vector<32x16xf32> -> vector<32x16xf32>
    %cst_202 = arith.constant dense<0.000000e+00> : vector<32x16xf32>
    %389 = tpu.matmul %385, %381, %cst_202 {dimension_numbers = #tpu.dot_dimension_numbers<[1], [0], [0], [1], [0, 0, 1, 1], [], []>} : vector<32x32xf32>, vector<32x16xf32>, vector<32x16xf32> -> vector<32x16xf32>
    %cst_203 = arith.constant dense<0.000000e+00> : vector<32x32xf32>
    %390 = tpu.matmul %388, %297, %cst_203 {dimension_numbers = #tpu.dot_dimension_numbers<[1], [0], [0], [1], [0, 0, 1, 1], [], []>} : vector<32x16xf32>, vector<16x32xf32>, vector<32x32xf32> -> vector<32x32xf32>
    %cst_204 = arith.constant dense<0.000000e+00> : vector<32x32xf32>
    %391 = tpu.matmul %389, %304, %cst_204 {dimension_numbers = #tpu.dot_dimension_numbers<[1], [0], [0], [1], [0, 0, 1, 1], [], []>} : vector<32x16xf32>, vector<16x32xf32>, vector<32x32xf32> -> vector<32x32xf32>
    %392 = arith.addf %390, %391 : vector<32x32xf32>
    %393 = vector.broadcast %387 : vector<32x1xf32> to vector<32x32xf32>
    %394 = arith.addf %392, %393 : vector<32x32xf32>
    %395 = tpu.iota {dimensions = array<i32: 0>} : vector<32x32xi32>
    %396 = tpu.iota {dimensions = array<i32: 1>} : vector<32x32xi32>
    %c0_i32_205 = arith.constant 0 : i32
    %397 = vector.broadcast %c0_i32_205 : i32 to vector<32x32xi32>
    %398 = arith.cmpi eq, %396, %397 : vector<32x32xi32>
    %c15_i32_206 = arith.constant 15 : i32
    %399 = vector.broadcast %c15_i32_206 : i32 to vector<32x32xi32>
    %400 = arith.cmpi eq, %396, %399 : vector<32x32xi32>
    %c16_i32 = arith.constant 16 : i32
    %401 = vector.broadcast %c16_i32 : i32 to vector<32x32xi32>
    %402 = arith.cmpi eq, %396, %401 : vector<32x32xi32>
    %403 = arith.ori %398, %402 : vector<32x32xi1>
    %c31_i32 = arith.constant 31 : i32
    %404 = vector.broadcast %c31_i32 : i32 to vector<32x32xi32>
    %405 = arith.cmpi eq, %396, %404 : vector<32x32xi32>
    %406 = arith.ori %400, %405 : vector<32x32xi1>
    %c1_i32_207 = arith.constant 1 : i32
    %407 = vector.broadcast %c1_i32_207 : i32 to vector<32x32xi32>
    %408 = arith.subi %396, %407 : vector<32x32xi32>
    %409 = arith.cmpi eq, %395, %408 : vector<32x32xi32>
    %cst_208 = arith.constant dense<true> : vector<32x32xi1>
    %410 = arith.xori %403, %cst_208 : vector<32x32xi1>
    %411 = arith.andi %409, %410 : vector<32x32xi1>
    %412 = arith.extui %411 : vector<32x32xi1> to vector<32x32xi32>
    %413 = arith.sitofp %412 : vector<32x32xi32> to vector<32x32xf32>
    %c1_i32_209 = arith.constant 1 : i32
    %414 = vector.broadcast %c1_i32_209 : i32 to vector<32x32xi32>
    %415 = arith.addi %396, %414 : vector<32x32xi32>
    %416 = arith.cmpi eq, %395, %415 : vector<32x32xi32>
    %cst_210 = arith.constant dense<true> : vector<32x32xi1>
    %417 = arith.xori %406, %cst_210 : vector<32x32xi1>
    %418 = arith.andi %416, %417 : vector<32x32xi1>
    %419 = arith.extui %418 : vector<32x32xi1> to vector<32x32xi32>
    %420 = arith.sitofp %419 : vector<32x32xi32> to vector<32x32xf32>
    %421 = tpu.iota {dimensions = array<i32: 0>} : vector<32x64xi32>
    %422 = tpu.iota {dimensions = array<i32: 1>} : vector<32x64xi32>
    %c2_i32_211 = arith.constant 2 : i32
    %423 = vector.broadcast %c2_i32_211 : i32 to vector<32x64xi32>
    %424 = arith.muli %423, %421 : vector<32x64xi32>
    %425 = arith.cmpi eq, %422, %424 : vector<32x64xi32>
    %426 = arith.extui %425 : vector<32x64xi1> to vector<32x64xi32>
    %427 = arith.sitofp %426 : vector<32x64xi32> to vector<32x64xf32>
    %c2_i32_212 = arith.constant 2 : i32
    %428 = vector.broadcast %c2_i32_212 : i32 to vector<32x64xi32>
    %429 = arith.muli %428, %421 : vector<32x64xi32>
    %c1_i32_213 = arith.constant 1 : i32
    %430 = vector.broadcast %c1_i32_213 : i32 to vector<32x64xi32>
    %431 = arith.addi %429, %430 : vector<32x64xi32>
    %432 = arith.cmpi eq, %422, %431 : vector<32x64xi32>
    %433 = arith.extui %432 : vector<32x64xi1> to vector<32x64xi32>
    %434 = arith.sitofp %433 : vector<32x64xi32> to vector<32x64xf32>
    %c3 = arith.constant 3 : index
    %c0_214 = arith.constant 0 : index
    %c0_215 = arith.constant 0 : index
    %435 = vector.load %arg3[%c3, %c0_214, %c0_215] : memref<5x32x96xf32, #tpu.memory_space<vmem>>, vector<1x32x96xf32>
    %436 = vector.shape_cast %435 : vector<1x32x96xf32> to vector<32x96xf32>
    %c3_216 = arith.constant 3 : index
    %c0_217 = arith.constant 0 : index
    %c0_218 = arith.constant 0 : index
    %437 = vector.load %arg4[%c3_216, %c0_217, %c0_218] : memref<5x32x1xf32, #tpu.memory_space<vmem>>, vector<1x32x1xf32>
    %438 = vector.shape_cast %437 : vector<1x32x1xf32> to vector<32x1xf32>
    %cst_219 = arith.constant dense<0.000000e+00> : vector<32x32xf32>
    %439 = tpu.matmul %394, %413, %cst_219 {dimension_numbers = #tpu.dot_dimension_numbers<[1], [0], [0], [1], [0, 0, 1, 1], [], []>} : vector<32x32xf32>, vector<32x32xf32>, vector<32x32xf32> -> vector<32x32xf32>
    %cst_220 = arith.constant dense<0.000000e+00> : vector<32x32xf32>
    %440 = tpu.matmul %394, %420, %cst_220 {dimension_numbers = #tpu.dot_dimension_numbers<[1], [0], [0], [1], [0, 0, 1, 1], [], []>} : vector<32x32xf32>, vector<32x32xf32>, vector<32x32xf32> -> vector<32x32xf32>
    %441 = tpu.concatenate %439, %394, %440 in 0 : vector<32x32xf32>, vector<32x32xf32>, vector<32x32xf32> -> vector<96x32xf32>
    %cst_221 = arith.constant dense<0.000000e+00> : vector<32x32xf32>
    %442 = tpu.matmul %436, %441, %cst_221 {dimension_numbers = #tpu.dot_dimension_numbers<[1], [0], [0], [1], [0, 0, 1, 1], [], []>} : vector<32x96xf32>, vector<96x32xf32>, vector<32x32xf32> -> vector<32x32xf32>
    %443 = vector.broadcast %438 : vector<32x1xf32> to vector<32x32xf32>
    %444 = arith.addf %442, %443 : vector<32x32xf32>
    %c3_222 = arith.constant 3 : index
    %c0_223 = arith.constant 0 : index
    %c0_224 = arith.constant 0 : index
    %445 = vector.load %arg5[%c3_222, %c0_223, %c0_224] : memref<5x32x1xf32, #tpu.memory_space<vmem>>, vector<1x32x1xf32>
    %446 = vector.shape_cast %445 : vector<1x32x1xf32> to vector<32x1xf32>
    %c3_225 = arith.constant 3 : index
    %c0_226 = arith.constant 0 : index
    %c0_227 = arith.constant 0 : index
    %447 = vector.load %arg6[%c3_225, %c0_226, %c0_227] : memref<5x32x1xf32, #tpu.memory_space<vmem>>, vector<1x32x1xf32>
    %448 = vector.shape_cast %447 : vector<1x32x1xf32> to vector<32x1xf32>
    %cst_228 = arith.constant dense<0.000000e+00> : vector<32xf32>
    %449 = vector.multi_reduction <add>, %444, %cst_228 [1] : vector<32x32xf32> to vector<32xf32>
    %450 = vector.shape_cast %449 : vector<32xf32> to vector<32x1xf32>
    %cst_229 = arith.constant 3.125000e-02 : f32
    %451 = vector.broadcast %cst_229 : f32 to vector<32x1xf32>
    %452 = arith.mulf %450, %451 : vector<32x1xf32>
    %453 = vector.broadcast %452 : vector<32x1xf32> to vector<32x32xf32>
    %454 = arith.subf %444, %453 : vector<32x32xf32>
    %455 = arith.mulf %454, %454 : vector<32x32xf32>
    %cst_230 = arith.constant dense<0.000000e+00> : vector<32xf32>
    %456 = vector.multi_reduction <add>, %455, %cst_230 [1] : vector<32x32xf32> to vector<32xf32>
    %457 = vector.shape_cast %456 : vector<32xf32> to vector<32x1xf32>
    %cst_231 = arith.constant 3.125000e-02 : f32
    %458 = vector.broadcast %cst_231 : f32 to vector<32x1xf32>
    %459 = arith.mulf %457, %458 : vector<32x1xf32>
    %cst_232 = arith.constant 9.99999974E-6 : f32
    %460 = vector.broadcast %cst_232 : f32 to vector<32x1xf32>
    %461 = arith.addf %459, %460 : vector<32x1xf32>
    %462 = math.rsqrt %461 : vector<32x1xf32>
    %463 = arith.mulf %446, %462 : vector<32x1xf32>
    %464 = vector.broadcast %463 : vector<32x1xf32> to vector<32x32xf32>
    %465 = arith.mulf %454, %464 : vector<32x32xf32>
    %466 = vector.broadcast %448 : vector<32x1xf32> to vector<32x32xf32>
    %467 = arith.addf %465, %466 : vector<32x32xf32>
    %cst_233 = arith.constant 0.000000e+00 : f32
    %468 = vector.broadcast %cst_233 : f32 to vector<32x32xf32>
    %469 = arith.cmpf ogt, %467, %468 : vector<32x32xf32>
    %cst_234 = arith.constant 0.00999999977 : f32
    %470 = vector.broadcast %cst_234 : f32 to vector<32x32xf32>
    %471 = arith.mulf %470, %467 : vector<32x32xf32>
    %472 = arith.select %469, %467, %471 : vector<32x32xi1>, vector<32x32xf32>
    %c3_235 = arith.constant 3 : index
    %c0_236 = arith.constant 0 : index
    %c0_237 = arith.constant 0 : index
    %473 = vector.load %arg7[%c3_235, %c0_236, %c0_237] : memref<5x32x96xf32, #tpu.memory_space<vmem>>, vector<1x32x96xf32>
    %474 = vector.shape_cast %473 : vector<1x32x96xf32> to vector<32x96xf32>
    %c3_238 = arith.constant 3 : index
    %c0_239 = arith.constant 0 : index
    %c0_240 = arith.constant 0 : index
    %475 = vector.load %arg8[%c3_238, %c0_239, %c0_240] : memref<5x32x1xf32, #tpu.memory_space<vmem>>, vector<1x32x1xf32>
    %476 = vector.shape_cast %475 : vector<1x32x1xf32> to vector<32x1xf32>
    %cst_241 = arith.constant dense<0.000000e+00> : vector<32x32xf32>
    %477 = tpu.matmul %472, %413, %cst_241 {dimension_numbers = #tpu.dot_dimension_numbers<[1], [0], [0], [1], [0, 0, 1, 1], [], []>} : vector<32x32xf32>, vector<32x32xf32>, vector<32x32xf32> -> vector<32x32xf32>
    %cst_242 = arith.constant dense<0.000000e+00> : vector<32x32xf32>
    %478 = tpu.matmul %472, %420, %cst_242 {dimension_numbers = #tpu.dot_dimension_numbers<[1], [0], [0], [1], [0, 0, 1, 1], [], []>} : vector<32x32xf32>, vector<32x32xf32>, vector<32x32xf32> -> vector<32x32xf32>
    %479 = tpu.concatenate %477, %472, %478 in 0 : vector<32x32xf32>, vector<32x32xf32>, vector<32x32xf32> -> vector<96x32xf32>
    %cst_243 = arith.constant dense<0.000000e+00> : vector<32x32xf32>
    %480 = tpu.matmul %474, %479, %cst_243 {dimension_numbers = #tpu.dot_dimension_numbers<[1], [0], [0], [1], [0, 0, 1, 1], [], []>} : vector<32x96xf32>, vector<96x32xf32>, vector<32x32xf32> -> vector<32x32xf32>
    %481 = vector.broadcast %476 : vector<32x1xf32> to vector<32x32xf32>
    %482 = arith.addf %480, %481 : vector<32x32xf32>
    %c3_244 = arith.constant 3 : index
    %c0_245 = arith.constant 0 : index
    %c0_246 = arith.constant 0 : index
    %483 = vector.load %arg9[%c3_244, %c0_245, %c0_246] : memref<5x32x1xf32, #tpu.memory_space<vmem>>, vector<1x32x1xf32>
    %484 = vector.shape_cast %483 : vector<1x32x1xf32> to vector<32x1xf32>
    %c3_247 = arith.constant 3 : index
    %c0_248 = arith.constant 0 : index
    %c0_249 = arith.constant 0 : index
    %485 = vector.load %arg10[%c3_247, %c0_248, %c0_249] : memref<5x32x1xf32, #tpu.memory_space<vmem>>, vector<1x32x1xf32>
    %486 = vector.shape_cast %485 : vector<1x32x1xf32> to vector<32x1xf32>
    %cst_250 = arith.constant dense<0.000000e+00> : vector<32xf32>
    %487 = vector.multi_reduction <add>, %482, %cst_250 [1] : vector<32x32xf32> to vector<32xf32>
    %488 = vector.shape_cast %487 : vector<32xf32> to vector<32x1xf32>
    %cst_251 = arith.constant 3.125000e-02 : f32
    %489 = vector.broadcast %cst_251 : f32 to vector<32x1xf32>
    %490 = arith.mulf %488, %489 : vector<32x1xf32>
    %491 = vector.broadcast %490 : vector<32x1xf32> to vector<32x32xf32>
    %492 = arith.subf %482, %491 : vector<32x32xf32>
    %493 = arith.mulf %492, %492 : vector<32x32xf32>
    %cst_252 = arith.constant dense<0.000000e+00> : vector<32xf32>
    %494 = vector.multi_reduction <add>, %493, %cst_252 [1] : vector<32x32xf32> to vector<32xf32>
    %495 = vector.shape_cast %494 : vector<32xf32> to vector<32x1xf32>
    %cst_253 = arith.constant 3.125000e-02 : f32
    %496 = vector.broadcast %cst_253 : f32 to vector<32x1xf32>
    %497 = arith.mulf %495, %496 : vector<32x1xf32>
    %cst_254 = arith.constant 9.99999974E-6 : f32
    %498 = vector.broadcast %cst_254 : f32 to vector<32x1xf32>
    %499 = arith.addf %497, %498 : vector<32x1xf32>
    %500 = math.rsqrt %499 : vector<32x1xf32>
    %501 = arith.mulf %484, %500 : vector<32x1xf32>
    %502 = vector.broadcast %501 : vector<32x1xf32> to vector<32x32xf32>
    %503 = arith.mulf %492, %502 : vector<32x32xf32>
    %504 = vector.broadcast %486 : vector<32x1xf32> to vector<32x32xf32>
    %505 = arith.addf %503, %504 : vector<32x32xf32>
    %506 = arith.addf %505, %394 : vector<32x32xf32>
    %cst_255 = arith.constant 0.000000e+00 : f32
    %507 = vector.broadcast %cst_255 : f32 to vector<32x32xf32>
    %508 = arith.cmpf ogt, %506, %507 : vector<32x32xf32>
    %cst_256 = arith.constant 0.00999999977 : f32
    %509 = vector.broadcast %cst_256 : f32 to vector<32x32xf32>
    %510 = arith.mulf %509, %506 : vector<32x32xf32>
    %511 = arith.select %508, %506, %510 : vector<32x32xi1>, vector<32x32xf32>
    %c3_257 = arith.constant 3 : index
    %c0_258 = arith.constant 0 : index
    %c0_259 = arith.constant 0 : index
    %c0_260 = arith.constant 0 : index
    %512 = vector.load %arg11[%c3_257, %c0_258, %c0_259, %c0_260] : memref<5x2x32x32xf32, #tpu.memory_space<vmem>>, vector<1x1x32x32xf32>
    %513 = vector.shape_cast %512 : vector<1x1x32x32xf32> to vector<32x32xf32>
    %c3_261 = arith.constant 3 : index
    %c1_262 = arith.constant 1 : index
    %c0_263 = arith.constant 0 : index
    %c0_264 = arith.constant 0 : index
    %514 = vector.load %arg11[%c3_261, %c1_262, %c0_263, %c0_264] : memref<5x2x32x32xf32, #tpu.memory_space<vmem>>, vector<1x1x32x32xf32>
    %515 = vector.shape_cast %514 : vector<1x1x32x32xf32> to vector<32x32xf32>
    %c3_265 = arith.constant 3 : index
    %c0_266 = arith.constant 0 : index
    %c0_267 = arith.constant 0 : index
    %516 = vector.load %arg12[%c3_265, %c0_266, %c0_267] : memref<5x32x1xf32, #tpu.memory_space<vmem>>, vector<1x32x1xf32>
    %517 = vector.shape_cast %516 : vector<1x32x1xf32> to vector<32x1xf32>
    %cst_268 = arith.constant dense<0.000000e+00> : vector<32x32xf32>
    %518 = tpu.matmul %513, %511, %cst_268 {dimension_numbers = #tpu.dot_dimension_numbers<[1], [0], [0], [1], [0, 0, 1, 1], [], []>} : vector<32x32xf32>, vector<32x32xf32>, vector<32x32xf32> -> vector<32x32xf32>
    %cst_269 = arith.constant dense<0.000000e+00> : vector<32x32xf32>
    %519 = tpu.matmul %515, %511, %cst_269 {dimension_numbers = #tpu.dot_dimension_numbers<[1], [0], [0], [1], [0, 0, 1, 1], [], []>} : vector<32x32xf32>, vector<32x32xf32>, vector<32x32xf32> -> vector<32x32xf32>
    %cst_270 = arith.constant dense<0.000000e+00> : vector<32x64xf32>
    %520 = tpu.matmul %518, %427, %cst_270 {dimension_numbers = #tpu.dot_dimension_numbers<[1], [0], [0], [1], [0, 0, 1, 1], [], []>} : vector<32x32xf32>, vector<32x64xf32>, vector<32x64xf32> -> vector<32x64xf32>
    %cst_271 = arith.constant dense<0.000000e+00> : vector<32x64xf32>
    %521 = tpu.matmul %519, %434, %cst_271 {dimension_numbers = #tpu.dot_dimension_numbers<[1], [0], [0], [1], [0, 0, 1, 1], [], []>} : vector<32x32xf32>, vector<32x64xf32>, vector<32x64xf32> -> vector<32x64xf32>
    %522 = arith.addf %520, %521 : vector<32x64xf32>
    %523 = vector.broadcast %517 : vector<32x1xf32> to vector<32x64xf32>
    %524 = arith.addf %522, %523 : vector<32x64xf32>
    %525 = tpu.iota {dimensions = array<i32: 0>} : vector<64x64xi32>
    %526 = tpu.iota {dimensions = array<i32: 1>} : vector<64x64xi32>
    %c0_i32_272 = arith.constant 0 : i32
    %527 = vector.broadcast %c0_i32_272 : i32 to vector<64x64xi32>
    %528 = arith.cmpi eq, %526, %527 : vector<64x64xi32>
    %c31_i32_273 = arith.constant 31 : i32
    %529 = vector.broadcast %c31_i32_273 : i32 to vector<64x64xi32>
    %530 = arith.cmpi eq, %526, %529 : vector<64x64xi32>
    %c32_i32 = arith.constant 32 : i32
    %531 = vector.broadcast %c32_i32 : i32 to vector<64x64xi32>
    %532 = arith.cmpi eq, %526, %531 : vector<64x64xi32>
    %533 = arith.ori %528, %532 : vector<64x64xi1>
    %c63_i32 = arith.constant 63 : i32
    %534 = vector.broadcast %c63_i32 : i32 to vector<64x64xi32>
    %535 = arith.cmpi eq, %526, %534 : vector<64x64xi32>
    %536 = arith.ori %530, %535 : vector<64x64xi1>
    %c1_i32_274 = arith.constant 1 : i32
    %537 = vector.broadcast %c1_i32_274 : i32 to vector<64x64xi32>
    %538 = arith.subi %526, %537 : vector<64x64xi32>
    %539 = arith.cmpi eq, %525, %538 : vector<64x64xi32>
    %cst_275 = arith.constant dense<true> : vector<64x64xi1>
    %540 = arith.xori %533, %cst_275 : vector<64x64xi1>
    %541 = arith.andi %539, %540 : vector<64x64xi1>
    %542 = arith.extui %541 : vector<64x64xi1> to vector<64x64xi32>
    %543 = arith.sitofp %542 : vector<64x64xi32> to vector<64x64xf32>
    %c1_i32_276 = arith.constant 1 : i32
    %544 = vector.broadcast %c1_i32_276 : i32 to vector<64x64xi32>
    %545 = arith.addi %526, %544 : vector<64x64xi32>
    %546 = arith.cmpi eq, %525, %545 : vector<64x64xi32>
    %cst_277 = arith.constant dense<true> : vector<64x64xi1>
    %547 = arith.xori %536, %cst_277 : vector<64x64xi1>
    %548 = arith.andi %546, %547 : vector<64x64xi1>
    %549 = arith.extui %548 : vector<64x64xi1> to vector<64x64xi32>
    %550 = arith.sitofp %549 : vector<64x64xi32> to vector<64x64xf32>
    %551 = tpu.iota {dimensions = array<i32: 0>} : vector<64x128xi32>
    %552 = tpu.iota {dimensions = array<i32: 1>} : vector<64x128xi32>
    %c2_i32_278 = arith.constant 2 : i32
    %553 = vector.broadcast %c2_i32_278 : i32 to vector<64x128xi32>
    %554 = arith.muli %553, %551 : vector<64x128xi32>
    %555 = arith.cmpi eq, %552, %554 : vector<64x128xi32>
    %556 = arith.extui %555 : vector<64x128xi1> to vector<64x128xi32>
    %557 = arith.sitofp %556 : vector<64x128xi32> to vector<64x128xf32>
    %c2_i32_279 = arith.constant 2 : i32
    %558 = vector.broadcast %c2_i32_279 : i32 to vector<64x128xi32>
    %559 = arith.muli %558, %551 : vector<64x128xi32>
    %c1_i32_280 = arith.constant 1 : i32
    %560 = vector.broadcast %c1_i32_280 : i32 to vector<64x128xi32>
    %561 = arith.addi %559, %560 : vector<64x128xi32>
    %562 = arith.cmpi eq, %552, %561 : vector<64x128xi32>
    %563 = arith.extui %562 : vector<64x128xi1> to vector<64x128xi32>
    %564 = arith.sitofp %563 : vector<64x128xi32> to vector<64x128xf32>
    %c4 = arith.constant 4 : index
    %c0_281 = arith.constant 0 : index
    %c0_282 = arith.constant 0 : index
    %565 = vector.load %arg3[%c4, %c0_281, %c0_282] : memref<5x32x96xf32, #tpu.memory_space<vmem>>, vector<1x32x96xf32>
    %566 = vector.shape_cast %565 : vector<1x32x96xf32> to vector<32x96xf32>
    %c4_283 = arith.constant 4 : index
    %c0_284 = arith.constant 0 : index
    %c0_285 = arith.constant 0 : index
    %567 = vector.load %arg4[%c4_283, %c0_284, %c0_285] : memref<5x32x1xf32, #tpu.memory_space<vmem>>, vector<1x32x1xf32>
    %568 = vector.shape_cast %567 : vector<1x32x1xf32> to vector<32x1xf32>
    %cst_286 = arith.constant dense<0.000000e+00> : vector<32x64xf32>
    %569 = tpu.matmul %524, %543, %cst_286 {dimension_numbers = #tpu.dot_dimension_numbers<[1], [0], [0], [1], [0, 0, 1, 1], [], []>} : vector<32x64xf32>, vector<64x64xf32>, vector<32x64xf32> -> vector<32x64xf32>
    %cst_287 = arith.constant dense<0.000000e+00> : vector<32x64xf32>
    %570 = tpu.matmul %524, %550, %cst_287 {dimension_numbers = #tpu.dot_dimension_numbers<[1], [0], [0], [1], [0, 0, 1, 1], [], []>} : vector<32x64xf32>, vector<64x64xf32>, vector<32x64xf32> -> vector<32x64xf32>
    %571 = tpu.concatenate %569, %524, %570 in 0 : vector<32x64xf32>, vector<32x64xf32>, vector<32x64xf32> -> vector<96x64xf32>
    %cst_288 = arith.constant dense<0.000000e+00> : vector<32x64xf32>
    %572 = tpu.matmul %566, %571, %cst_288 {dimension_numbers = #tpu.dot_dimension_numbers<[1], [0], [0], [1], [0, 0, 1, 1], [], []>} : vector<32x96xf32>, vector<96x64xf32>, vector<32x64xf32> -> vector<32x64xf32>
    %573 = vector.broadcast %568 : vector<32x1xf32> to vector<32x64xf32>
    %574 = arith.addf %572, %573 : vector<32x64xf32>
    %c4_289 = arith.constant 4 : index
    %c0_290 = arith.constant 0 : index
    %c0_291 = arith.constant 0 : index
    %575 = vector.load %arg5[%c4_289, %c0_290, %c0_291] : memref<5x32x1xf32, #tpu.memory_space<vmem>>, vector<1x32x1xf32>
    %576 = vector.shape_cast %575 : vector<1x32x1xf32> to vector<32x1xf32>
    %c4_292 = arith.constant 4 : index
    %c0_293 = arith.constant 0 : index
    %c0_294 = arith.constant 0 : index
    %577 = vector.load %arg6[%c4_292, %c0_293, %c0_294] : memref<5x32x1xf32, #tpu.memory_space<vmem>>, vector<1x32x1xf32>
    %578 = vector.shape_cast %577 : vector<1x32x1xf32> to vector<32x1xf32>
    %cst_295 = arith.constant dense<0.000000e+00> : vector<32xf32>
    %579 = vector.multi_reduction <add>, %574, %cst_295 [1] : vector<32x64xf32> to vector<32xf32>
    %580 = vector.shape_cast %579 : vector<32xf32> to vector<32x1xf32>
    %cst_296 = arith.constant 1.562500e-02 : f32
    %581 = vector.broadcast %cst_296 : f32 to vector<32x1xf32>
    %582 = arith.mulf %580, %581 : vector<32x1xf32>
    %583 = vector.broadcast %582 : vector<32x1xf32> to vector<32x64xf32>
    %584 = arith.subf %574, %583 : vector<32x64xf32>
    %585 = arith.mulf %584, %584 : vector<32x64xf32>
    %cst_297 = arith.constant dense<0.000000e+00> : vector<32xf32>
    %586 = vector.multi_reduction <add>, %585, %cst_297 [1] : vector<32x64xf32> to vector<32xf32>
    %587 = vector.shape_cast %586 : vector<32xf32> to vector<32x1xf32>
    %cst_298 = arith.constant 1.562500e-02 : f32
    %588 = vector.broadcast %cst_298 : f32 to vector<32x1xf32>
    %589 = arith.mulf %587, %588 : vector<32x1xf32>
    %cst_299 = arith.constant 9.99999974E-6 : f32
    %590 = vector.broadcast %cst_299 : f32 to vector<32x1xf32>
    %591 = arith.addf %589, %590 : vector<32x1xf32>
    %592 = math.rsqrt %591 : vector<32x1xf32>
    %593 = arith.mulf %576, %592 : vector<32x1xf32>
    %594 = vector.broadcast %593 : vector<32x1xf32> to vector<32x64xf32>
    %595 = arith.mulf %584, %594 : vector<32x64xf32>
    %596 = vector.broadcast %578 : vector<32x1xf32> to vector<32x64xf32>
    %597 = arith.addf %595, %596 : vector<32x64xf32>
    %cst_300 = arith.constant 0.000000e+00 : f32
    %598 = vector.broadcast %cst_300 : f32 to vector<32x64xf32>
    %599 = arith.cmpf ogt, %597, %598 : vector<32x64xf32>
    %cst_301 = arith.constant 0.00999999977 : f32
    %600 = vector.broadcast %cst_301 : f32 to vector<32x64xf32>
    %601 = arith.mulf %600, %597 : vector<32x64xf32>
    %602 = arith.select %599, %597, %601 : vector<32x64xi1>, vector<32x64xf32>
    %c4_302 = arith.constant 4 : index
    %c0_303 = arith.constant 0 : index
    %c0_304 = arith.constant 0 : index
    %603 = vector.load %arg7[%c4_302, %c0_303, %c0_304] : memref<5x32x96xf32, #tpu.memory_space<vmem>>, vector<1x32x96xf32>
    %604 = vector.shape_cast %603 : vector<1x32x96xf32> to vector<32x96xf32>
    %c4_305 = arith.constant 4 : index
    %c0_306 = arith.constant 0 : index
    %c0_307 = arith.constant 0 : index
    %605 = vector.load %arg8[%c4_305, %c0_306, %c0_307] : memref<5x32x1xf32, #tpu.memory_space<vmem>>, vector<1x32x1xf32>
    %606 = vector.shape_cast %605 : vector<1x32x1xf32> to vector<32x1xf32>
    %cst_308 = arith.constant dense<0.000000e+00> : vector<32x64xf32>
    %607 = tpu.matmul %602, %543, %cst_308 {dimension_numbers = #tpu.dot_dimension_numbers<[1], [0], [0], [1], [0, 0, 1, 1], [], []>} : vector<32x64xf32>, vector<64x64xf32>, vector<32x64xf32> -> vector<32x64xf32>
    %cst_309 = arith.constant dense<0.000000e+00> : vector<32x64xf32>
    %608 = tpu.matmul %602, %550, %cst_309 {dimension_numbers = #tpu.dot_dimension_numbers<[1], [0], [0], [1], [0, 0, 1, 1], [], []>} : vector<32x64xf32>, vector<64x64xf32>, vector<32x64xf32> -> vector<32x64xf32>
    %609 = tpu.concatenate %607, %602, %608 in 0 : vector<32x64xf32>, vector<32x64xf32>, vector<32x64xf32> -> vector<96x64xf32>
    %cst_310 = arith.constant dense<0.000000e+00> : vector<32x64xf32>
    %610 = tpu.matmul %604, %609, %cst_310 {dimension_numbers = #tpu.dot_dimension_numbers<[1], [0], [0], [1], [0, 0, 1, 1], [], []>} : vector<32x96xf32>, vector<96x64xf32>, vector<32x64xf32> -> vector<32x64xf32>
    %611 = vector.broadcast %606 : vector<32x1xf32> to vector<32x64xf32>
    %612 = arith.addf %610, %611 : vector<32x64xf32>
    %c4_311 = arith.constant 4 : index
    %c0_312 = arith.constant 0 : index
    %c0_313 = arith.constant 0 : index
    %613 = vector.load %arg9[%c4_311, %c0_312, %c0_313] : memref<5x32x1xf32, #tpu.memory_space<vmem>>, vector<1x32x1xf32>
    %614 = vector.shape_cast %613 : vector<1x32x1xf32> to vector<32x1xf32>
    %c4_314 = arith.constant 4 : index
    %c0_315 = arith.constant 0 : index
    %c0_316 = arith.constant 0 : index
    %615 = vector.load %arg10[%c4_314, %c0_315, %c0_316] : memref<5x32x1xf32, #tpu.memory_space<vmem>>, vector<1x32x1xf32>
    %616 = vector.shape_cast %615 : vector<1x32x1xf32> to vector<32x1xf32>
    %cst_317 = arith.constant dense<0.000000e+00> : vector<32xf32>
    %617 = vector.multi_reduction <add>, %612, %cst_317 [1] : vector<32x64xf32> to vector<32xf32>
    %618 = vector.shape_cast %617 : vector<32xf32> to vector<32x1xf32>
    %cst_318 = arith.constant 1.562500e-02 : f32
    %619 = vector.broadcast %cst_318 : f32 to vector<32x1xf32>
    %620 = arith.mulf %618, %619 : vector<32x1xf32>
    %621 = vector.broadcast %620 : vector<32x1xf32> to vector<32x64xf32>
    %622 = arith.subf %612, %621 : vector<32x64xf32>
    %623 = arith.mulf %622, %622 : vector<32x64xf32>
    %cst_319 = arith.constant dense<0.000000e+00> : vector<32xf32>
    %624 = vector.multi_reduction <add>, %623, %cst_319 [1] : vector<32x64xf32> to vector<32xf32>
    %625 = vector.shape_cast %624 : vector<32xf32> to vector<32x1xf32>
    %cst_320 = arith.constant 1.562500e-02 : f32
    %626 = vector.broadcast %cst_320 : f32 to vector<32x1xf32>
    %627 = arith.mulf %625, %626 : vector<32x1xf32>
    %cst_321 = arith.constant 9.99999974E-6 : f32
    %628 = vector.broadcast %cst_321 : f32 to vector<32x1xf32>
    %629 = arith.addf %627, %628 : vector<32x1xf32>
    %630 = math.rsqrt %629 : vector<32x1xf32>
    %631 = arith.mulf %614, %630 : vector<32x1xf32>
    %632 = vector.broadcast %631 : vector<32x1xf32> to vector<32x64xf32>
    %633 = arith.mulf %622, %632 : vector<32x64xf32>
    %634 = vector.broadcast %616 : vector<32x1xf32> to vector<32x64xf32>
    %635 = arith.addf %633, %634 : vector<32x64xf32>
    %636 = arith.addf %635, %524 : vector<32x64xf32>
    %cst_322 = arith.constant 0.000000e+00 : f32
    %637 = vector.broadcast %cst_322 : f32 to vector<32x64xf32>
    %638 = arith.cmpf ogt, %636, %637 : vector<32x64xf32>
    %cst_323 = arith.constant 0.00999999977 : f32
    %639 = vector.broadcast %cst_323 : f32 to vector<32x64xf32>
    %640 = arith.mulf %639, %636 : vector<32x64xf32>
    %641 = arith.select %638, %636, %640 : vector<32x64xi1>, vector<32x64xf32>
    %c4_324 = arith.constant 4 : index
    %c0_325 = arith.constant 0 : index
    %c0_326 = arith.constant 0 : index
    %c0_327 = arith.constant 0 : index
    %642 = vector.load %arg11[%c4_324, %c0_325, %c0_326, %c0_327] : memref<5x2x32x32xf32, #tpu.memory_space<vmem>>, vector<1x1x32x32xf32>
    %643 = vector.shape_cast %642 : vector<1x1x32x32xf32> to vector<32x32xf32>
    %c4_328 = arith.constant 4 : index
    %c1_329 = arith.constant 1 : index
    %c0_330 = arith.constant 0 : index
    %c0_331 = arith.constant 0 : index
    %644 = vector.load %arg11[%c4_328, %c1_329, %c0_330, %c0_331] : memref<5x2x32x32xf32, #tpu.memory_space<vmem>>, vector<1x1x32x32xf32>
    %645 = vector.shape_cast %644 : vector<1x1x32x32xf32> to vector<32x32xf32>
    %c4_332 = arith.constant 4 : index
    %c0_333 = arith.constant 0 : index
    %c0_334 = arith.constant 0 : index
    %646 = vector.load %arg12[%c4_332, %c0_333, %c0_334] : memref<5x32x1xf32, #tpu.memory_space<vmem>>, vector<1x32x1xf32>
    %647 = vector.shape_cast %646 : vector<1x32x1xf32> to vector<32x1xf32>
    %cst_335 = arith.constant dense<0.000000e+00> : vector<32x64xf32>
    %648 = tpu.matmul %643, %641, %cst_335 {dimension_numbers = #tpu.dot_dimension_numbers<[1], [0], [0], [1], [0, 0, 1, 1], [], []>} : vector<32x32xf32>, vector<32x64xf32>, vector<32x64xf32> -> vector<32x64xf32>
    %cst_336 = arith.constant dense<0.000000e+00> : vector<32x64xf32>
    %649 = tpu.matmul %645, %641, %cst_336 {dimension_numbers = #tpu.dot_dimension_numbers<[1], [0], [0], [1], [0, 0, 1, 1], [], []>} : vector<32x32xf32>, vector<32x64xf32>, vector<32x64xf32> -> vector<32x64xf32>
    %cst_337 = arith.constant dense<0.000000e+00> : vector<32x128xf32>
    %650 = tpu.matmul %648, %557, %cst_337 {dimension_numbers = #tpu.dot_dimension_numbers<[1], [0], [0], [1], [0, 0, 1, 1], [], []>} : vector<32x64xf32>, vector<64x128xf32>, vector<32x128xf32> -> vector<32x128xf32>
    %cst_338 = arith.constant dense<0.000000e+00> : vector<32x128xf32>
    %651 = tpu.matmul %649, %564, %cst_338 {dimension_numbers = #tpu.dot_dimension_numbers<[1], [0], [0], [1], [0, 0, 1, 1], [], []>} : vector<32x64xf32>, vector<64x128xf32>, vector<32x128xf32> -> vector<32x128xf32>
    %652 = arith.addf %650, %651 : vector<32x128xf32>
    %653 = vector.broadcast %647 : vector<32x1xf32> to vector<32x128xf32>
    %654 = arith.addf %652, %653 : vector<32x128xf32>
    %655 = tpu.iota {dimensions = array<i32: 0>} : vector<128x128xi32>
    %656 = tpu.iota {dimensions = array<i32: 1>} : vector<128x128xi32>
    %c0_i32_339 = arith.constant 0 : i32
    %657 = vector.broadcast %c0_i32_339 : i32 to vector<128x128xi32>
    %658 = arith.cmpi eq, %656, %657 : vector<128x128xi32>
    %c63_i32_340 = arith.constant 63 : i32
    %659 = vector.broadcast %c63_i32_340 : i32 to vector<128x128xi32>
    %660 = arith.cmpi eq, %656, %659 : vector<128x128xi32>
    %c64_i32 = arith.constant 64 : i32
    %661 = vector.broadcast %c64_i32 : i32 to vector<128x128xi32>
    %662 = arith.cmpi eq, %656, %661 : vector<128x128xi32>
    %663 = arith.ori %658, %662 : vector<128x128xi1>
    %c127_i32 = arith.constant 127 : i32
    %664 = vector.broadcast %c127_i32 : i32 to vector<128x128xi32>
    %665 = arith.cmpi eq, %656, %664 : vector<128x128xi32>
    %666 = arith.ori %660, %665 : vector<128x128xi1>
    %c1_i32_341 = arith.constant 1 : i32
    %667 = vector.broadcast %c1_i32_341 : i32 to vector<128x128xi32>
    %668 = arith.subi %656, %667 : vector<128x128xi32>
    %669 = arith.cmpi eq, %655, %668 : vector<128x128xi32>
    %cst_342 = arith.constant dense<true> : vector<128x128xi1>
    %670 = arith.xori %663, %cst_342 : vector<128x128xi1>
    %671 = arith.andi %669, %670 : vector<128x128xi1>
    %672 = arith.extui %671 : vector<128x128xi1> to vector<128x128xi32>
    %673 = arith.sitofp %672 : vector<128x128xi32> to vector<128x128xf32>
    %c1_i32_343 = arith.constant 1 : i32
    %674 = vector.broadcast %c1_i32_343 : i32 to vector<128x128xi32>
    %675 = arith.addi %656, %674 : vector<128x128xi32>
    %676 = arith.cmpi eq, %655, %675 : vector<128x128xi32>
    %cst_344 = arith.constant dense<true> : vector<128x128xi1>
    %677 = arith.xori %666, %cst_344 : vector<128x128xi1>
    %678 = arith.andi %676, %677 : vector<128x128xi1>
    %679 = arith.extui %678 : vector<128x128xi1> to vector<128x128xi32>
    %680 = arith.sitofp %679 : vector<128x128xi32> to vector<128x128xf32>
    %c0_345 = arith.constant 0 : index
    %c0_346 = arith.constant 0 : index
    %681 = vector.load %arg13[%c0_345, %c0_346] : memref<4x96xf32, #tpu.memory_space<vmem>>, vector<4x96xf32>
    %c0_347 = arith.constant 0 : index
    %c0_348 = arith.constant 0 : index
    %682 = vector.load %arg14[%c0_347, %c0_348] : memref<4x1xf32, #tpu.memory_space<vmem>>, vector<4x1xf32>
    %cst_349 = arith.constant dense<0.000000e+00> : vector<32x128xf32>
    %683 = tpu.matmul %654, %673, %cst_349 {dimension_numbers = #tpu.dot_dimension_numbers<[1], [0], [0], [1], [0, 0, 1, 1], [], []>} : vector<32x128xf32>, vector<128x128xf32>, vector<32x128xf32> -> vector<32x128xf32>
    %cst_350 = arith.constant dense<0.000000e+00> : vector<32x128xf32>
    %684 = tpu.matmul %654, %680, %cst_350 {dimension_numbers = #tpu.dot_dimension_numbers<[1], [0], [0], [1], [0, 0, 1, 1], [], []>} : vector<32x128xf32>, vector<128x128xf32>, vector<32x128xf32> -> vector<32x128xf32>
    %685 = tpu.concatenate %683, %654, %684 in 0 : vector<32x128xf32>, vector<32x128xf32>, vector<32x128xf32> -> vector<96x128xf32>
    %cst_351 = arith.constant dense<0.000000e+00> : vector<4x128xf32>
    %686 = tpu.matmul %681, %685, %cst_351 {dimension_numbers = #tpu.dot_dimension_numbers<[1], [0], [0], [1], [0, 0, 1, 1], [], []>} : vector<4x96xf32>, vector<96x128xf32>, vector<4x128xf32> -> vector<4x128xf32>
    %687 = vector.broadcast %682 : vector<4x1xf32> to vector<4x128xf32>
    %688 = arith.addf %686, %687 : vector<4x128xf32>
    %c0_352 = arith.constant 0 : index
    %c0_353 = arith.constant 0 : index
    %689 = vector.load %arg15[%c0_352, %c0_353] : memref<4x128xf32, #tpu.memory_space<vmem>>, vector<4x128xf32>
    tpu.vector_store %arg15[%c0_352, %c0_353], %688 {strides = array<i32>} : memref<4x128xf32, #tpu.memory_space<vmem>>, vector<4x128xf32>,
    return
  }
}

</mosaic_0001>

<llo_original>
// kernel: tpu_custom_call.1
$region0: #{tpu_custom_call.1}
  #allocation0 [shape = 'u32[]', space=smem, size = 0x4, offset = 0x4, fixed_abs, tag = 'smem constant byte address 0x4 - core index']
  #allocation1 [shape = 'u32[72,128]{1,0:T(1,128)}', space=vmem, size = 0x9000, scoped, tag = 'internal scratch']
  %s0 = inlined_call_operand.vmem [shape: f32[32,4], index: 0, kind: input, shape index: {}]
  %s1 = inlined_call_operand.vmem [shape: f32[32,32], index: 1, kind: input, shape index: {}]
  %s2 = inlined_call_operand.vmem [shape: f32[32,4], index: 2, kind: input, shape index: {}]
  %s3 = inlined_call_operand.vmem [shape: f32[5,32,96], index: 3, kind: input, shape index: {}]
  %s4 = inlined_call_operand.vmem [shape: f32[5,32,1], index: 4, kind: input, shape index: {}]
  %s5 = inlined_call_operand.vmem [shape: f32[5,32,1], index: 5, kind: input, shape index: {}]
  %s6 = inlined_call_operand.vmem [shape: f32[5,32,1], index: 6, kind: input, shape index: {}]
  %s7 = inlined_call_operand.vmem [shape: f32[5,32,96], index: 7, kind: input, shape index: {}]
  %s8 = inlined_call_operand.vmem [shape: f32[5,32,1], index: 8, kind: input, shape index: {}]
  %s9 = inlined_call_operand.vmem [shape: f32[5,32,1], index: 9, kind: input, shape index: {}]
  %s10 = inlined_call_operand.vmem [shape: f32[5,32,1], index: 10, kind: input, shape index: {}]
  %s11 = inlined_call_operand.vmem [shape: f32[5,2,32,32], index: 11, kind: input, shape index: {}]
  %s12 = inlined_call_operand.vmem [shape: f32[5,32,1], index: 12, kind: input, shape index: {}]
  %s13 = inlined_call_operand.vmem [shape: f32[4,96], index: 13, kind: input, shape index: {}]
  %s14 = inlined_call_operand.vmem [shape: f32[4,1], index: 14, kind: input, shape index: {}]
  %s15 = inlined_call_operand.hbm [shape: f32[4,128], index: 15, kind: output, shape index: {}]
  %s16 = sld [smem:[#allocation0]]
  $region70: #{tpu_custom_call.1} parent=0
    _
  %s18 = ssub.s32 1, %s16
  %s19 = scalar_select 0, %s18, %s16
  $region1: #{tpu_custom_call.1} parent=0
    #allocation2 [shape = 'u8[2048]{0}', space=vmem, size = 0x800, scoped, tag = 'output window, operand 0, single buffered']
    #allocation3 [shape = 's32[1]{0}', space=sflag, size = 0x4, scoped, tag = 'scoped memory for tpu_custom_call.1']
    %20 = vsyncpa [#allocation3], 0
    // Predicated region
    $region2: #{tpu_custom_call.1} parent=1 // pred_check
      _
    $region3: #{tpu_custom_call.1} parent=1 // pred_check_branch
      %22 = sbr.rel (0) target = $region5
    $region4: #{tpu_custom_call.1} parent=1 // pred_region
      _
    $region5: #{tpu_custom_call.1} parent=1 // pred_fallthru
      _
    // Predicated region
    $region6: #{tpu_custom_call.1} parent=1 // pred_check
      _
    $region7: #{tpu_custom_call.1} parent=1 // pred_check_branch
      %24 = sbr.rel (0) target = $region9
    $region8: #{tpu_custom_call.1} parent=1 // pred_region
      _
    $region9: #{tpu_custom_call.1} parent=1 // pred_fallthru
      _
    // Predicated region
    $region10: #{tpu_custom_call.1} parent=1 // pred_check
      _
    $region11: #{tpu_custom_call.1} parent=1 // pred_check_branch
      %26 = sbr.rel (0) target = $region13
    $region12: #{tpu_custom_call.1} parent=1 // pred_region
      _
    $region13: #{tpu_custom_call.1} parent=1 // pred_fallthru
      _
    // Predicated region
    $region14: #{tpu_custom_call.1} parent=1 // pred_check
      _
    $region15: #{tpu_custom_call.1} parent=1 // pred_check_branch
      %28 = sbr.rel (0) target = $region17
    $region16: #{tpu_custom_call.1} parent=1 // pred_region
      _
    $region17: #{tpu_custom_call.1} parent=1 // pred_fallthru
      _
    // Predicated region
    $region18: #{tpu_custom_call.1} parent=1 // pred_check
      _
    $region19: #{tpu_custom_call.1} parent=1 // pred_check_branch
      %30 = sbr.rel (0) target = $region21
    $region20: #{tpu_custom_call.1} parent=1 // pred_region
      _
    $region21: #{tpu_custom_call.1} parent=1 // pred_fallthru
      _
    // Predicated region
    $region22: #{tpu_custom_call.1} parent=1 // pred_check
      _
    $region23: #{tpu_custom_call.1} parent=1 // pred_check_branch
      %32 = sbr.rel (0) target = $region25
    $region24: #{tpu_custom_call.1} parent=1 // pred_region
      _
    $region25: #{tpu_custom_call.1} parent=1 // pred_fallthru
      _
    // Predicated region
    $region26: #{tpu_custom_call.1} parent=1 // pred_check
      _
    $region27: #{tpu_custom_call.1} parent=1 // pred_check_branch
      %34 = sbr.rel (0) target = $region29
    $region28: #{tpu_custom_call.1} parent=1 // pred_region
      _
    $region29: #{tpu_custom_call.1} parent=1 // pred_fallthru
      _
    // Predicated region
    $region30: #{tpu_custom_call.1} parent=1 // pred_check
      _
    $region31: #{tpu_custom_call.1} parent=1 // pred_check_branch
      %36 = sbr.rel (0) target = $region33
    $region32: #{tpu_custom_call.1} parent=1 // pred_region
      _
    $region33: #{tpu_custom_call.1} parent=1 // pred_fallthru
      _
    // Predicated region
    $region34: #{tpu_custom_call.1} parent=1 // pred_check
      _
    $region35: #{tpu_custom_call.1} parent=1 // pred_check_branch
      %38 = sbr.rel (0) target = $region37
    $region36: #{tpu_custom_call.1} parent=1 // pred_region
      _
    $region37: #{tpu_custom_call.1} parent=1 // pred_fallthru
      _
    // Predicated region
    $region38: #{tpu_custom_call.1} parent=1 // pred_check
      _
    $region39: #{tpu_custom_call.1} parent=1 // pred_check_branch
      %40 = sbr.rel (0) target = $region41
    $region40: #{tpu_custom_call.1} parent=1 // pred_region
      _
    $region41: #{tpu_custom_call.1} parent=1 // pred_fallthru
      _
    // Predicated region
    $region42: #{tpu_custom_call.1} parent=1 // pred_check
      _
    $region43: #{tpu_custom_call.1} parent=1 // pred_check_branch
      %42 = sbr.rel (0) target = $region45
    $region44: #{tpu_custom_call.1} parent=1 // pred_region
      _
    $region45: #{tpu_custom_call.1} parent=1 // pred_fallthru
      _
    // Predicated region
    $region46: #{tpu_custom_call.1} parent=1 // pred_check
      _
    $region47: #{tpu_custom_call.1} parent=1 // pred_check_branch
      %44 = sbr.rel (0) target = $region49
    $region48: #{tpu_custom_call.1} parent=1 // pred_region
      _
    $region49: #{tpu_custom_call.1} parent=1 // pred_fallthru
      _
    // Predicated region
    $region50: #{tpu_custom_call.1} parent=1 // pred_check
      _
    $region51: #{tpu_custom_call.1} parent=1 // pred_check_branch
      %46 = sbr.rel (0) target = $region53
    $region52: #{tpu_custom_call.1} parent=1 // pred_region
      _
    $region53: #{tpu_custom_call.1} parent=1 // pred_fallthru
      _
    // Predicated region
    $region54: #{tpu_custom_call.1} parent=1 // pred_check
      _
    $region55: #{tpu_custom_call.1} parent=1 // pred_check_branch
      %48 = sbr.rel (0) target = $region57
    $region56: #{tpu_custom_call.1} parent=1 // pred_region
      _
    $region57: #{tpu_custom_call.1} parent=1 // pred_fallthru
      _
    // Predicated region
    $region58: #{tpu_custom_call.1} parent=1 // pred_check
      _
    $region59: #{tpu_custom_call.1} parent=1 // pred_check_branch
      %50 = sbr.rel (0) target = $region61
    $region60: #{tpu_custom_call.1} parent=1 // pred_region
      _
    $region61: #{tpu_custom_call.1} parent=1 // pred_fallthru
      _
    %v51 = vld [vmem:[%s1] sm:$0xff]
    %v52 = vld [vmem:[%s1 + $0x8] sm:$0xff]
    %v53 = vld [vmem:[%s1 + $0x10] sm:$0xff]
    %v54 = vld [vmem:[%s1 + $0x18] sm:$0xff]
    %v55 = vld [vmem:[%s0] sm:$0xff]
    %v56 = vld [vmem:[%s0 + $0x8] sm:$0xff]
    %v57 = vld [vmem:[%s0 + $0x10] sm:$0xff]
    %v58 = vld [vmem:[%s0 + $0x18] sm:$0xff]
    %v59 = vld [vmem:[%s2] sm:$0xff]
    %v60 = vld [vmem:[%s2 + $0x8] sm:$0xff]
    %v61 = vld [vmem:[%s2 + $0x10] sm:$0xff]
    %v62 = vld [vmem:[%s2 + $0x18] sm:$0xff]
    %vm63 = vcmask 261120
    %v65 = vsel %vm63, %v51, 0
    %v68 = vsel %vm63, %v52, 0
    %v71 = vsel %vm63, %v53, 0
    %v74 = vsel %vm63, %v54, 0
    %76 = vmatpush.msra.mxu0 0.0
    %77 = vmatpush.msra.mxu0 0.0
    %78 = vmatpush.msra.mxu0 0.0
    %79 = vmatpush.msra.mxu0 0.0
    %80 = vmatpush.msra.mxu0 0.0
    %81 = vmatpush.msra.mxu0 0.0
    %82 = vmatpush.msra.mxu0 0.0
    %83 = vmatpush.msra.mxu0 0.0
    %84 = vmatpush.msra.mxu0 0.0
    %85 = vmatpush.msra.mxu0 0.0
    %86 = vmatpush.msra.mxu0 0.0
    %87 = vmatpush.msra.mxu0 0.0
    %88 = vmatpush.msra.mxu0 %v58
    %89 = vmatpush.msra.mxu0 %v57
    %90 = vmatpush.msra.mxu0 %v56
    %91 = vmatpush.msra.mxu0 %v55
    %92 = vmatmul.f32.gmra.mxu0 %v65
    %v93 = vpop.f32.mrf.mxu0
    %v94 = vadd.f32 %v59, %v93
    %95 = vmatmul.f32.gmra.mxu0 %v68
    %v96 = vpop.f32.mrf.mxu0
    %v97 = vadd.f32 %v60, %v96
    %98 = vmatmul.f32.gmra.mxu0 %v71
    %v99 = vpop.f32.mrf.mxu0
    %v100 = vadd.f32 %v61, %v99
    %101 = vmatmul.f32.gmra.mxu0 %v74
    %v102 = vpop.f32.mrf.mxu0
    %v103 = vadd.f32 %v62, %v102
    %104 = vdwg.mxu0
    %v105 = vlaneseq
    %v106 = vshrl.u32 %v105, 7
    %v107 = vlaneseq
    %v108 = vand.u32 %v107, 127
    %vm109 = vcmp.eq.s32.totalorder %v108, 0
    %vm110 = vcmp.eq.s32.totalorder %v108, 1
    %vm111 = vcmp.eq.s32.totalorder %v108, 2
    %vm112 = vmor %vm109, %vm111
    %vm113 = vcmp.eq.s32.totalorder %v108, 3
    %vm114 = vmor %vm110, %vm113
    %v115 = vsub.s32 %v108, 1
    %vm116 = vcmp.eq.s32.totalorder %v106, %v115
    %vm117 = vmxor %vm112, 1
    %vm118 = vmand %vm116, %vm117
    %v119 = vsel %vm118, 1, 0
    %v120 = vcvt.s32.f32 %v119
    %v121 = vadd.s32 %v108, 1
    %vm122 = vcmp.eq.s32.totalorder %v106, %v121
    %vm123 = vmxor %vm114, 1
    %vm124 = vmand %vm122, %vm123
    %v125 = vsel %vm124, 1, 0
    %v126 = vcvt.s32.f32 %v125
    %v127 = vmul.u32 %v106, 2
    %vm128 = vcmp.eq.s32.totalorder %v108, %v127
    %v129 = vsel %vm128, 1, 0
    %v130 = vcvt.s32.f32 %v129
    %v131 = vadd.s32 %v127, 1
    %vm132 = vcmp.eq.s32.totalorder %v108, %v131
    %v133 = vsel %vm132, 1, 0
    %v134 = vcvt.s32.f32 %v133
    %v135 = vld [vmem:[%s3] sm:$0xff]
    %v136 = vld [vmem:[%s3 + $0x8] sm:$0xff]
    %v137 = vld [vmem:[%s3 + $0x10] sm:$0xff]
    %v138 = vld [vmem:[%s3 + $0x18] sm:$0xff]
    %v139 = vld [vmem:[%s4] sm:$0xff]
    %v140 = vld [vmem:[%s4 + $0x8] sm:$0xff]
    %v141 = vld [vmem:[%s4 + $0x10] sm:$0xff]
    %v142 = vld [vmem:[%s4 + $0x18] sm:$0xff]
    %vm143 = vcmask 31744
    %v145 = vsel %vm143, %v94, 0
    %v148 = vsel %vm143, %v97, 0
    %v151 = vsel %vm143, %v100, 0
    %v154 = vsel %vm143, %v103, 0
    %vm156 = vcmask 1043456
    %v158 = vsel %vm156, %v120, 0
    %160 = vmatpush.msra.mxu0 0.0
    %161 = vmatpush.msra.mxu0 0.0
    %162 = vmatpush.msra.mxu0 0.0
    %163 = vmatpush.msra.mxu0 0.0
    %164 = vmatpush.msra.mxu0 0.0
    %165 = vmatpush.msra.mxu0 0.0
    %166 = vmatpush.msra.mxu0 0.0
    %167 = vmatpush.msra.mxu0 0.0
    %168 = vmatpush.msra.mxu0 0.0
    %169 = vmatpush.msra.mxu0 0.0
    %170 = vmatpush.msra.mxu0 0.0
    %171 = vmatpush.msra.mxu0 0.0
    %172 = vmatpush.msra.mxu0 0.0
    %173 = vmatpush.msra.mxu0 0.0
    %174 = vmatpush.msra.mxu0 0.0
    %175 = vmatpush.msra.mxu0 %v158
    %176 = vmatmul.f32.gmra.mxu0 %v145
    %v177 = vpop.f32.mrf.mxu0
    %v178 = vadd.f32 0.0, %v177
    %179 = vmatmul.f32.gmra.mxu0 %v148
    %v180 = vpop.f32.mrf.mxu0
    %v181 = vadd.f32 0.0, %v180
    %182 = vmatmul.f32.gmra.mxu0 %v151
    %v183 = vpop.f32.mrf.mxu0
    %v184 = vadd.f32 0.0, %v183
    %185 = vmatmul.f32.gmra.mxu0 %v154
    %v186 = vpop.f32.mrf.mxu0
    %v187 = vadd.f32 0.0, %v186
    %188 = vdwg.mxu0
    %v190 = vsel %vm156, %v126, 0
    %192 = vmatpush.msra.mxu0 0.0
    %193 = vmatpush.msra.mxu0 0.0
    %194 = vmatpush.msra.mxu0 0.0
    %195 = vmatpush.msra.mxu0 0.0
    %196 = vmatpush.msra.mxu0 0.0
    %197 = vmatpush.msra.mxu0 0.0
    %198 = vmatpush.msra.mxu0 0.0
    %199 = vmatpush.msra.mxu0 0.0
    %200 = vmatpush.msra.mxu0 0.0
    %201 = vmatpush.msra.mxu0 0.0
    %202 = vmatpush.msra.mxu0 0.0
    %203 = vmatpush.msra.mxu0 0.0
    %204 = vmatpush.msra.mxu0 0.0
    %205 = vmatpush.msra.mxu0 0.0
    %206 = vmatpush.msra.mxu0 0.0
    %207 = vmatpush.msra.mxu0 %v190
    %208 = vmatmul.f32.gmra.mxu0 %v145
    %v209 = vpop.f32.mrf.mxu0
    %v210 = vadd.f32 0.0, %v209
    %211 = vmatmul.f32.gmra.mxu0 %v148
    %v212 = vpop.f32.mrf.mxu0
    %v213 = vadd.f32 0.0, %v212
    %214 = vmatmul.f32.gmra.mxu0 %v151
    %v215 = vpop.f32.mrf.mxu0
    %v216 = vadd.f32 0.0, %v215
    %217 = vmatmul.f32.gmra.mxu0 %v154
    %v218 = vpop.f32.mrf.mxu0
    %v219 = vadd.f32 0.0, %v218
    %220 = vdwg.mxu0
    %222 = vset.pattern.permute.xlu0 0
    %223 = vperm.xlu0 %222, %v139
    %v224 = vpop.permute.xlu0 %223
    %227 = vset.pattern.permute.xlu0 0
    %228 = vperm.xlu0 %227, %v140
    %v229 = vpop.permute.xlu0 %228
    %232 = vset.pattern.permute.xlu0 0
    %233 = vperm.xlu0 %232, %v141
    %v234 = vpop.permute.xlu0 %233
    %237 = vset.pattern.permute.xlu0 0
    %238 = vperm.xlu0 %237, %v142
    %v239 = vpop.permute.xlu0 %238
    %vm241 = vcmask 785408
    %v243 = vsel %vm241, %v135, 0
    %v246 = vsel %vm241, %v136, 0
    %v249 = vsel %vm241, %v137, 0
    %v252 = vsel %vm241, %v138, 0
    %254 = vmatpush.msra.mxu0 0.0
    %255 = vmatpush.msra.mxu0 0.0
    %256 = vmatpush.msra.mxu0 0.0
    %257 = vmatpush.msra.mxu0 0.0
    %258 = vmatpush.msra.mxu0 %v219
    %259 = vmatpush.msra.mxu0 %v216
    %260 = vmatpush.msra.mxu0 %v213
    %261 = vmatpush.msra.mxu0 %v210
    %262 = vmatpush.msra.mxu0 %v103
    %263 = vmatpush.msra.mxu0 %v100
    %264 = vmatpush.msra.mxu0 %v97
    %265 = vmatpush.msra.mxu0 %v94
    %266 = vmatpush.msra.mxu0 %v187
    %267 = vmatpush.msra.mxu0 %v184
    %268 = vmatpush.msra.mxu0 %v181
    %269 = vmatpush.msra.mxu0 %v178
    %270 = vmatmul.f32.gmra.mxu0 %v243
    %v271 = vpop.f32.mrf.mxu0
    %v272 = vadd.f32 %v224, %v271
    %273 = vmatmul.f32.gmra.mxu0 %v246
    %v274 = vpop.f32.mrf.mxu0
    %v275 = vadd.f32 %v229, %v274
    %276 = vmatmul.f32.gmra.mxu0 %v249
    %v277 = vpop.f32.mrf.mxu0
    %v278 = vadd.f32 %v234, %v277
    %279 = vmatmul.f32.gmra.mxu0 %v252
    %v280 = vpop.f32.mrf.mxu0
    %v281 = vadd.f32 %v239, %v280
    %282 = vdwg.mxu0
    %v283 = vld [vmem:[%s5] sm:$0xff]
    %v284 = vld [vmem:[%s5 + $0x8] sm:$0xff]
    %v285 = vld [vmem:[%s5 + $0x10] sm:$0xff]
    %v286 = vld [vmem:[%s5 + $0x18] sm:$0xff]
    %v287 = vld [vmem:[%s6] sm:$0xff]
    %v288 = vld [vmem:[%s6 + $0x8] sm:$0xff]
    %v289 = vld [vmem:[%s6 + $0x10] sm:$0xff]
    %v290 = vld [vmem:[%s6 + $0x18] sm:$0xff]
    %v291 = vsel %vm143, %v272, 0.0
    %292 = vadd.xlane.f32.xlu0 %v291
    %v293 = vpop.xlane.xlu0 %292
    %v294 = vsel %vm143, %v275, 0.0
    %295 = vadd.xlane.f32.xlu0 %v294
    %v296 = vpop.xlane.xlu0 %295
    %v297 = vsel %vm143, %v278, 0.0
    %298 = vadd.xlane.f32.xlu0 %v297
    %v299 = vpop.xlane.xlu0 %298
    %v300 = vsel %vm143, %v281, 0.0
    %301 = vadd.xlane.f32.xlu0 %v300
    %v302 = vpop.xlane.xlu0 %301
    %v303 = vmul.f32 %v293, 0.25
    %v304 = vmul.f32 %v296, 0.25
    %v305 = vmul.f32 %v299, 0.25
    %v306 = vmul.f32 %v302, 0.25
    %v307 = vsub.f32 %v272, %v303
    %v308 = vsub.f32 %v275, %v304
    %v309 = vsub.f32 %v278, %v305
    %v310 = vsub.f32 %v281, %v306
    %v311 = vmul.f32 %v307, %v307
    %v312 = vmul.f32 %v308, %v308
    %v313 = vmul.f32 %v309, %v309
    %v314 = vmul.f32 %v310, %v310
    %v315 = vsel %vm143, %v311, 0.0
    %316 = vadd.xlane.f32.xlu0 %v315
    %v317 = vpop.xlane.xlu0 %316
    %v318 = vsel %vm143, %v312, 0.0
    %319 = vadd.xlane.f32.xlu0 %v318
    %v320 = vpop.xlane.xlu0 %319
    %v321 = vsel %vm143, %v313, 0.0
    %322 = vadd.xlane.f32.xlu0 %v321
    %v323 = vpop.xlane.xlu0 %322
    %v324 = vsel %vm143, %v314, 0.0
    %325 = vadd.xlane.f32.xlu0 %v324
    %v326 = vpop.xlane.xlu0 %325
    %v327 = vmul.f32 %v317, 0.25
    %v328 = vmul.f32 %v320, 0.25
    %v329 = vmul.f32 %v323, 0.25
    %v330 = vmul.f32 %v326, 0.25
    %v331 = vadd.f32 %v327, 1e-05
    %v332 = vadd.f32 %v328, 1e-05
    %v333 = vadd.f32 %v329, 1e-05
    %v334 = vadd.f32 %v330, 1e-05
    %v335 = vrsqrt.pop %v331
    %v336 = vmul.f32 %v335, %v331
    %v337 = vmul.f32 %v336, %v335
    %v338 = vmul.f32 0.5, %v337
    %v339 = vsub.f32 1.5, %v338
    %v340 = vmul.f32 %v335, %v339
    %vm341 = vweird.f32 %v331
    %vm342 = vweird.f32 %v335
    %vm343 = vmor %vm341, %vm342
    %v344 = vsel %vm343, %v335, %v340
    %v345 = vrsqrt.pop %v332
    %v346 = vmul.f32 %v345, %v332
    %v347 = vmul.f32 %v346, %v345
    %v348 = vmul.f32 0.5, %v347
    %v349 = vsub.f32 1.5, %v348
    %v350 = vmul.f32 %v345, %v349
    %vm351 = vweird.f32 %v332
    %vm352 = vweird.f32 %v345
    %vm353 = vmor %vm351, %vm352
    %v354 = vsel %vm353, %v345, %v350
    %v355 = vrsqrt.pop %v333
    %v356 = vmul.f32 %v355, %v333
    %v357 = vmul.f32 %v356, %v355
    %v358 = vmul.f32 0.5, %v357
    %v359 = vsub.f32 1.5, %v358
    %v360 = vmul.f32 %v355, %v359
    %vm361 = vweird.f32 %v333
    %vm362 = vweird.f32 %v355
    %vm363 = vmor %vm361, %vm362
    %v364 = vsel %vm363, %v355, %v360
    %v365 = vrsqrt.pop %v334
    %v366 = vmul.f32 %v365, %v334
    %v367 = vmul.f32 %v366, %v365
    %v368 = vmul.f32 0.5, %v367
    %v369 = vsub.f32 1.5, %v368
    %v370 = vmul.f32 %v365, %v369
    %vm371 = vweird.f32 %v334
    %vm372 = vweird.f32 %v365
    %vm373 = vmor %vm371, %vm372
    %v374 = vsel %vm373, %v365, %v370
    %v375 = vmul.f32 %v283, %v344
    %v376 = vmul.f32 %v284, %v354
    %v377 = vmul.f32 %v285, %v364
    %v378 = vmul.f32 %v286, %v374
    %380 = vset.pattern.permute.xlu0 0
    %381 = vperm.xlu0 %380, %v375
    %v382 = vpop.permute.xlu0 %381
    %385 = vset.pattern.permute.xlu0 0
    %386 = vperm.xlu0 %385, %v376
    %v387 = vpop.permute.xlu0 %386
    %390 = vset.pattern.permute.xlu0 0
    %391 = vperm.xlu0 %390, %v377
    %v392 = vpop.permute.xlu0 %391
    %395 = vset.pattern.permute.xlu0 0
    %396 = vperm.xlu0 %395, %v378
    %v397 = vpop.permute.xlu0 %396
    %v399 = vmul.f32 %v307, %v382
    %v400 = vmul.f32 %v308, %v387
    %v401 = vmul.f32 %v309, %v392
    %v402 = vmul.f32 %v310, %v397
    %404 = vset.pattern.permute.xlu0 0
    %405 = vperm.xlu0 %404, %v287
    %v406 = vpop.permute.xlu0 %405
    %409 = vset.pattern.permute.xlu0 0
    %410 = vperm.xlu0 %409, %v288
    %v411 = vpop.permute.xlu0 %410
    %414 = vset.pattern.permute.xlu0 0
    %415 = vperm.xlu0 %414, %v289
    %v416 = vpop.permute.xlu0 %415
    %419 = vset.pattern.permute.xlu0 0
    %420 = vperm.xlu0 %419, %v290
    %v421 = vpop.permute.xlu0 %420
    %v423 = vadd.f32 %v399, %v406
    %v424 = vadd.f32 %v400, %v411
    %v425 = vadd.f32 %v401, %v416
    %v426 = vadd.f32 %v402, %v421
    %vm427 = vcmp.gt.f32.partialorder %v423, 0.0
    %vm428 = vcmp.gt.f32.partialorder %v424, 0.0
    %vm429 = vcmp.gt.f32.partialorder %v425, 0.0
    %vm430 = vcmp.gt.f32.partialorder %v426, 0.0
    %v431 = vmul.f32 %v423, 0.01
    %v432 = vmul.f32 %v424, 0.01
    %v433 = vmul.f32 %v425, 0.01
    %v434 = vmul.f32 %v426, 0.01
    %v435 = vsel %vm427, %v423, %v431
    %v436 = vsel %vm428, %v424, %v432
    %v437 = vsel %vm429, %v425, %v433
    %v438 = vsel %vm430, %v426, %v434
    %v439 = vld [vmem:[%s7] sm:$0xff]
    %v440 = vld [vmem:[%s7 + $0x8] sm:$0xff]
    %v441 = vld [vmem:[%s7 + $0x10] sm:$0xff]
    %v442 = vld [vmem:[%s7 + $0x18] sm:$0xff]
    %v443 = vld [vmem:[%s8] sm:$0xff]
    %v444 = vld [vmem:[%s8 + $0x8] sm:$0xff]
    %v445 = vld [vmem:[%s8 + $0x10] sm:$0xff]
    %v446 = vld [vmem:[%s8 + $0x18] sm:$0xff]
    %v448 = vsel %vm143, %v435, 0
    %v451 = vsel %vm143, %v436, 0
    %v454 = vsel %vm143, %v437, 0
    %v457 = vsel %vm143, %v438, 0
    %459 = vmatpush.msra.mxu0 0.0
    %460 = vmatpush.msra.mxu0 0.0
    %461 = vmatpush.msra.mxu0 0.0
    %462 = vmatpush.msra.mxu0 0.0
    %463 = vmatpush.msra.mxu0 0.0
    %464 = vmatpush.msra.mxu0 0.0
    %465 = vmatpush.msra.mxu0 0.0
    %466 = vmatpush.msra.mxu0 0.0
    %467 = vmatpush.msra.mxu0 0.0
    %468 = vmatpush.msra.mxu0 0.0
    %469 = vmatpush.msra.mxu0 0.0
    %470 = vmatpush.msra.mxu0 0.0
    %471 = vmatpush.msra.mxu0 0.0
    %472 = vmatpush.msra.mxu0 0.0
    %473 = vmatpush.msra.mxu0 0.0
    %474 = vmatpush.msra.mxu0 %v158
    %475 = vmatmul.f32.gmra.mxu0 %v448
    %v476 = vpop.f32.mrf.mxu0
    %v477 = vadd.f32 0.0, %v476
    %478 = vmatmul.f32.gmra.mxu0 %v451
    %v479 = vpop.f32.mrf.mxu0
    %v480 = vadd.f32 0.0, %v479
    %481 = vmatmul.f32.gmra.mxu0 %v454
    %v482 = vpop.f32.mrf.mxu0
    %v483 = vadd.f32 0.0, %v482
    %484 = vmatmul.f32.gmra.mxu0 %v457
    %v485 = vpop.f32.mrf.mxu0
    %v486 = vadd.f32 0.0, %v485
    %487 = vdwg.mxu0
    %488 = vmatpush.msra.mxu0 0.0
    %489 = vmatpush.msra.mxu0 0.0
    %490 = vmatpush.msra.mxu0 0.0
    %491 = vmatpush.msra.mxu0 0.0
    %492 = vmatpush.msra.mxu0 0.0
    %493 = vmatpush.msra.mxu0 0.0
    %494 = vmatpush.msra.mxu0 0.0
    %495 = vmatpush.msra.mxu0 0.0
    %496 = vmatpush.msra.mxu0 0.0
    %497 = vmatpush.msra.mxu0 0.0
    %498 = vmatpush.msra.mxu0 0.0
    %499 = vmatpush.msra.mxu0 0.0
    %500 = vmatpush.msra.mxu0 0.0
    %501 = vmatpush.msra.mxu0 0.0
    %502 = vmatpush.msra.mxu0 0.0
    %503 = vmatpush.msra.mxu0 %v190
    %504 = vmatmul.f32.gmra.mxu0 %v448
    %v505 = vpop.f32.mrf.mxu0
    %v506 = vadd.f32 0.0, %v505
    %507 = vmatmul.f32.gmra.mxu0 %v451
    %v508 = vpop.f32.mrf.mxu0
    %v509 = vadd.f32 0.0, %v508
    %510 = vmatmul.f32.gmra.mxu0 %v454
    %v511 = vpop.f32.mrf.mxu0
    %v512 = vadd.f32 0.0, %v511
    %513 = vmatmul.f32.gmra.mxu0 %v457
    %v514 = vpop.f32.mrf.mxu0
    %v515 = vadd.f32 0.0, %v514
    %516 = vdwg.mxu0
    %518 = vset.pattern.permute.xlu0 0
    %519 = vperm.xlu0 %518, %v443
    %v520 = vpop.permute.xlu0 %519
    %523 = vset.pattern.permute.xlu0 0
    %524 = vperm.xlu0 %523, %v444
    %v525 = vpop.permute.xlu0 %524
    %528 = vset.pattern.permute.xlu0 0
    %529 = vperm.xlu0 %528, %v445
    %v530 = vpop.permute.xlu0 %529
    %533 = vset.pattern.permute.xlu0 0
    %534 = vperm.xlu0 %533, %v446
    %v535 = vpop.permute.xlu0 %534
    %v538 = vsel %vm241, %v439, 0
    %v541 = vsel %vm241, %v440, 0
    %v544 = vsel %vm241, %v441, 0
    %v547 = vsel %vm241, %v442, 0
    %549 = vmatpush.msra.mxu0 0.0
    %550 = vmatpush.msra.mxu0 0.0
    %551 = vmatpush.msra.mxu0 0.0
    %552 = vmatpush.msra.mxu0 0.0
    %553 = vmatpush.msra.mxu0 %v515
    %554 = vmatpush.msra.mxu0 %v512
    %555 = vmatpush.msra.mxu0 %v509
    %556 = vmatpush.msra.mxu0 %v506
    %557 = vmatpush.msra.mxu0 %v438
    %558 = vmatpush.msra.mxu0 %v437
    %559 = vmatpush.msra.mxu0 %v436
    %560 = vmatpush.msra.mxu0 %v435
    %561 = vmatpush.msra.mxu0 %v486
    %562 = vmatpush.msra.mxu0 %v483
    %563 = vmatpush.msra.mxu0 %v480
    %564 = vmatpush.msra.mxu0 %v477
    %565 = vmatmul.f32.gmra.mxu0 %v538
    %v566 = vpop.f32.mrf.mxu0
    %v567 = vadd.f32 %v520, %v566
    %568 = vmatmul.f32.gmra.mxu0 %v541
    %v569 = vpop.f32.mrf.mxu0
    %v570 = vadd.f32 %v525, %v569
    %571 = vmatmul.f32.gmra.mxu0 %v544
    %v572 = vpop.f32.mrf.mxu0
    %v573 = vadd.f32 %v530, %v572
    %574 = vmatmul.f32.gmra.mxu0 %v547
    %v575 = vpop.f32.mrf.mxu0
    %v576 = vadd.f32 %v535, %v575
    %577 = vdwg.mxu0
    %v578 = vld [vmem:[%s9] sm:$0xff]
    %v579 = vld [vmem:[%s9 + $0x8] sm:$0xff]
    %v580 = vld [vmem:[%s9 + $0x10] sm:$0xff]
    %v581 = vld [vmem:[%s9 + $0x18] sm:$0xff]
    %v582 = vld [vmem:[%s10] sm:$0xff]
    %v583 = vld [vmem:[%s10 + $0x8] sm:$0xff]
    %v584 = vld [vmem:[%s10 + $0x10] sm:$0xff]
    %v585 = vld [vmem:[%s10 + $0x18] sm:$0xff]
    %v586 = vsel %vm143, %v567, 0.0
    %587 = vadd.xlane.f32.xlu0 %v586
    %v588 = vpop.xlane.xlu0 %587
    %v589 = vsel %vm143, %v570, 0.0
    %590 = vadd.xlane.f32.xlu0 %v589
    %v591 = vpop.xlane.xlu0 %590
    %v592 = vsel %vm143, %v573, 0.0
    %593 = vadd.xlane.f32.xlu0 %v592
    %v594 = vpop.xlane.xlu0 %593
    %v595 = vsel %vm143, %v576, 0.0
    %596 = vadd.xlane.f32.xlu0 %v595
    %v597 = vpop.xlane.xlu0 %596
    %v598 = vmul.f32 %v588, 0.25
    %v599 = vmul.f32 %v591, 0.25
    %v600 = vmul.f32 %v594, 0.25
    %v601 = vmul.f32 %v597, 0.25
    %v602 = vsub.f32 %v567, %v598
    %v603 = vsub.f32 %v570, %v599
    %v604 = vsub.f32 %v573, %v600
    %v605 = vsub.f32 %v576, %v601
    %v606 = vmul.f32 %v602, %v602
    %v607 = vmul.f32 %v603, %v603
    %v608 = vmul.f32 %v604, %v604
    %v609 = vmul.f32 %v605, %v605
    %v610 = vsel %vm143, %v606, 0.0
    %611 = vadd.xlane.f32.xlu0 %v610
    %v612 = vpop.xlane.xlu0 %611
    %v613 = vsel %vm143, %v607, 0.0
    %614 = vadd.xlane.f32.xlu0 %v613
    %v615 = vpop.xlane.xlu0 %614
    %v616 = vsel %vm143, %v608, 0.0
    %617 = vadd.xlane.f32.xlu0 %v616
    %v618 = vpop.xlane.xlu0 %617
    %v619 = vsel %vm143, %v609, 0.0
    %620 = vadd.xlane.f32.xlu0 %v619
    %v621 = vpop.xlane.xlu0 %620
    %v622 = vmul.f32 %v612, 0.25
    %v623 = vmul.f32 %v615, 0.25
    %v624 = vmul.f32 %v618, 0.25
    %v625 = vmul.f32 %v621, 0.25
    %v626 = vadd.f32 %v622, 1e-05
    %v627 = vadd.f32 %v623, 1e-05
    %v628 = vadd.f32 %v624, 1e-05
    %v629 = vadd.f32 %v625, 1e-05
    %v630 = vrsqrt.pop %v626
    %v631 = vmul.f32 %v630, %v626
    %v632 = vmul.f32 %v631, %v630
    %v633 = vmul.f32 0.5, %v632
    %v634 = vsub.f32 1.5, %v633
    %v635 = vmul.f32 %v630, %v634
    %vm636 = vweird.f32 %v626
    %vm637 = vweird.f32 %v630
    %vm638 = vmor %vm636, %vm637
    %v639 = vsel %vm638, %v630, %v635
    %v640 = vrsqrt.pop %v627
    %v641 = vmul.f32 %v640, %v627
    %v642 = vmul.f32 %v641, %v640
    %v643 = vmul.f32 0.5, %v642
    %v644 = vsub.f32 1.5, %v643
    %v645 = vmul.f32 %v640, %v644
    %vm646 = vweird.f32 %v627
    %vm647 = vweird.f32 %v640
    %vm648 = vmor %vm646, %vm647
    %v649 = vsel %vm648, %v640, %v645
    %v650 = vrsqrt.pop %v628
    %v651 = vmul.f32 %v650, %v628
    %v652 = vmul.f32 %v651, %v650
    %v653 = vmul.f32 0.5, %v652
    %v654 = vsub.f32 1.5, %v653
    %v655 = vmul.f32 %v650, %v654
    %vm656 = vweird.f32 %v628
    %vm657 = vweird.f32 %v650
    %vm658 = vmor %vm656, %vm657
    %v659 = vsel %vm658, %v650, %v655
    %v660 = vrsqrt.pop %v629
    %v661 = vmul.f32 %v660, %v629
    %v662 = vmul.f32 %v661, %v660
    %v663 = vmul.f32 0.5, %v662
    %v664 = vsub.f32 1.5, %v663
    %v665 = vmul.f32 %v660, %v664
    %vm666 = vweird.f32 %v629
    %vm667 = vweird.f32 %v660
    %vm668 = vmor %vm666, %vm667
    %v669 = vsel %vm668, %v660, %v665
    %v670 = vmul.f32 %v578, %v639
    %v671 = vmul.f32 %v579, %v649
    %v672 = vmul.f32 %v580, %v659
    %v673 = vmul.f32 %v581, %v669
    %675 = vset.pattern.permute.xlu0 0
    %676 = vperm.xlu0 %675, %v670
    %v677 = vpop.permute.xlu0 %676
    %680 = vset.pattern.permute.xlu0 0
    %681 = vperm.xlu0 %680, %v671
    %v682 = vpop.permute.xlu0 %681
    %685 = vset.pattern.permute.xlu0 0
    %686 = vperm.xlu0 %685, %v672
    %v687 = vpop.permute.xlu0 %686
    %690 = vset.pattern.permute.xlu0 0
    %691 = vperm.xlu0 %690, %v673
    %v692 = vpop.permute.xlu0 %691
    %v694 = vmul.f32 %v602, %v677
    %v695 = vmul.f32 %v603, %v682
    %v696 = vmul.f32 %v604, %v687
    %v697 = vmul.f32 %v605, %v692
    %699 = vset.pattern.permute.xlu0 0
    %700 = vperm.xlu0 %699, %v582
    %v701 = vpop.permute.xlu0 %700
    %704 = vset.pattern.permute.xlu0 0
    %705 = vperm.xlu0 %704, %v583
    %v706 = vpop.permute.xlu0 %705
    %709 = vset.pattern.permute.xlu0 0
    %710 = vperm.xlu0 %709, %v584
    %v711 = vpop.permute.xlu0 %710
    %714 = vset.pattern.permute.xlu0 0
    %715 = vperm.xlu0 %714, %v585
    %v716 = vpop.permute.xlu0 %715
    %v718 = vadd.f32 %v694, %v701
    %v719 = vadd.f32 %v695, %v706
    %v720 = vadd.f32 %v696, %v711
    %v721 = vadd.f32 %v697, %v716
    %v722 = vadd.f32 %v718, %v94
    %v723 = vadd.f32 %v719, %v97
    %v724 = vadd.f32 %v720, %v100
    %v725 = vadd.f32 %v721, %v103
    %vm726 = vcmp.gt.f32.partialorder %v722, 0.0
    %vm727 = vcmp.gt.f32.partialorder %v723, 0.0
    %vm728 = vcmp.gt.f32.partialorder %v724, 0.0
    %vm729 = vcmp.gt.f32.partialorder %v725, 0.0
    %v730 = vmul.f32 %v722, 0.01
    %v731 = vmul.f32 %v723, 0.01
    %v732 = vmul.f32 %v724, 0.01
    %v733 = vmul.f32 %v725, 0.01
    %v734 = vsel %vm726, %v722, %v730
    %v735 = vsel %vm727, %v723, %v731
    %v736 = vsel %vm728, %v724, %v732
    %v737 = vsel %vm729, %v725, %v733
    %v738 = vld [vmem:[%s11] sm:$0xff]
    %v739 = vld [vmem:[%s11 + $0x8] sm:$0xff]
    %v740 = vld [vmem:[%s11 + $0x10] sm:$0xff]
    %v741 = vld [vmem:[%s11 + $0x18] sm:$0xff]
    %s742 = scalar_lea.vmem %s11, 32
    %v743 = vld [vmem:[%s742] sm:$0xff]
    %v744 = vld [vmem:[%s742 + $0x8] sm:$0xff]
    %v745 = vld [vmem:[%s742 + $0x10] sm:$0xff]
    %v746 = vld [vmem:[%s742 + $0x18] sm:$0xff]
    %v747 = vld [vmem:[%s12] sm:$0xff]
    %v748 = vld [vmem:[%s12 + $0x8] sm:$0xff]
    %v749 = vld [vmem:[%s12 + $0x10] sm:$0xff]
    %v750 = vld [vmem:[%s12 + $0x18] sm:$0xff]
    %v752 = vsel %vm63, %v738, 0
    %v755 = vsel %vm63, %v739, 0
    %v758 = vsel %vm63, %v740, 0
    %v761 = vsel %vm63, %v741, 0
    %763 = vmatpush.msra.mxu0 0.0
    %764 = vmatpush.msra.mxu0 0.0
    %765 = vmatpush.msra.mxu0 0.0
    %766 = vmatpush.msra.mxu0 0.0
    %767 = vmatpush.msra.mxu0 0.0
    %768 = vmatpush.msra.mxu0 0.0
    %769 = vmatpush.msra.mxu0 0.0
    %770 = vmatpush.msra.mxu0 0.0
    %771 = vmatpush.msra.mxu0 0.0
    %772 = vmatpush.msra.mxu0 0.0
    %773 = vmatpush.msra.mxu0 0.0
    %774 = vmatpush.msra.mxu0 0.0
    %775 = vmatpush.msra.mxu0 %v737
    %776 = vmatpush.msra.mxu0 %v736
    %777 = vmatpush.msra.mxu0 %v735
    %778 = vmatpush.msra.mxu0 %v734
    %779 = vmatmul.f32.gmra.mxu0 %v752
    %v780 = vpop.f32.mrf.mxu0
    %v781 = vadd.f32 0.0, %v780
    %782 = vmatmul.f32.gmra.mxu0 %v755
    %v783 = vpop.f32.mrf.mxu0
    %v784 = vadd.f32 0.0, %v783
    %785 = vmatmul.f32.gmra.mxu0 %v758
    %v786 = vpop.f32.mrf.mxu0
    %v787 = vadd.f32 0.0, %v786
    %788 = vmatmul.f32.gmra.mxu0 %v761
    %v789 = vpop.f32.mrf.mxu0
    %v790 = vadd.f32 0.0, %v789
    %791 = vdwg.mxu0
    %v793 = vsel %vm63, %v743, 0
    %v796 = vsel %vm63, %v744, 0
    %v799 = vsel %vm63, %v745, 0
    %v802 = vsel %vm63, %v746, 0
    %804 = vmatpush.msra.mxu0 0.0
    %805 = vmatpush.msra.mxu0 0.0
    %806 = vmatpush.msra.mxu0 0.0
    %807 = vmatpush.msra.mxu0 0.0
    %808 = vmatpush.msra.mxu0 0.0
    %809 = vmatpush.msra.mxu0 0.0
    %810 = vmatpush.msra.mxu0 0.0
    %811 = vmatpush.msra.mxu0 0.0
    %812 = vmatpush.msra.mxu0 0.0
    %813 = vmatpush.msra.mxu0 0.0
    %814 = vmatpush.msra.mxu0 0.0
    %815 = vmatpush.msra.mxu0 0.0
    %816 = vmatpush.msra.mxu0 %v737
    %817 = vmatpush.msra.mxu0 %v736
    %818 = vmatpush.msra.mxu0 %v735
    %819 = vmatpush.msra.mxu0 %v734
    %820 = vmatmul.f32.gmra.mxu0 %v793
    %v821 = vpop.f32.mrf.mxu0
    %v822 = vadd.f32 0.0, %v821
    %823 = vmatmul.f32.gmra.mxu0 %v796
    %v824 = vpop.f32.mrf.mxu0
    %v825 = vadd.f32 0.0, %v824
    %826 = vmatmul.f32.gmra.mxu0 %v799
    %v827 = vpop.f32.mrf.mxu0
    %v828 = vadd.f32 0.0, %v827
    %829 = vmatmul.f32.gmra.mxu0 %v802
    %v830 = vpop.f32.mrf.mxu0
    %v831 = vadd.f32 0.0, %v830
    %832 = vdwg.mxu0
    %v834 = vsel %vm143, %v822, 0
    %v837 = vsel %vm143, %v825, 0
    %v840 = vsel %vm143, %v828, 0
    %v843 = vsel %vm143, %v831, 0
    %v846 = vsel %vm156, %v134, 0
    %848 = vmatpush.msra.mxu0 0.0
    %849 = vmatpush.msra.mxu0 0.0
    %850 = vmatpush.msra.mxu0 0.0
    %851 = vmatpush.msra.mxu0 0.0
    %852 = vmatpush.msra.mxu0 0.0
    %853 = vmatpush.msra.mxu0 0.0
    %854 = vmatpush.msra.mxu0 0.0
    %855 = vmatpush.msra.mxu0 0.0
    %856 = vmatpush.msra.mxu0 0.0
    %857 = vmatpush.msra.mxu0 0.0
    %858 = vmatpush.msra.mxu0 0.0
    %859 = vmatpush.msra.mxu0 0.0
    %860 = vmatpush.msra.mxu0 0.0
    %861 = vmatpush.msra.mxu0 0.0
    %862 = vmatpush.msra.mxu0 0.0
    %863 = vmatpush.msra.mxu0 %v846
    %864 = vmatmul.f32.gmra.mxu0 %v834
    %v865 = vpop.f32.mrf.mxu0
    %v866 = vadd.f32 0.0, %v865
    %867 = vmatmul.f32.gmra.mxu0 %v837
    %v868 = vpop.f32.mrf.mxu0
    %v869 = vadd.f32 0.0, %v868
    %870 = vmatmul.f32.gmra.mxu0 %v840
    %v871 = vpop.f32.mrf.mxu0
    %v872 = vadd.f32 0.0, %v871
    %873 = vmatmul.f32.gmra.mxu0 %v843
    %v874 = vpop.f32.mrf.mxu0
    %v875 = vadd.f32 0.0, %v874
    %876 = vdwg.mxu0
    %v878 = vsel %vm143, %v781, 0
    %v881 = vsel %vm143, %v784, 0
    %v884 = vsel %vm143, %v787, 0
    %v887 = vsel %vm143, %v790, 0
    %v890 = vsel %vm156, %v130, 0
    %892 = vmatpush.msra.mxu0 0.0
    %893 = vmatpush.msra.mxu0 0.0
    %894 = vmatpush.msra.mxu0 0.0
    %895 = vmatpush.msra.mxu0 0.0
    %896 = vmatpush.msra.mxu0 0.0
    %897 = vmatpush.msra.mxu0 0.0
    %898 = vmatpush.msra.mxu0 0.0
    %899 = vmatpush.msra.mxu0 0.0
    %900 = vmatpush.msra.mxu0 0.0
    %901 = vmatpush.msra.mxu0 0.0
    %902 = vmatpush.msra.mxu0 0.0
    %903 = vmatpush.msra.mxu0 0.0
    %904 = vmatpush.msra.mxu0 0.0
    %905 = vmatpush.msra.mxu0 0.0
    %906 = vmatpush.msra.mxu0 0.0
    %907 = vmatpush.msra.mxu0 %v890
    %908 = vmatmul.f32.gmra.mxu0 %v878
    %v909 = vpop.f32.mrf.mxu0
    %v910 = vadd.f32 %v866, %v909
    %911 = vmatmul.f32.gmra.mxu0 %v881
    %v912 = vpop.f32.mrf.mxu0
    %v913 = vadd.f32 %v869, %v912
    %914 = vmatmul.f32.gmra.mxu0 %v884
    %v915 = vpop.f32.mrf.mxu0
    %v916 = vadd.f32 %v872, %v915
    %917 = vmatmul.f32.gmra.mxu0 %v887
    %v918 = vpop.f32.mrf.mxu0
    %v919 = vadd.f32 %v875, %v918
    %920 = vdwg.mxu0
    %922 = vset.pattern.permute.xlu0 0
    %923 = vperm.xlu0 %922, %v747
    %v924 = vpop.permute.xlu0 %923
    %927 = vset.pattern.permute.xlu0 0
    %928 = vperm.xlu0 %927, %v748
    %v929 = vpop.permute.xlu0 %928
    %932 = vset.pattern.permute.xlu0 0
    %933 = vperm.xlu0 %932, %v749
    %v934 = vpop.permute.xlu0 %933
    %937 = vset.pattern.permute.xlu0 0
    %938 = vperm.xlu0 %937, %v750
    %v939 = vpop.permute.xlu0 %938
    %v941 = vadd.f32 %v910, %v924
    %v942 = vadd.f32 %v913, %v929
    %v943 = vadd.f32 %v916, %v934
    %v944 = vadd.f32 %v919, %v939
    %vm945 = vcmp.eq.s32.totalorder %v108, 4
    %vm946 = vmor %vm109, %vm945
    %vm947 = vcmp.eq.s32.totalorder %v108, 7
    %vm948 = vmor %vm113, %vm947
    %vm949 = vmxor %vm946, 1
    %vm950 = vmand %vm116, %vm949
    %v951 = vsel %vm950, 1, 0
    %v952 = vcvt.s32.f32 %v951
    %vm953 = vmxor %vm948, 1
    %vm954 = vmand %vm122, %vm953
    %v955 = vsel %vm954, 1, 0
    %v956 = vcvt.s32.f32 %v955
    %s957 = scalar_lea.vmem %s3, 32
    %v958 = vld [vmem:[%s957] sm:$0xff]
    %v959 = vld [vmem:[%s957 + $0x8] sm:$0xff]
    %v960 = vld [vmem:[%s957 + $0x10] sm:$0xff]
    %v961 = vld [vmem:[%s957 + $0x18] sm:$0xff]
    %s962 = scalar_lea.vmem %s4, 32
    %v963 = vld [vmem:[%s962] sm:$0xff]
    %v964 = vld [vmem:[%s962 + $0x8] sm:$0xff]
    %v965 = vld [vmem:[%s962 + $0x10] sm:$0xff]
    %v966 = vld [vmem:[%s962 + $0x18] sm:$0xff]
    %vm967 = vcmask 64512
    %v969 = vsel %vm967, %v941, 0
    %v972 = vsel %vm967, %v942, 0
    %v975 = vsel %vm967, %v943, 0
    %v978 = vsel %vm967, %v944, 0
    %980 = vmatpush.msra.mxu0 0.0
    %981 = vmatpush.msra.mxu0 0.0
    %982 = vmatpush.msra.mxu0 0.0
    %983 = vmatpush.msra.mxu0 0.0
    %984 = vmatpush.msra.mxu0 0.0
    %985 = vmatpush.msra.mxu0 0.0
    %986 = vmatpush.msra.mxu0 0.0
    %987 = vmatpush.msra.mxu0 0.0
    %988 = vmatpush.msra.mxu0 0.0
    %989 = vmatpush.msra.mxu0 0.0
    %990 = vmatpush.msra.mxu0 0.0
    %991 = vmatpush.msra.mxu0 0.0
    %992 = vmatpush.msra.mxu0 0.0
    %993 = vmatpush.msra.mxu0 0.0
    %994 = vmatpush.msra.mxu0 0.0
    %995 = vmatpush.msra.mxu0 %v952
    %996 = vmatmul.f32.gmra.mxu0 %v969
    %v997 = vpop.f32.mrf.mxu0
    %v998 = vadd.f32 0.0, %v997
    %999 = vmatmul.f32.gmra.mxu0 %v972
    %v1000 = vpop.f32.mrf.mxu0
    %v1001 = vadd.f32 0.0, %v1000
    %1002 = vmatmul.f32.gmra.mxu0 %v975
    %v1003 = vpop.f32.mrf.mxu0
    %v1004 = vadd.f32 0.0, %v1003
    %1005 = vmatmul.f32.gmra.mxu0 %v978
    %v1006 = vpop.f32.mrf.mxu0
    %v1007 = vadd.f32 0.0, %v1006
    %1008 = vdwg.mxu0
    %1009 = vmatpush.msra.mxu0 0.0
    %1010 = vmatpush.msra.mxu0 0.0
    %1011 = vmatpush.msra.mxu0 0.0
    %1012 = vmatpush.msra.mxu0 0.0
    %1013 = vmatpush.msra.mxu0 0.0
    %1014 = vmatpush.msra.mxu0 0.0
    %1015 = vmatpush.msra.mxu0 0.0
    %1016 = vmatpush.msra.mxu0 0.0
    %1017 = vmatpush.msra.mxu0 0.0
    %1018 = vmatpush.msra.mxu0 0.0
    %1019 = vmatpush.msra.mxu0 0.0
    %1020 = vmatpush.msra.mxu0 0.0
    %1021 = vmatpush.msra.mxu0 0.0
    %1022 = vmatpush.msra.mxu0 0.0
    %1023 = vmatpush.msra.mxu0 0.0
    %1024 = vmatpush.msra.mxu0 %v956
    %1025 = vmatmul.f32.gmra.mxu0 %v969
    %v1026 = vpop.f32.mrf.mxu0
    %v1027 = vadd.f32 0.0, %v1026
    %1028 = vmatmul.f32.gmra.mxu0 %v972
    %v1029 = vpop.f32.mrf.mxu0
    %v1030 = vadd.f32 0.0, %v1029
    %1031 = vmatmul.f32.gmra.mxu0 %v975
    %v1032 = vpop.f32.mrf.mxu0
    %v1033 = vadd.f32 0.0, %v1032
    %1034 = vmatmul.f32.gmra.mxu0 %v978
    %v1035 = vpop.f32.mrf.mxu0
    %v1036 = vadd.f32 0.0, %v1035
    %1037 = vdwg.mxu0
    %1039 = vset.pattern.permute.xlu0 0
    %1040 = vperm.xlu0 %1039, %v963
    %v1041 = vpop.permute.xlu0 %1040
    %1044 = vset.pattern.permute.xlu0 0
    %1045 = vperm.xlu0 %1044, %v964
    %v1046 = vpop.permute.xlu0 %1045
    %1049 = vset.pattern.permute.xlu0 0
    %1050 = vperm.xlu0 %1049, %v965
    %v1051 = vpop.permute.xlu0 %1050
    %1054 = vset.pattern.permute.xlu0 0
    %1055 = vperm.xlu0 %1054, %v966
    %v1056 = vpop.permute.xlu0 %1055
    %v1059 = vsel %vm241, %v958, 0
    %v1062 = vsel %vm241, %v959, 0
    %v1065 = vsel %vm241, %v960, 0
    %v1068 = vsel %vm241, %v961, 0
    %1070 = vmatpush.msra.mxu0 0.0
    %1071 = vmatpush.msra.mxu0 0.0
    %1072 = vmatpush.msra.mxu0 0.0
    %1073 = vmatpush.msra.mxu0 0.0
    %1074 = vmatpush.msra.mxu0 %v1036
    %1075 = vmatpush.msra.mxu0 %v1033
    %1076 = vmatpush.msra.mxu0 %v1030
    %1077 = vmatpush.msra.mxu0 %v1027
    %1078 = vmatpush.msra.mxu0 %v944
    %1079 = vmatpush.msra.mxu0 %v943
    %1080 = vmatpush.msra.mxu0 %v942
    %1081 = vmatpush.msra.mxu0 %v941
    %1082 = vmatpush.msra.mxu0 %v1007
    %1083 = vmatpush.msra.mxu0 %v1004
    %1084 = vmatpush.msra.mxu0 %v1001
    %1085 = vmatpush.msra.mxu0 %v998
    %1086 = vmatmul.f32.gmra.mxu0 %v1059
    %v1087 = vpop.f32.mrf.mxu0
    %v1088 = vadd.f32 %v1041, %v1087
    %1089 = vmatmul.f32.gmra.mxu0 %v1062
    %v1090 = vpop.f32.mrf.mxu0
    %v1091 = vadd.f32 %v1046, %v1090
    %1092 = vmatmul.f32.gmra.mxu0 %v1065
    %v1093 = vpop.f32.mrf.mxu0
    %v1094 = vadd.f32 %v1051, %v1093
    %1095 = vmatmul.f32.gmra.mxu0 %v1068
    %v1096 = vpop.f32.mrf.mxu0
    %v1097 = vadd.f32 %v1056, %v1096
    %1098 = vdwg.mxu0
    %s1099 = scalar_lea.vmem %s5, 32
    %v1100 = vld [vmem:[%s1099] sm:$0xff]
    %v1101 = vld [vmem:[%s1099 + $0x8] sm:$0xff]
    %v1102 = vld [vmem:[%s1099 + $0x10] sm:$0xff]
    %v1103 = vld [vmem:[%s1099 + $0x18] sm:$0xff]
    %s1104 = scalar_lea.vmem %s6, 32
    %v1105 = vld [vmem:[%s1104] sm:$0xff]
    %v1106 = vld [vmem:[%s1104 + $0x8] sm:$0xff]
    %v1107 = vld [vmem:[%s1104 + $0x10] sm:$0xff]
    %v1108 = vld [vmem:[%s1104 + $0x18] sm:$0xff]
    %v1109 = vsel %vm967, %v1088, 0.0
    %1110 = vadd.xlane.f32.xlu0 %v1109
    %v1111 = vpop.xlane.xlu0 %1110
    %v1112 = vsel %vm967, %v1091, 0.0
    %1113 = vadd.xlane.f32.xlu0 %v1112
    %v1114 = vpop.xlane.xlu0 %1113
    %v1115 = vsel %vm967, %v1094, 0.0
    %1116 = vadd.xlane.f32.xlu0 %v1115
    %v1117 = vpop.xlane.xlu0 %1116
    %v1118 = vsel %vm967, %v1097, 0.0
    %1119 = vadd.xlane.f32.xlu0 %v1118
    %v1120 = vpop.xlane.xlu0 %1119
    %v1121 = vmul.f32 %v1111, 0.125
    %v1122 = vmul.f32 %v1114, 0.125
    %v1123 = vmul.f32 %v1117, 0.125
    %v1124 = vmul.f32 %v1120, 0.125
    %v1125 = vsub.f32 %v1088, %v1121
    %v1126 = vsub.f32 %v1091, %v1122
    %v1127 = vsub.f32 %v1094, %v1123
    %v1128 = vsub.f32 %v1097, %v1124
    %v1129 = vmul.f32 %v1125, %v1125
    %v1130 = vmul.f32 %v1126, %v1126
    %v1131 = vmul.f32 %v1127, %v1127
    %v1132 = vmul.f32 %v1128, %v1128
    %v1133 = vsel %vm967, %v1129, 0.0
    %1134 = vadd.xlane.f32.xlu0 %v1133
    %v1135 = vpop.xlane.xlu0 %1134
    %v1136 = vsel %vm967, %v1130, 0.0
    %1137 = vadd.xlane.f32.xlu0 %v1136
    %v1138 = vpop.xlane.xlu0 %1137
    %v1139 = vsel %vm967, %v1131, 0.0
    %1140 = vadd.xlane.f32.xlu0 %v1139
    %v1141 = vpop.xlane.xlu0 %1140
    %v1142 = vsel %vm967, %v1132, 0.0
    %1143 = vadd.xlane.f32.xlu0 %v1142
    %v1144 = vpop.xlane.xlu0 %1143
    %v1145 = vmul.f32 %v1135, 0.125
    %v1146 = vmul.f32 %v1138, 0.125
    %v1147 = vmul.f32 %v1141, 0.125
    %v1148 = vmul.f32 %v1144, 0.125
    %v1149 = vadd.f32 %v1145, 1e-05
    %v1150 = vadd.f32 %v1146, 1e-05
    %v1151 = vadd.f32 %v1147, 1e-05
    %v1152 = vadd.f32 %v1148, 1e-05
    %v1153 = vrsqrt.pop %v1149
    %v1154 = vmul.f32 %v1153, %v1149
    %v1155 = vmul.f32 %v1154, %v1153
    %v1156 = vmul.f32 0.5, %v1155
    %v1157 = vsub.f32 1.5, %v1156
    %v1158 = vmul.f32 %v1153, %v1157
    %vm1159 = vweird.f32 %v1149
    %vm1160 = vweird.f32 %v1153
    %vm1161 = vmor %vm1159, %vm1160
    %v1162 = vsel %vm1161, %v1153, %v1158
    %v1163 = vrsqrt.pop %v1150
    %v1164 = vmul.f32 %v1163, %v1150
    %v1165 = vmul.f32 %v1164, %v1163
    %v1166 = vmul.f32 0.5, %v1165
    %v1167 = vsub.f32 1.5, %v1166
    %v1168 = vmul.f32 %v1163, %v1167
    %vm1169 = vweird.f32 %v1150
    %vm1170 = vweird.f32 %v1163
    %vm1171 = vmor %vm1169, %vm1170
    %v1172 = vsel %vm1171, %v1163, %v1168
    %v1173 = vrsqrt.pop %v1151
    %v1174 = vmul.f32 %v1173, %v1151
    %v1175 = vmul.f32 %v1174, %v1173
    %v1176 = vmul.f32 0.5, %v1175
    %v1177 = vsub.f32 1.5, %v1176
    %v1178 = vmul.f32 %v1173, %v1177
    %vm1179 = vweird.f32 %v1151
    %vm1180 = vweird.f32 %v1173
    %vm1181 = vmor %vm1179, %vm1180
    %v1182 = vsel %vm1181, %v1173, %v1178
    %v1183 = vrsqrt.pop %v1152
    %v1184 = vmul.f32 %v1183, %v1152
    %v1185 = vmul.f32 %v1184, %v1183
    %v1186 = vmul.f32 0.5, %v1185
    %v1187 = vsub.f32 1.5, %v1186
    %v1188 = vmul.f32 %v1183, %v1187
    %vm1189 = vweird.f32 %v1152
    %vm1190 = vweird.f32 %v1183
    %vm1191 = vmor %vm1189, %vm1190
    %v1192 = vsel %vm1191, %v1183, %v1188
    %v1193 = vmul.f32 %v1100, %v1162
    %v1194 = vmul.f32 %v1101, %v1172
    %v1195 = vmul.f32 %v1102, %v1182
    %v1196 = vmul.f32 %v1103, %v1192
    %1198 = vset.pattern.permute.xlu0 0
    %1199 = vperm.xlu0 %1198, %v1193
    %v1200 = vpop.permute.xlu0 %1199
    %1203 = vset.pattern.permute.xlu0 0
    %1204 = vperm.xlu0 %1203, %v1194
    %v1205 = vpop.permute.xlu0 %1204
    %1208 = vset.pattern.permute.xlu0 0
    %1209 = vperm.xlu0 %1208, %v1195
    %v1210 = vpop.permute.xlu0 %1209
    %1213 = vset.pattern.permute.xlu0 0
    %1214 = vperm.xlu0 %1213, %v1196
    %v1215 = vpop.permute.xlu0 %1214
    %v1217 = vmul.f32 %v1125, %v1200
    %v1218 = vmul.f32 %v1126, %v1205
    %v1219 = vmul.f32 %v1127, %v1210
    %v1220 = vmul.f32 %v1128, %v1215
    %1222 = vset.pattern.permute.xlu0 0
    %1223 = vperm.xlu0 %1222, %v1105
    %v1224 = vpop.permute.xlu0 %1223
    %1227 = vset.pattern.permute.xlu0 0
    %1228 = vperm.xlu0 %1227, %v1106
    %v1229 = vpop.permute.xlu0 %1228
    %1232 = vset.pattern.permute.xlu0 0
    %1233 = vperm.xlu0 %1232, %v1107
    %v1234 = vpop.permute.xlu0 %1233
    %1237 = vset.pattern.permute.xlu0 0
    %1238 = vperm.xlu0 %1237, %v1108
    %v1239 = vpop.permute.xlu0 %1238
    %v1241 = vadd.f32 %v1217, %v1224
    %v1242 = vadd.f32 %v1218, %v1229
    %v1243 = vadd.f32 %v1219, %v1234
    %v1244 = vadd.f32 %v1220, %v1239
    %vm1245 = vcmp.gt.f32.partialorder %v1241, 0.0
    %vm1246 = vcmp.gt.f32.partialorder %v1242, 0.0
    %vm1247 = vcmp.gt.f32.partialorder %v1243, 0.0
    %vm1248 = vcmp.gt.f32.partialorder %v1244, 0.0
    %v1249 = vmul.f32 %v1241, 0.01
    %v1250 = vmul.f32 %v1242, 0.01
    %v1251 = vmul.f32 %v1243, 0.01
    %v1252 = vmul.f32 %v1244, 0.01
    %v1253 = vsel %vm1245, %v1241, %v1249
    %v1254 = vsel %vm1246, %v1242, %v1250
    %v1255 = vsel %vm1247, %v1243, %v1251
    %v1256 = vsel %vm1248, %v1244, %v1252
    %s1257 = scalar_lea.vmem %s7, 32
    %v1258 = vld [vmem:[%s1257] sm:$0xff]
    %v1259 = vld [vmem:[%s1257 + $0x8] sm:$0xff]
    %v1260 = vld [vmem:[%s1257 + $0x10] sm:$0xff]
    %v1261 = vld [vmem:[%s1257 + $0x18] sm:$0xff]
    %s1262 = scalar_lea.vmem %s8, 32
    %v1263 = vld [vmem:[%s1262] sm:$0xff]
    %v1264 = vld [vmem:[%s1262 + $0x8] sm:$0xff]
    %v1265 = vld [vmem:[%s1262 + $0x10] sm:$0xff]
    %v1266 = vld [vmem:[%s1262 + $0x18] sm:$0xff]
    %v1268 = vsel %vm967, %v1253, 0
    %v1271 = vsel %vm967, %v1254, 0
    %v1274 = vsel %vm967, %v1255, 0
    %v1277 = vsel %vm967, %v1256, 0
    %1279 = vmatpush.msra.mxu0 0.0
    %1280 = vmatpush.msra.mxu0 0.0
    %1281 = vmatpush.msra.mxu0 0.0
    %1282 = vmatpush.msra.mxu0 0.0
    %1283 = vmatpush.msra.mxu0 0.0
    %1284 = vmatpush.msra.mxu0 0.0
    %1285 = vmatpush.msra.mxu0 0.0
    %1286 = vmatpush.msra.mxu0 0.0
    %1287 = vmatpush.msra.mxu0 0.0
    %1288 = vmatpush.msra.mxu0 0.0
    %1289 = vmatpush.msra.mxu0 0.0
    %1290 = vmatpush.msra.mxu0 0.0
    %1291 = vmatpush.msra.mxu0 0.0
    %1292 = vmatpush.msra.mxu0 0.0
    %1293 = vmatpush.msra.mxu0 0.0
    %1294 = vmatpush.msra.mxu0 %v952
    %1295 = vmatmul.f32.gmra.mxu0 %v1268
    %v1296 = vpop.f32.mrf.mxu0
    %v1297 = vadd.f32 0.0, %v1296
    %1298 = vmatmul.f32.gmra.mxu0 %v1271
    %v1299 = vpop.f32.mrf.mxu0
    %v1300 = vadd.f32 0.0, %v1299
    %1301 = vmatmul.f32.gmra.mxu0 %v1274
    %v1302 = vpop.f32.mrf.mxu0
    %v1303 = vadd.f32 0.0, %v1302
    %1304 = vmatmul.f32.gmra.mxu0 %v1277
    %v1305 = vpop.f32.mrf.mxu0
    %v1306 = vadd.f32 0.0, %v1305
    %1307 = vdwg.mxu0
    %1308 = vmatpush.msra.mxu0 0.0
    %1309 = vmatpush.msra.mxu0 0.0
    %1310 = vmatpush.msra.mxu0 0.0
    %1311 = vmatpush.msra.mxu0 0.0
    %1312 = vmatpush.msra.mxu0 0.0
    %1313 = vmatpush.msra.mxu0 0.0
    %1314 = vmatpush.msra.mxu0 0.0
    %1315 = vmatpush.msra.mxu0 0.0
    %1316 = vmatpush.msra.mxu0 0.0
    %1317 = vmatpush.msra.mxu0 0.0
    %1318 = vmatpush.msra.mxu0 0.0
    %1319 = vmatpush.msra.mxu0 0.0
    %1320 = vmatpush.msra.mxu0 0.0
    %1321 = vmatpush.msra.mxu0 0.0
    %1322 = vmatpush.msra.mxu0 0.0
    %1323 = vmatpush.msra.mxu0 %v956
    %1324 = vmatmul.f32.gmra.mxu0 %v1268
    %v1325 = vpop.f32.mrf.mxu0
    %v1326 = vadd.f32 0.0, %v1325
    %1327 = vmatmul.f32.gmra.mxu0 %v1271
    %v1328 = vpop.f32.mrf.mxu0
    %v1329 = vadd.f32 0.0, %v1328
    %1330 = vmatmul.f32.gmra.mxu0 %v1274
    %v1331 = vpop.f32.mrf.mxu0
    %v1332 = vadd.f32 0.0, %v1331
    %1333 = vmatmul.f32.gmra.mxu0 %v1277
    %v1334 = vpop.f32.mrf.mxu0
    %v1335 = vadd.f32 0.0, %v1334
    %1336 = vdwg.mxu0
    %1338 = vset.pattern.permute.xlu0 0
    %1339 = vperm.xlu0 %1338, %v1263
    %v1340 = vpop.permute.xlu0 %1339
    %1343 = vset.pattern.permute.xlu0 0
    %1344 = vperm.xlu0 %1343, %v1264
    %v1345 = vpop.permute.xlu0 %1344
    %1348 = vset.pattern.permute.xlu0 0
    %1349 = vperm.xlu0 %1348, %v1265
    %v1350 = vpop.permute.xlu0 %1349
    %1353 = vset.pattern.permute.xlu0 0
    %1354 = vperm.xlu0 %1353, %v1266
    %v1355 = vpop.permute.xlu0 %1354
    %v1358 = vsel %vm241, %v1258, 0
    %v1361 = vsel %vm241, %v1259, 0
    %v1364 = vsel %vm241, %v1260, 0
    %v1367 = vsel %vm241, %v1261, 0
    %1369 = vmatpush.msra.mxu0 0.0
    %1370 = vmatpush.msra.mxu0 0.0
    %1371 = vmatpush.msra.mxu0 0.0
    %1372 = vmatpush.msra.mxu0 0.0
    %1373 = vmatpush.msra.mxu0 %v1335
    %1374 = vmatpush.msra.mxu0 %v1332
    %1375 = vmatpush.msra.mxu0 %v1329
    %1376 = vmatpush.msra.mxu0 %v1326
    %1377 = vmatpush.msra.mxu0 %v1256
    %1378 = vmatpush.msra.mxu0 %v1255
    %1379 = vmatpush.msra.mxu0 %v1254
    %1380 = vmatpush.msra.mxu0 %v1253
    %1381 = vmatpush.msra.mxu0 %v1306
    %1382 = vmatpush.msra.mxu0 %v1303
    %1383 = vmatpush.msra.mxu0 %v1300
    %1384 = vmatpush.msra.mxu0 %v1297
    %1385 = vmatmul.f32.gmra.mxu0 %v1358
    %v1386 = vpop.f32.mrf.mxu0
    %v1387 = vadd.f32 %v1340, %v1386
    %1388 = vmatmul.f32.gmra.mxu0 %v1361
    %v1389 = vpop.f32.mrf.mxu0
    %v1390 = vadd.f32 %v1345, %v1389
    %1391 = vmatmul.f32.gmra.mxu0 %v1364
    %v1392 = vpop.f32.mrf.mxu0
    %v1393 = vadd.f32 %v1350, %v1392
    %1394 = vmatmul.f32.gmra.mxu0 %v1367
    %v1395 = vpop.f32.mrf.mxu0
    %v1396 = vadd.f32 %v1355, %v1395
    %1397 = vdwg.mxu0
    %s1398 = scalar_lea.vmem %s9, 32
    %v1399 = vld [vmem:[%s1398] sm:$0xff]
    %v1400 = vld [vmem:[%s1398 + $0x8] sm:$0xff]
    %v1401 = vld [vmem:[%s1398 + $0x10] sm:$0xff]
    %v1402 = vld [vmem:[%s1398 + $0x18] sm:$0xff]
    %s1403 = scalar_lea.vmem %s10, 32
    %v1404 = vld [vmem:[%s1403] sm:$0xff]
    %v1405 = vld [vmem:[%s1403 + $0x8] sm:$0xff]
    %v1406 = vld [vmem:[%s1403 + $0x10] sm:$0xff]
    %v1407 = vld [vmem:[%s1403 + $0x18] sm:$0xff]
    %v1408 = vsel %vm967, %v1387, 0.0
    %1409 = vadd.xlane.f32.xlu0 %v1408
    %v1410 = vpop.xlane.xlu0 %1409
    %v1411 = vsel %vm967, %v1390, 0.0
    %1412 = vadd.xlane.f32.xlu0 %v1411
    %v1413 = vpop.xlane.xlu0 %1412
    %v1414 = vsel %vm967, %v1393, 0.0
    %1415 = vadd.xlane.f32.xlu0 %v1414
    %v1416 = vpop.xlane.xlu0 %1415
    %v1417 = vsel %vm967, %v1396, 0.0
    %1418 = vadd.xlane.f32.xlu0 %v1417
    %v1419 = vpop.xlane.xlu0 %1418
    %v1420 = vmul.f32 %v1410, 0.125
    %v1421 = vmul.f32 %v1413, 0.125
    %v1422 = vmul.f32 %v1416, 0.125
    %v1423 = vmul.f32 %v1419, 0.125
    %v1424 = vsub.f32 %v1387, %v1420
    %v1425 = vsub.f32 %v1390, %v1421
    %v1426 = vsub.f32 %v1393, %v1422
    %v1427 = vsub.f32 %v1396, %v1423
    %v1428 = vmul.f32 %v1424, %v1424
    %v1429 = vmul.f32 %v1425, %v1425
    %v1430 = vmul.f32 %v1426, %v1426
    %v1431 = vmul.f32 %v1427, %v1427
    %v1432 = vsel %vm967, %v1428, 0.0
    %1433 = vadd.xlane.f32.xlu0 %v1432
    %v1434 = vpop.xlane.xlu0 %1433
    %v1435 = vsel %vm967, %v1429, 0.0
    %1436 = vadd.xlane.f32.xlu0 %v1435
    %v1437 = vpop.xlane.xlu0 %1436
    %v1438 = vsel %vm967, %v1430, 0.0
    %1439 = vadd.xlane.f32.xlu0 %v1438
    %v1440 = vpop.xlane.xlu0 %1439
    %v1441 = vsel %vm967, %v1431, 0.0
    %1442 = vadd.xlane.f32.xlu0 %v1441
    %v1443 = vpop.xlane.xlu0 %1442
    %v1444 = vmul.f32 %v1434, 0.125
    %v1445 = vmul.f32 %v1437, 0.125
    %v1446 = vmul.f32 %v1440, 0.125
    %v1447 = vmul.f32 %v1443, 0.125
    %v1448 = vadd.f32 %v1444, 1e-05
    %v1449 = vadd.f32 %v1445, 1e-05
    %v1450 = vadd.f32 %v1446, 1e-05
    %v1451 = vadd.f32 %v1447, 1e-05
    %v1452 = vrsqrt.pop %v1448
    %v1453 = vmul.f32 %v1452, %v1448
    %v1454 = vmul.f32 %v1453, %v1452
    %v1455 = vmul.f32 0.5, %v1454
    %v1456 = vsub.f32 1.5, %v1455
    %v1457 = vmul.f32 %v1452, %v1456
    %vm1458 = vweird.f32 %v1448
    %vm1459 = vweird.f32 %v1452
    %vm1460 = vmor %vm1458, %vm1459
    %v1461 = vsel %vm1460, %v1452, %v1457
    %v1462 = vrsqrt.pop %v1449
    %v1463 = vmul.f32 %v1462, %v1449
    %v1464 = vmul.f32 %v1463, %v1462
    %v1465 = vmul.f32 0.5, %v1464
    %v1466 = vsub.f32 1.5, %v1465
    %v1467 = vmul.f32 %v1462, %v1466
    %vm1468 = vweird.f32 %v1449
    %vm1469 = vweird.f32 %v1462
    %vm1470 = vmor %vm1468, %vm1469
    %v1471 = vsel %vm1470, %v1462, %v1467
    %v1472 = vrsqrt.pop %v1450
    %v1473 = vmul.f32 %v1472, %v1450
    %v1474 = vmul.f32 %v1473, %v1472
    %v1475 = vmul.f32 0.5, %v1474
    %v1476 = vsub.f32 1.5, %v1475
    %v1477 = vmul.f32 %v1472, %v1476
    %vm1478 = vweird.f32 %v1450
    %vm1479 = vweird.f32 %v1472
    %vm1480 = vmor %vm1478, %vm1479
    %v1481 = vsel %vm1480, %v1472, %v1477
    %v1482 = vrsqrt.pop %v1451
    %v1483 = vmul.f32 %v1482, %v1451
    %v1484 = vmul.f32 %v1483, %v1482
    %v1485 = vmul.f32 0.5, %v1484
    %v1486 = vsub.f32 1.5, %v1485
    %v1487 = vmul.f32 %v1482, %v1486
    %vm1488 = vweird.f32 %v1451
    %vm1489 = vweird.f32 %v1482
    %vm1490 = vmor %vm1488, %vm1489
    %v1491 = vsel %vm1490, %v1482, %v1487
    %v1492 = vmul.f32 %v1399, %v1461
    %v1493 = vmul.f32 %v1400, %v1471
    %v1494 = vmul.f32 %v1401, %v1481
    %v1495 = vmul.f32 %v1402, %v1491
    %1497 = vset.pattern.permute.xlu0 0
    %1498 = vperm.xlu0 %1497, %v1492
    %v1499 = vpop.permute.xlu0 %1498
    %1502 = vset.pattern.permute.xlu0 0
    %1503 = vperm.xlu0 %1502, %v1493
    %v1504 = vpop.permute.xlu0 %1503
    %1507 = vset.pattern.permute.xlu0 0
    %1508 = vperm.xlu0 %1507, %v1494
    %v1509 = vpop.permute.xlu0 %1508
    %1512 = vset.pattern.permute.xlu0 0
    %1513 = vperm.xlu0 %1512, %v1495
    %v1514 = vpop.permute.xlu0 %1513
    %v1516 = vmul.f32 %v1424, %v1499
    %v1517 = vmul.f32 %v1425, %v1504
    %v1518 = vmul.f32 %v1426, %v1509
    %v1519 = vmul.f32 %v1427, %v1514
    %1521 = vset.pattern.permute.xlu0 0
    %1522 = vperm.xlu0 %1521, %v1404
    %v1523 = vpop.permute.xlu0 %1522
    %1526 = vset.pattern.permute.xlu0 0
    %1527 = vperm.xlu0 %1526, %v1405
    %v1528 = vpop.permute.xlu0 %1527
    %1531 = vset.pattern.permute.xlu0 0
    %1532 = vperm.xlu0 %1531, %v1406
    %v1533 = vpop.permute.xlu0 %1532
    %1536 = vset.pattern.permute.xlu0 0
    %1537 = vperm.xlu0 %1536, %v1407
    %v1538 = vpop.permute.xlu0 %1537
    %v1540 = vadd.f32 %v1516, %v1523
    %v1541 = vadd.f32 %v1517, %v1528
    %v1542 = vadd.f32 %v1518, %v1533
    %v1543 = vadd.f32 %v1519, %v1538
    %v1544 = vadd.f32 %v1540, %v941
    %v1545 = vadd.f32 %v1541, %v942
    %v1546 = vadd.f32 %v1542, %v943
    %v1547 = vadd.f32 %v1543, %v944
    %vm1548 = vcmp.gt.f32.partialorder %v1544, 0.0
    %vm1549 = vcmp.gt.f32.partialorder %v1545, 0.0
    %vm1550 = vcmp.gt.f32.partialorder %v1546, 0.0
    %vm1551 = vcmp.gt.f32.partialorder %v1547, 0.0
    %v1552 = vmul.f32 %v1544, 0.01
    %v1553 = vmul.f32 %v1545, 0.01
    %v1554 = vmul.f32 %v1546, 0.01
    %v1555 = vmul.f32 %v1547, 0.01
    %v1556 = vsel %vm1548, %v1544, %v1552
    %v1557 = vsel %vm1549, %v1545, %v1553
    %v1558 = vsel %vm1550, %v1546, %v1554
    %v1559 = vsel %vm1551, %v1547, %v1555
    %s1560 = scalar_lea.vmem %s11, 64
    %v1561 = vld [vmem:[%s1560] sm:$0xff]
    %v1562 = vld [vmem:[%s1560 + $0x8] sm:$0xff]
    %v1563 = vld [vmem:[%s1560 + $0x10] sm:$0xff]
    %v1564 = vld [vmem:[%s1560 + $0x18] sm:$0xff]
    %s1565 = scalar_lea.vmem %s11, 96
    %v1566 = vld [vmem:[%s1565] sm:$0xff]
    %v1567 = vld [vmem:[%s1565 + $0x8] sm:$0xff]
    %v1568 = vld [vmem:[%s1565 + $0x10] sm:$0xff]
    %v1569 = vld [vmem:[%s1565 + $0x18] sm:$0xff]
    %s1570 = scalar_lea.vmem %s12, 32
    %v1571 = vld [vmem:[%s1570] sm:$0xff]
    %v1572 = vld [vmem:[%s1570 + $0x8] sm:$0xff]
    %v1573 = vld [vmem:[%s1570 + $0x10] sm:$0xff]
    %v1574 = vld [vmem:[%s1570 + $0x18] sm:$0xff]
    %v1576 = vsel %vm63, %v1561, 0
    %v1579 = vsel %vm63, %v1562, 0
    %v1582 = vsel %vm63, %v1563, 0
    %v1585 = vsel %vm63, %v1564, 0
    %1587 = vmatpush.msra.mxu0 0.0
    %1588 = vmatpush.msra.mxu0 0.0
    %1589 = vmatpush.msra.mxu0 0.0
    %1590 = vmatpush.msra.mxu0 0.0
    %1591 = vmatpush.msra.mxu0 0.0
    %1592 = vmatpush.msra.mxu0 0.0
    %1593 = vmatpush.msra.mxu0 0.0
    %1594 = vmatpush.msra.mxu0 0.0
    %1595 = vmatpush.msra.mxu0 0.0
    %1596 = vmatpush.msra.mxu0 0.0
    %1597 = vmatpush.msra.mxu0 0.0
    %1598 = vmatpush.msra.mxu0 0.0
    %1599 = vmatpush.msra.mxu0 %v1559
    %1600 = vmatpush.msra.mxu0 %v1558
    %1601 = vmatpush.msra.mxu0 %v1557
    %1602 = vmatpush.msra.mxu0 %v1556
    %1603 = vmatmul.f32.gmra.mxu0 %v1576
    %v1604 = vpop.f32.mrf.mxu0
    %v1605 = vadd.f32 0.0, %v1604
    %1606 = vmatmul.f32.gmra.mxu0 %v1579
    %v1607 = vpop.f32.mrf.mxu0
    %v1608 = vadd.f32 0.0, %v1607
    %1609 = vmatmul.f32.gmra.mxu0 %v1582
    %v1610 = vpop.f32.mrf.mxu0
    %v1611 = vadd.f32 0.0, %v1610
    %1612 = vmatmul.f32.gmra.mxu0 %v1585
    %v1613 = vpop.f32.mrf.mxu0
    %v1614 = vadd.f32 0.0, %v1613
    %1615 = vdwg.mxu0
    %v1617 = vsel %vm63, %v1566, 0
    %v1620 = vsel %vm63, %v1567, 0
    %v1623 = vsel %vm63, %v1568, 0
    %v1626 = vsel %vm63, %v1569, 0
    %1628 = vmatpush.msra.mxu0 0.0
    %1629 = vmatpush.msra.mxu0 0.0
    %1630 = vmatpush.msra.mxu0 0.0
    %1631 = vmatpush.msra.mxu0 0.0
    %1632 = vmatpush.msra.mxu0 0.0
    %1633 = vmatpush.msra.mxu0 0.0
    %1634 = vmatpush.msra.mxu0 0.0
    %1635 = vmatpush.msra.mxu0 0.0
    %1636 = vmatpush.msra.mxu0 0.0
    %1637 = vmatpush.msra.mxu0 0.0
    %1638 = vmatpush.msra.mxu0 0.0
    %1639 = vmatpush.msra.mxu0 0.0
    %1640 = vmatpush.msra.mxu0 %v1559
    %1641 = vmatpush.msra.mxu0 %v1558
    %1642 = vmatpush.msra.mxu0 %v1557
    %1643 = vmatpush.msra.mxu0 %v1556
    %1644 = vmatmul.f32.gmra.mxu0 %v1617
    %v1645 = vpop.f32.mrf.mxu0
    %v1646 = vadd.f32 0.0, %v1645
    %1647 = vmatmul.f32.gmra.mxu0 %v1620
    %v1648 = vpop.f32.mrf.mxu0
    %v1649 = vadd.f32 0.0, %v1648
    %1650 = vmatmul.f32.gmra.mxu0 %v1623
    %v1651 = vpop.f32.mrf.mxu0
    %v1652 = vadd.f32 0.0, %v1651
    %1653 = vmatmul.f32.gmra.mxu0 %v1626
    %v1654 = vpop.f32.mrf.mxu0
    %v1655 = vadd.f32 0.0, %v1654
    %1656 = vdwg.mxu0
    %v1658 = vsel %vm967, %v1646, 0
    %v1661 = vsel %vm967, %v1649, 0
    %v1664 = vsel %vm967, %v1652, 0
    %v1667 = vsel %vm967, %v1655, 0
    %1669 = vmatpush.msra.mxu0 0.0
    %1670 = vmatpush.msra.mxu0 0.0
    %1671 = vmatpush.msra.mxu0 0.0
    %1672 = vmatpush.msra.mxu0 0.0
    %1673 = vmatpush.msra.mxu0 0.0
    %1674 = vmatpush.msra.mxu0 0.0
    %1675 = vmatpush.msra.mxu0 0.0
    %1676 = vmatpush.msra.mxu0 0.0
    %1677 = vmatpush.msra.mxu0 0.0
    %1678 = vmatpush.msra.mxu0 0.0
    %1679 = vmatpush.msra.mxu0 0.0
    %1680 = vmatpush.msra.mxu0 0.0
    %1681 = vmatpush.msra.mxu0 0.0
    %1682 = vmatpush.msra.mxu0 0.0
    %1683 = vmatpush.msra.mxu0 0.0
    %1684 = vmatpush.msra.mxu0 %v134
    %1685 = vmatmul.f32.gmra.mxu0 %v1658
    %v1686 = vpop.f32.mrf.mxu0
    %v1687 = vadd.f32 0.0, %v1686
    %1688 = vmatmul.f32.gmra.mxu0 %v1661
    %v1689 = vpop.f32.mrf.mxu0
    %v1690 = vadd.f32 0.0, %v1689
    %1691 = vmatmul.f32.gmra.mxu0 %v1664
    %v1692 = vpop.f32.mrf.mxu0
    %v1693 = vadd.f32 0.0, %v1692
    %1694 = vmatmul.f32.gmra.mxu0 %v1667
    %v1695 = vpop.f32.mrf.mxu0
    %v1696 = vadd.f32 0.0, %v1695
    %1697 = vdwg.mxu0
    %v1699 = vsel %vm967, %v1605, 0
    %v1702 = vsel %vm967, %v1608, 0
    %v1705 = vsel %vm967, %v1611, 0
    %v1708 = vsel %vm967, %v1614, 0
    %1710 = vmatpush.msra.mxu0 0.0
    %1711 = vmatpush.msra.mxu0 0.0
    %1712 = vmatpush.msra.mxu0 0.0
    %1713 = vmatpush.msra.mxu0 0.0
    %1714 = vmatpush.msra.mxu0 0.0
    %1715 = vmatpush.msra.mxu0 0.0
    %1716 = vmatpush.msra.mxu0 0.0
    %1717 = vmatpush.msra.mxu0 0.0
    %1718 = vmatpush.msra.mxu0 0.0
    %1719 = vmatpush.msra.mxu0 0.0
    %1720 = vmatpush.msra.mxu0 0.0
    %1721 = vmatpush.msra.mxu0 0.0
    %1722 = vmatpush.msra.mxu0 0.0
    %1723 = vmatpush.msra.mxu0 0.0
    %1724 = vmatpush.msra.mxu0 0.0
    %1725 = vmatpush.msra.mxu0 %v130
    %1726 = vmatmul.f32.gmra.mxu0 %v1699
    %v1727 = vpop.f32.mrf.mxu0
    %v1728 = vadd.f32 %v1687, %v1727
    %1729 = vmatmul.f32.gmra.mxu0 %v1702
    %v1730 = vpop.f32.mrf.mxu0
    %v1731 = vadd.f32 %v1690, %v1730
    %1732 = vmatmul.f32.gmra.mxu0 %v1705
    %v1733 = vpop.f32.mrf.mxu0
    %v1734 = vadd.f32 %v1693, %v1733
    %1735 = vmatmul.f32.gmra.mxu0 %v1708
    %v1736 = vpop.f32.mrf.mxu0
    %v1737 = vadd.f32 %v1696, %v1736
    %1738 = vdwg.mxu0
    %1740 = vset.pattern.permute.xlu0 0
    %1741 = vperm.xlu0 %1740, %v1571
    %v1742 = vpop.permute.xlu0 %1741
    %1745 = vset.pattern.permute.xlu0 0
    %1746 = vperm.xlu0 %1745, %v1572
    %v1747 = vpop.permute.xlu0 %1746
    %1750 = vset.pattern.permute.xlu0 0
    %1751 = vperm.xlu0 %1750, %v1573
    %v1752 = vpop.permute.xlu0 %1751
    %1755 = vset.pattern.permute.xlu0 0
    %1756 = vperm.xlu0 %1755, %v1574
    %v1757 = vpop.permute.xlu0 %1756
    %v1759 = vadd.f32 %v1728, %v1742
    %v1760 = vadd.f32 %v1731, %v1747
    %v1761 = vadd.f32 %v1734, %v1752
    %v1762 = vadd.f32 %v1737, %v1757
    %v1763 = vadd.s32 %v106, 8
    %vm1764 = vcmp.eq.s32.totalorder %v108, 8
    %vm1765 = vmor %vm109, %vm1764
    %vm1766 = vcmp.eq.s32.totalorder %v108, 15
    %vm1767 = vmor %vm947, %vm1766
    %vm1768 = vcmp.eq.s32.totalorder %v1763, %v115
    %vm1769 = vmxor %vm1765, 1
    %vm1770 = vmand %vm116, %vm1769
    %vm1771 = vmand %vm1768, %vm1769
    %v1772 = vsel %vm1770, 1, 0
    %v1773 = vsel %vm1771, 1, 0
    %v1774 = vcvt.s32.f32 %v1772
    %v1775 = vcvt.s32.f32 %v1773
    %vm1776 = vcmp.eq.s32.totalorder %v1763, %v121
    %vm1777 = vmxor %vm1767, 1
    %vm1778 = vmand %vm122, %vm1777
    %vm1779 = vmand %vm1776, %vm1777
    %v1780 = vsel %vm1778, 1, 0
    %v1781 = vsel %vm1779, 1, 0
    %v1782 = vcvt.s32.f32 %v1780
    %v1783 = vcvt.s32.f32 %v1781
    %v1784 = vmul.u32 %v1763, 2
    %vm1785 = vcmp.eq.s32.totalorder %v108, %v1784
    %v1786 = vsel %vm1785, 1, 0
    %v1787 = vcvt.s32.f32 %v1786
    %v1788 = vadd.s32 %v1784, 1
    %vm1789 = vcmp.eq.s32.totalorder %v108, %v1788
    %v1790 = vsel %vm1789, 1, 0
    %v1791 = vcvt.s32.f32 %v1790
    %s1792 = scalar_lea.vmem %s3, 64
    %v1793 = vld [vmem:[%s1792] sm:$0xff]
    %v1794 = vld [vmem:[%s1792 + $0x8] sm:$0xff]
    %v1795 = vld [vmem:[%s1792 + $0x10] sm:$0xff]
    %v1796 = vld [vmem:[%s1792 + $0x18] sm:$0xff]
    %s1797 = scalar_lea.vmem %s4, 64
    %v1798 = vld [vmem:[%s1797] sm:$0xff]
    %v1799 = vld [vmem:[%s1797 + $0x8] sm:$0xff]
    %v1800 = vld [vmem:[%s1797 + $0x10] sm:$0xff]
    %v1801 = vld [vmem:[%s1797 + $0x18] sm:$0xff]
    %vm1802 = vcmask 130048
    %v1804 = vsel %vm1802, %v1759, 0
    %v1807 = vsel %vm1802, %v1760, 0
    %v1810 = vsel %vm1802, %v1761, 0
    %v1813 = vsel %vm1802, %v1762, 0
    %1815 = vmatpush.msra.mxu0 0.0
    %1816 = vmatpush.msra.mxu0 0.0
    %1817 = vmatpush.msra.mxu0 0.0
    %1818 = vmatpush.msra.mxu0 0.0
    %1819 = vmatpush.msra.mxu0 0.0
    %1820 = vmatpush.msra.mxu0 0.0
    %1821 = vmatpush.msra.mxu0 0.0
    %1822 = vmatpush.msra.mxu0 0.0
    %1823 = vmatpush.msra.mxu0 0.0
    %1824 = vmatpush.msra.mxu0 0.0
    %1825 = vmatpush.msra.mxu0 0.0
    %1826 = vmatpush.msra.mxu0 0.0
    %1827 = vmatpush.msra.mxu0 0.0
    %1828 = vmatpush.msra.mxu0 0.0
    %1829 = vmatpush.msra.mxu0 %v1775
    %1830 = vmatpush.msra.mxu0 %v1774
    %1831 = vmatmul.f32.gmra.mxu0 %v1804
    %v1832 = vpop.f32.mrf.mxu0
    %v1833 = vadd.f32 0.0, %v1832
    %1834 = vmatmul.f32.gmra.mxu0 %v1807
    %v1835 = vpop.f32.mrf.mxu0
    %v1836 = vadd.f32 0.0, %v1835
    %1837 = vmatmul.f32.gmra.mxu0 %v1810
    %v1838 = vpop.f32.mrf.mxu0
    %v1839 = vadd.f32 0.0, %v1838
    %1840 = vmatmul.f32.gmra.mxu0 %v1813
    %v1841 = vpop.f32.mrf.mxu0
    %v1842 = vadd.f32 0.0, %v1841
    %1843 = vdwg.mxu0
    %1844 = vmatpush.msra.mxu0 0.0
    %1845 = vmatpush.msra.mxu0 0.0
    %1846 = vmatpush.msra.mxu0 0.0
    %1847 = vmatpush.msra.mxu0 0.0
    %1848 = vmatpush.msra.mxu0 0.0
    %1849 = vmatpush.msra.mxu0 0.0
    %1850 = vmatpush.msra.mxu0 0.0
    %1851 = vmatpush.msra.mxu0 0.0
    %1852 = vmatpush.msra.mxu0 0.0
    %1853 = vmatpush.msra.mxu0 0.0
    %1854 = vmatpush.msra.mxu0 0.0
    %1855 = vmatpush.msra.mxu0 0.0
    %1856 = vmatpush.msra.mxu0 0.0
    %1857 = vmatpush.msra.mxu0 0.0
    %1858 = vmatpush.msra.mxu0 %v1783
    %1859 = vmatpush.msra.mxu0 %v1782
    %1860 = vmatmul.f32.gmra.mxu0 %v1804
    %v1861 = vpop.f32.mrf.mxu0
    %v1862 = vadd.f32 0.0, %v1861
    %1863 = vmatmul.f32.gmra.mxu0 %v1807
    %v1864 = vpop.f32.mrf.mxu0
    %v1865 = vadd.f32 0.0, %v1864
    %1866 = vmatmul.f32.gmra.mxu0 %v1810
    %v1867 = vpop.f32.mrf.mxu0
    %v1868 = vadd.f32 0.0, %v1867
    %1869 = vmatmul.f32.gmra.mxu0 %v1813
    %v1870 = vpop.f32.mrf.mxu0
    %v1871 = vadd.f32 0.0, %v1870
    %1872 = vdwg.mxu0
    %1874 = vset.pattern.permute.xlu0 0
    %1875 = vperm.xlu0 %1874, %v1798
    %v1876 = vpop.permute.xlu0 %1875
    %1879 = vset.pattern.permute.xlu0 0
    %1880 = vperm.xlu0 %1879, %v1799
    %v1881 = vpop.permute.xlu0 %1880
    %1884 = vset.pattern.permute.xlu0 0
    %1885 = vperm.xlu0 %1884, %v1800
    %v1886 = vpop.permute.xlu0 %1885
    %1889 = vset.pattern.permute.xlu0 0
    %1890 = vperm.xlu0 %1889, %v1801
    %v1891 = vpop.permute.xlu0 %1890
    %v1894 = vsel %vm241, %v1793, 0
    %v1897 = vsel %vm241, %v1794, 0
    %v1900 = vsel %vm241, %v1795, 0
    %v1903 = vsel %vm241, %v1796, 0
    %1905 = vmatpush.msra.mxu0 0.0
    %1906 = vmatpush.msra.mxu0 0.0
    %1907 = vmatpush.msra.mxu0 0.0
    %1908 = vmatpush.msra.mxu0 0.0
    %1909 = vmatpush.msra.mxu0 %v1871
    %1910 = vmatpush.msra.mxu0 %v1868
    %1911 = vmatpush.msra.mxu0 %v1865
    %1912 = vmatpush.msra.mxu0 %v1862
    %1913 = vmatpush.msra.mxu0 %v1762
    %1914 = vmatpush.msra.mxu0 %v1761
    %1915 = vmatpush.msra.mxu0 %v1760
    %1916 = vmatpush.msra.mxu0 %v1759
    %1917 = vmatpush.msra.mxu0 %v1842
    %1918 = vmatpush.msra.mxu0 %v1839
    %1919 = vmatpush.msra.mxu0 %v1836
    %1920 = vmatpush.msra.mxu0 %v1833
    %1921 = vmatmul.f32.gmra.mxu0 %v1894
    %v1922 = vpop.f32.mrf.mxu0
    %v1923 = vadd.f32 %v1876, %v1922
    %1924 = vmatmul.f32.gmra.mxu0 %v1897
    %v1925 = vpop.f32.mrf.mxu0
    %v1926 = vadd.f32 %v1881, %v1925
    %1927 = vmatmul.f32.gmra.mxu0 %v1900
    %v1928 = vpop.f32.mrf.mxu0
    %v1929 = vadd.f32 %v1886, %v1928
    %1930 = vmatmul.f32.gmra.mxu0 %v1903
    %v1931 = vpop.f32.mrf.mxu0
    %v1932 = vadd.f32 %v1891, %v1931
    %1933 = vdwg.mxu0
    %s1934 = scalar_lea.vmem %s5, 64
    %v1935 = vld [vmem:[%s1934] sm:$0xff]
    %v1936 = vld [vmem:[%s1934 + $0x8] sm:$0xff]
    %v1937 = vld [vmem:[%s1934 + $0x10] sm:$0xff]
    %v1938 = vld [vmem:[%s1934 + $0x18] sm:$0xff]
    %s1939 = scalar_lea.vmem %s6, 64
    %v1940 = vld [vmem:[%s1939] sm:$0xff]
    %v1941 = vld [vmem:[%s1939 + $0x8] sm:$0xff]
    %v1942 = vld [vmem:[%s1939 + $0x10] sm:$0xff]
    %v1943 = vld [vmem:[%s1939 + $0x18] sm:$0xff]
    %v1944 = vsel %vm1802, %v1923, 0.0
    %1945 = vadd.xlane.f32.xlu0 %v1944
    %v1946 = vpop.xlane.xlu0 %1945
    %v1947 = vsel %vm1802, %v1926, 0.0
    %1948 = vadd.xlane.f32.xlu0 %v1947
    %v1949 = vpop.xlane.xlu0 %1948
    %v1950 = vsel %vm1802, %v1929, 0.0
    %1951 = vadd.xlane.f32.xlu0 %v1950
    %v1952 = vpop.xlane.xlu0 %1951
    %v1953 = vsel %vm1802, %v1932, 0.0
    %1954 = vadd.xlane.f32.xlu0 %v1953
    %v1955 = vpop.xlane.xlu0 %1954
    %v1956 = vmul.f32 %v1946, 0.0625
    %v1957 = vmul.f32 %v1949, 0.0625
    %v1958 = vmul.f32 %v1952, 0.0625
    %v1959 = vmul.f32 %v1955, 0.0625
    %v1960 = vsub.f32 %v1923, %v1956
    %v1961 = vsub.f32 %v1926, %v1957
    %v1962 = vsub.f32 %v1929, %v1958
    %v1963 = vsub.f32 %v1932, %v1959
    %v1964 = vmul.f32 %v1960, %v1960
    %v1965 = vmul.f32 %v1961, %v1961
    %v1966 = vmul.f32 %v1962, %v1962
    %v1967 = vmul.f32 %v1963, %v1963
    %v1968 = vsel %vm1802, %v1964, 0.0
    %1969 = vadd.xlane.f32.xlu0 %v1968
    %v1970 = vpop.xlane.xlu0 %1969
    %v1971 = vsel %vm1802, %v1965, 0.0
    %1972 = vadd.xlane.f32.xlu0 %v1971
    %v1973 = vpop.xlane.xlu0 %1972
    %v1974 = vsel %vm1802, %v1966, 0.0
    %1975 = vadd.xlane.f32.xlu0 %v1974
    %v1976 = vpop.xlane.xlu0 %1975
    %v1977 = vsel %vm1802, %v1967, 0.0
    %1978 = vadd.xlane.f32.xlu0 %v1977
    %v1979 = vpop.xlane.xlu0 %1978
    %v1980 = vmul.f32 %v1970, 0.0625
    %v1981 = vmul.f32 %v1973, 0.0625
    %v1982 = vmul.f32 %v1976, 0.0625
    %v1983 = vmul.f32 %v1979, 0.0625
    %v1984 = vadd.f32 %v1980, 1e-05
    %v1985 = vadd.f32 %v1981, 1e-05
    %v1986 = vadd.f32 %v1982, 1e-05
    %v1987 = vadd.f32 %v1983, 1e-05
    %v1988 = vrsqrt.pop %v1984
    %v1989 = vmul.f32 %v1988, %v1984
    %v1990 = vmul.f32 %v1989, %v1988
    %v1991 = vmul.f32 0.5, %v1990
    %v1992 = vsub.f32 1.5, %v1991
    %v1993 = vmul.f32 %v1988, %v1992
    %vm1994 = vweird.f32 %v1984
    %vm1995 = vweird.f32 %v1988
    %vm1996 = vmor %vm1994, %vm1995
    %v1997 = vsel %vm1996, %v1988, %v1993
    %v1998 = vrsqrt.pop %v1985
    %v1999 = vmul.f32 %v1998, %v1985
    %v2000 = vmul.f32 %v1999, %v1998
    %v2001 = vmul.f32 0.5, %v2000
    %v2002 = vsub.f32 1.5, %v2001
    %v2003 = vmul.f32 %v1998, %v2002
    %vm2004 = vweird.f32 %v1985
    %vm2005 = vweird.f32 %v1998
    %vm2006 = vmor %vm2004, %vm2005
    %v2007 = vsel %vm2006, %v1998, %v2003
    %v2008 = vrsqrt.pop %v1986
    %v2009 = vmul.f32 %v2008, %v1986
    %v2010 = vmul.f32 %v2009, %v2008
    %v2011 = vmul.f32 0.5, %v2010
    %v2012 = vsub.f32 1.5, %v2011
    %v2013 = vmul.f32 %v2008, %v2012
    %vm2014 = vweird.f32 %v1986
    %vm2015 = vweird.f32 %v2008
    %vm2016 = vmor %vm2014, %vm2015
    %v2017 = vsel %vm2016, %v2008, %v2013
    %v2018 = vrsqrt.pop %v1987
    %v2019 = vmul.f32 %v2018, %v1987
    %v2020 = vmul.f32 %v2019, %v2018
    %v2021 = vmul.f32 0.5, %v2020
    %v2022 = vsub.f32 1.5, %v2021
    %v2023 = vmul.f32 %v2018, %v2022
    %vm2024 = vweird.f32 %v1987
    %vm2025 = vweird.f32 %v2018
    %vm2026 = vmor %vm2024, %vm2025
    %v2027 = vsel %vm2026, %v2018, %v2023
    %v2028 = vmul.f32 %v1935, %v1997
    %v2029 = vmul.f32 %v1936, %v2007
    %v2030 = vmul.f32 %v1937, %v2017
    %v2031 = vmul.f32 %v1938, %v2027
    %2033 = vset.pattern.permute.xlu0 0
    %2034 = vperm.xlu0 %2033, %v2028
    %v2035 = vpop.permute.xlu0 %2034
    %2038 = vset.pattern.permute.xlu0 0
    %2039 = vperm.xlu0 %2038, %v2029
    %v2040 = vpop.permute.xlu0 %2039
    %2043 = vset.pattern.permute.xlu0 0
    %2044 = vperm.xlu0 %2043, %v2030
    %v2045 = vpop.permute.xlu0 %2044
    %2048 = vset.pattern.permute.xlu0 0
    %2049 = vperm.xlu0 %2048, %v2031
    %v2050 = vpop.permute.xlu0 %2049
    %v2052 = vmul.f32 %v1960, %v2035
    %v2053 = vmul.f32 %v1961, %v2040
    %v2054 = vmul.f32 %v1962, %v2045
    %v2055 = vmul.f32 %v1963, %v2050
    %2057 = vset.pattern.permute.xlu0 0
    %2058 = vperm.xlu0 %2057, %v1940
    %v2059 = vpop.permute.xlu0 %2058
    %2062 = vset.pattern.permute.xlu0 0
    %2063 = vperm.xlu0 %2062, %v1941
    %v2064 = vpop.permute.xlu0 %2063
    %2067 = vset.pattern.permute.xlu0 0
    %2068 = vperm.xlu0 %2067, %v1942
    %v2069 = vpop.permute.xlu0 %2068
    %2072 = vset.pattern.permute.xlu0 0
    %2073 = vperm.xlu0 %2072, %v1943
    %v2074 = vpop.permute.xlu0 %2073
    %v2076 = vadd.f32 %v2052, %v2059
    %v2077 = vadd.f32 %v2053, %v2064
    %v2078 = vadd.f32 %v2054, %v2069
    %v2079 = vadd.f32 %v2055, %v2074
    %vm2080 = vcmp.gt.f32.partialorder %v2076, 0.0
    %vm2081 = vcmp.gt.f32.partialorder %v2077, 0.0
    %vm2082 = vcmp.gt.f32.partialorder %v2078, 0.0
    %vm2083 = vcmp.gt.f32.partialorder %v2079, 0.0
    %v2084 = vmul.f32 %v2076, 0.01
    %v2085 = vmul.f32 %v2077, 0.01
    %v2086 = vmul.f32 %v2078, 0.01
    %v2087 = vmul.f32 %v2079, 0.01
    %v2088 = vsel %vm2080, %v2076, %v2084
    %v2089 = vsel %vm2081, %v2077, %v2085
    %v2090 = vsel %vm2082, %v2078, %v2086
    %v2091 = vsel %vm2083, %v2079, %v2087
    %s2092 = scalar_lea.vmem %s7, 64
    %v2093 = vld [vmem:[%s2092] sm:$0xff]
    %v2094 = vld [vmem:[%s2092 + $0x8] sm:$0xff]
    %v2095 = vld [vmem:[%s2092 + $0x10] sm:$0xff]
    %v2096 = vld [vmem:[%s2092 + $0x18] sm:$0xff]
    %s2097 = scalar_lea.vmem %s8, 64
    %v2098 = vld [vmem:[%s2097] sm:$0xff]
    %v2099 = vld [vmem:[%s2097 + $0x8] sm:$0xff]
    %v2100 = vld [vmem:[%s2097 + $0x10] sm:$0xff]
    %v2101 = vld [vmem:[%s2097 + $0x18] sm:$0xff]
    %v2103 = vsel %vm1802, %v2088, 0
    %v2106 = vsel %vm1802, %v2089, 0
    %v2109 = vsel %vm1802, %v2090, 0
    %v2112 = vsel %vm1802, %v2091, 0
    %2114 = vmatpush.msra.mxu0 0.0
    %2115 = vmatpush.msra.mxu0 0.0
    %2116 = vmatpush.msra.mxu0 0.0
    %2117 = vmatpush.msra.mxu0 0.0
    %2118 = vmatpush.msra.mxu0 0.0
    %2119 = vmatpush.msra.mxu0 0.0
    %2120 = vmatpush.msra.mxu0 0.0
    %2121 = vmatpush.msra.mxu0 0.0
    %2122 = vmatpush.msra.mxu0 0.0
    %2123 = vmatpush.msra.mxu0 0.0
    %2124 = vmatpush.msra.mxu0 0.0
    %2125 = vmatpush.msra.mxu0 0.0
    %2126 = vmatpush.msra.mxu0 0.0
    %2127 = vmatpush.msra.mxu0 0.0
    %2128 = vmatpush.msra.mxu0 %v1775
    %2129 = vmatpush.msra.mxu0 %v1774
    %2130 = vmatmul.f32.gmra.mxu0 %v2103
    %v2131 = vpop.f32.mrf.mxu0
    %v2132 = vadd.f32 0.0, %v2131
    %2133 = vmatmul.f32.gmra.mxu0 %v2106
    %v2134 = vpop.f32.mrf.mxu0
    %v2135 = vadd.f32 0.0, %v2134
    %2136 = vmatmul.f32.gmra.mxu0 %v2109
    %v2137 = vpop.f32.mrf.mxu0
    %v2138 = vadd.f32 0.0, %v2137
    %2139 = vmatmul.f32.gmra.mxu0 %v2112
    %v2140 = vpop.f32.mrf.mxu0
    %v2141 = vadd.f32 0.0, %v2140
    %2142 = vdwg.mxu0
    %2143 = vmatpush.msra.mxu0 0.0
    %2144 = vmatpush.msra.mxu0 0.0
    %2145 = vmatpush.msra.mxu0 0.0
    %2146 = vmatpush.msra.mxu0 0.0
    %2147 = vmatpush.msra.mxu0 0.0
    %2148 = vmatpush.msra.mxu0 0.0
    %2149 = vmatpush.msra.mxu0 0.0
    %2150 = vmatpush.msra.mxu0 0.0
    %2151 = vmatpush.msra.mxu0 0.0
    %2152 = vmatpush.msra.mxu0 0.0
    %2153 = vmatpush.msra.mxu0 0.0
    %2154 = vmatpush.msra.mxu0 0.0
    %2155 = vmatpush.msra.mxu0 0.0
    %2156 = vmatpush.msra.mxu0 0.0
    %2157 = vmatpush.msra.mxu0 %v1783
    %2158 = vmatpush.msra.mxu0 %v1782
    %2159 = vmatmul.f32.gmra.mxu0 %v2103
    %v2160 = vpop.f32.mrf.mxu0
    %v2161 = vadd.f32 0.0, %v2160
    %2162 = vmatmul.f32.gmra.mxu0 %v2106
    %v2163 = vpop.f32.mrf.mxu0
    %v2164 = vadd.f32 0.0, %v2163
    %2165 = vmatmul.f32.gmra.mxu0 %v2109
    %v2166 = vpop.f32.mrf.mxu0
    %v2167 = vadd.f32 0.0, %v2166
    %2168 = vmatmul.f32.gmra.mxu0 %v2112
    %v2169 = vpop.f32.mrf.mxu0
    %v2170 = vadd.f32 0.0, %v2169
    %2171 = vdwg.mxu0
    %2173 = vset.pattern.permute.xlu0 0
    %2174 = vperm.xlu0 %2173, %v2098
    %v2175 = vpop.permute.xlu0 %2174
    %2178 = vset.pattern.permute.xlu0 0
    %2179 = vperm.xlu0 %2178, %v2099
    %v2180 = vpop.permute.xlu0 %2179
    %2183 = vset.pattern.permute.xlu0 0
    %2184 = vperm.xlu0 %2183, %v2100
    %v2185 = vpop.permute.xlu0 %2184
    %2188 = vset.pattern.permute.xlu0 0
    %2189 = vperm.xlu0 %2188, %v2101
    %v2190 = vpop.permute.xlu0 %2189
    %v2193 = vsel %vm241, %v2093, 0
    %v2196 = vsel %vm241, %v2094, 0
    %v2199 = vsel %vm241, %v2095, 0
    %v2202 = vsel %vm241, %v2096, 0
    %2204 = vmatpush.msra.mxu0 0.0
    %2205 = vmatpush.msra.mxu0 0.0
    %2206 = vmatpush.msra.mxu0 0.0
    %2207 = vmatpush.msra.mxu0 0.0
    %2208 = vmatpush.msra.mxu0 %v2170
    %2209 = vmatpush.msra.mxu0 %v2167
    %2210 = vmatpush.msra.mxu0 %v2164
    %2211 = vmatpush.msra.mxu0 %v2161
    %2212 = vmatpush.msra.mxu0 %v2091
    %2213 = vmatpush.msra.mxu0 %v2090
    %2214 = vmatpush.msra.mxu0 %v2089
    %2215 = vmatpush.msra.mxu0 %v2088
    %2216 = vmatpush.msra.mxu0 %v2141
    %2217 = vmatpush.msra.mxu0 %v2138
    %2218 = vmatpush.msra.mxu0 %v2135
    %2219 = vmatpush.msra.mxu0 %v2132
    %2220 = vmatmul.f32.gmra.mxu0 %v2193
    %v2221 = vpop.f32.mrf.mxu0
    %v2222 = vadd.f32 %v2175, %v2221
    %2223 = vmatmul.f32.gmra.mxu0 %v2196
    %v2224 = vpop.f32.mrf.mxu0
    %v2225 = vadd.f32 %v2180, %v2224
    %2226 = vmatmul.f32.gmra.mxu0 %v2199
    %v2227 = vpop.f32.mrf.mxu0
    %v2228 = vadd.f32 %v2185, %v2227
    %2229 = vmatmul.f32.gmra.mxu0 %v2202
    %v2230 = vpop.f32.mrf.mxu0
    %v2231 = vadd.f32 %v2190, %v2230
    %2232 = vdwg.mxu0
    %s2233 = scalar_lea.vmem %s9, 64
    %v2234 = vld [vmem:[%s2233] sm:$0xff]
    %v2235 = vld [vmem:[%s2233 + $0x8] sm:$0xff]
    %v2236 = vld [vmem:[%s2233 + $0x10] sm:$0xff]
    %v2237 = vld [vmem:[%s2233 + $0x18] sm:$0xff]
    %s2238 = scalar_lea.vmem %s10, 64
    %v2239 = vld [vmem:[%s2238] sm:$0xff]
    %v2240 = vld [vmem:[%s2238 + $0x8] sm:$0xff]
    %v2241 = vld [vmem:[%s2238 + $0x10] sm:$0xff]
    %v2242 = vld [vmem:[%s2238 + $0x18] sm:$0xff]
    %v2243 = vsel %vm1802, %v2222, 0.0
    %2244 = vadd.xlane.f32.xlu0 %v2243
    %v2245 = vpop.xlane.xlu0 %2244
    %v2246 = vsel %vm1802, %v2225, 0.0
    %2247 = vadd.xlane.f32.xlu0 %v2246
    %v2248 = vpop.xlane.xlu0 %2247
    %v2249 = vsel %vm1802, %v2228, 0.0
    %2250 = vadd.xlane.f32.xlu0 %v2249
    %v2251 = vpop.xlane.xlu0 %2250
    %v2252 = vsel %vm1802, %v2231, 0.0
    %2253 = vadd.xlane.f32.xlu0 %v2252
    %v2254 = vpop.xlane.xlu0 %2253
    %v2255 = vmul.f32 %v2245, 0.0625
    %v2256 = vmul.f32 %v2248, 0.0625
    %v2257 = vmul.f32 %v2251, 0.0625
    %v2258 = vmul.f32 %v2254, 0.0625
    %v2259 = vsub.f32 %v2222, %v2255
    %v2260 = vsub.f32 %v2225, %v2256
    %v2261 = vsub.f32 %v2228, %v2257
    %v2262 = vsub.f32 %v2231, %v2258
    %v2263 = vmul.f32 %v2259, %v2259
    %v2264 = vmul.f32 %v2260, %v2260
    %v2265 = vmul.f32 %v2261, %v2261
    %v2266 = vmul.f32 %v2262, %v2262
    %v2267 = vsel %vm1802, %v2263, 0.0
    %2268 = vadd.xlane.f32.xlu0 %v2267
    %v2269 = vpop.xlane.xlu0 %2268
    %v2270 = vsel %vm1802, %v2264, 0.0
    %2271 = vadd.xlane.f32.xlu0 %v2270
    %v2272 = vpop.xlane.xlu0 %2271
    %v2273 = vsel %vm1802, %v2265, 0.0
    %2274 = vadd.xlane.f32.xlu0 %v2273
    %v2275 = vpop.xlane.xlu0 %2274
    %v2276 = vsel %vm1802, %v2266, 0.0
    %2277 = vadd.xlane.f32.xlu0 %v2276
    %v2278 = vpop.xlane.xlu0 %2277
    %v2279 = vmul.f32 %v2269, 0.0625
    %v2280 = vmul.f32 %v2272, 0.0625
    %v2281 = vmul.f32 %v2275, 0.0625
    %v2282 = vmul.f32 %v2278, 0.0625
    %v2283 = vadd.f32 %v2279, 1e-05
    %v2284 = vadd.f32 %v2280, 1e-05
    %v2285 = vadd.f32 %v2281, 1e-05
    %v2286 = vadd.f32 %v2282, 1e-05
    %v2287 = vrsqrt.pop %v2283
    %v2288 = vmul.f32 %v2287, %v2283
    %v2289 = vmul.f32 %v2288, %v2287
    %v2290 = vmul.f32 0.5, %v2289
    %v2291 = vsub.f32 1.5, %v2290
    %v2292 = vmul.f32 %v2287, %v2291
    %vm2293 = vweird.f32 %v2283
    %vm2294 = vweird.f32 %v2287
    %vm2295 = vmor %vm2293, %vm2294
    %v2296 = vsel %vm2295, %v2287, %v2292
    %v2297 = vrsqrt.pop %v2284
    %v2298 = vmul.f32 %v2297, %v2284
    %v2299 = vmul.f32 %v2298, %v2297
    %v2300 = vmul.f32 0.5, %v2299
    %v2301 = vsub.f32 1.5, %v2300
    %v2302 = vmul.f32 %v2297, %v2301
    %vm2303 = vweird.f32 %v2284
    %vm2304 = vweird.f32 %v2297
    %vm2305 = vmor %vm2303, %vm2304
    %v2306 = vsel %vm2305, %v2297, %v2302
    %v2307 = vrsqrt.pop %v2285
    %v2308 = vmul.f32 %v2307, %v2285
    %v2309 = vmul.f32 %v2308, %v2307
    %v2310 = vmul.f32 0.5, %v2309
    %v2311 = vsub.f32 1.5, %v2310
    %v2312 = vmul.f32 %v2307, %v2311
    %vm2313 = vweird.f32 %v2285
    %vm2314 = vweird.f32 %v2307
    %vm2315 = vmor %vm2313, %vm2314
    %v2316 = vsel %vm2315, %v2307, %v2312
    %v2317 = vrsqrt.pop %v2286
    %v2318 = vmul.f32 %v2317, %v2286
    %v2319 = vmul.f32 %v2318, %v2317
    %v2320 = vmul.f32 0.5, %v2319
    %v2321 = vsub.f32 1.5, %v2320
    %v2322 = vmul.f32 %v2317, %v2321
    %vm2323 = vweird.f32 %v2286
    %vm2324 = vweird.f32 %v2317
    %vm2325 = vmor %vm2323, %vm2324
    %v2326 = vsel %vm2325, %v2317, %v2322
    %v2327 = vmul.f32 %v2234, %v2296
    %v2328 = vmul.f32 %v2235, %v2306
    %v2329 = vmul.f32 %v2236, %v2316
    %v2330 = vmul.f32 %v2237, %v2326
    %2332 = vset.pattern.permute.xlu0 0
    %2333 = vperm.xlu0 %2332, %v2327
    %v2334 = vpop.permute.xlu0 %2333
    %2337 = vset.pattern.permute.xlu0 0
    %2338 = vperm.xlu0 %2337, %v2328
    %v2339 = vpop.permute.xlu0 %2338
    %2342 = vset.pattern.permute.xlu0 0
    %2343 = vperm.xlu0 %2342, %v2329
    %v2344 = vpop.permute.xlu0 %2343
    %2347 = vset.pattern.permute.xlu0 0
    %2348 = vperm.xlu0 %2347, %v2330
    %v2349 = vpop.permute.xlu0 %2348
    %v2351 = vmul.f32 %v2259, %v2334
    %v2352 = vmul.f32 %v2260, %v2339
    %v2353 = vmul.f32 %v2261, %v2344
    %v2354 = vmul.f32 %v2262, %v2349
    %2356 = vset.pattern.permute.xlu0 0
    %2357 = vperm.xlu0 %2356, %v2239
    %v2358 = vpop.permute.xlu0 %2357
    %2361 = vset.pattern.permute.xlu0 0
    %2362 = vperm.xlu0 %2361, %v2240
    %v2363 = vpop.permute.xlu0 %2362
    %2366 = vset.pattern.permute.xlu0 0
    %2367 = vperm.xlu0 %2366, %v2241
    %v2368 = vpop.permute.xlu0 %2367
    %2371 = vset.pattern.permute.xlu0 0
    %2372 = vperm.xlu0 %2371, %v2242
    %v2373 = vpop.permute.xlu0 %2372
    %v2375 = vadd.f32 %v2351, %v2358
    %v2376 = vadd.f32 %v2352, %v2363
    %v2377 = vadd.f32 %v2353, %v2368
    %v2378 = vadd.f32 %v2354, %v2373
    %v2379 = vadd.f32 %v2375, %v1759
    %v2380 = vadd.f32 %v2376, %v1760
    %v2381 = vadd.f32 %v2377, %v1761
    %v2382 = vadd.f32 %v2378, %v1762
    %vm2383 = vcmp.gt.f32.partialorder %v2379, 0.0
    %vm2384 = vcmp.gt.f32.partialorder %v2380, 0.0
    %vm2385 = vcmp.gt.f32.partialorder %v2381, 0.0
    %vm2386 = vcmp.gt.f32.partialorder %v2382, 0.0
    %v2387 = vmul.f32 %v2379, 0.01
    %v2388 = vmul.f32 %v2380, 0.01
    %v2389 = vmul.f32 %v2381, 0.01
    %v2390 = vmul.f32 %v2382, 0.01
    %v2391 = vsel %vm2383, %v2379, %v2387
    %v2392 = vsel %vm2384, %v2380, %v2388
    %v2393 = vsel %vm2385, %v2381, %v2389
    %v2394 = vsel %vm2386, %v2382, %v2390
    %s2395 = scalar_lea.vmem %s11, 128
    %v2396 = vld [vmem:[%s2395] sm:$0xff]
    %v2397 = vld [vmem:[%s2395 + $0x8] sm:$0xff]
    %v2398 = vld [vmem:[%s2395 + $0x10] sm:$0xff]
    %v2399 = vld [vmem:[%s2395 + $0x18] sm:$0xff]
    %s2400 = scalar_lea.vmem %s11, 160
    %v2401 = vld [vmem:[%s2400] sm:$0xff]
    %v2402 = vld [vmem:[%s2400 + $0x8] sm:$0xff]
    %v2403 = vld [vmem:[%s2400 + $0x10] sm:$0xff]
    %v2404 = vld [vmem:[%s2400 + $0x18] sm:$0xff]
    %s2405 = scalar_lea.vmem %s12, 64
    %v2406 = vld [vmem:[%s2405] sm:$0xff]
    %v2407 = vld [vmem:[%s2405 + $0x8] sm:$0xff]
    %v2408 = vld [vmem:[%s2405 + $0x10] sm:$0xff]
    %v2409 = vld [vmem:[%s2405 + $0x18] sm:$0xff]
    %v2411 = vsel %vm63, %v2396, 0
    %v2414 = vsel %vm63, %v2397, 0
    %v2417 = vsel %vm63, %v2398, 0
    %v2420 = vsel %vm63, %v2399, 0
    %2422 = vmatpush.msra.mxu0 0.0
    %2423 = vmatpush.msra.mxu0 0.0
    %2424 = vmatpush.msra.mxu0 0.0
    %2425 = vmatpush.msra.mxu0 0.0
    %2426 = vmatpush.msra.mxu0 0.0
    %2427 = vmatpush.msra.mxu0 0.0
    %2428 = vmatpush.msra.mxu0 0.0
    %2429 = vmatpush.msra.mxu0 0.0
    %2430 = vmatpush.msra.mxu0 0.0
    %2431 = vmatpush.msra.mxu0 0.0
    %2432 = vmatpush.msra.mxu0 0.0
    %2433 = vmatpush.msra.mxu0 0.0
    %2434 = vmatpush.msra.mxu0 %v2394
    %2435 = vmatpush.msra.mxu0 %v2393
    %2436 = vmatpush.msra.mxu0 %v2392
    %2437 = vmatpush.msra.mxu0 %v2391
    %2438 = vmatmul.f32.gmra.mxu0 %v2411
    %v2439 = vpop.f32.mrf.mxu0
    %v2440 = vadd.f32 0.0, %v2439
    %2441 = vmatmul.f32.gmra.mxu0 %v2414
    %v2442 = vpop.f32.mrf.mxu0
    %v2443 = vadd.f32 0.0, %v2442
    %2444 = vmatmul.f32.gmra.mxu0 %v2417
    %v2445 = vpop.f32.mrf.mxu0
    %v2446 = vadd.f32 0.0, %v2445
    %2447 = vmatmul.f32.gmra.mxu0 %v2420
    %v2448 = vpop.f32.mrf.mxu0
    %v2449 = vadd.f32 0.0, %v2448
    %2450 = vdwg.mxu0
    %v2452 = vsel %vm63, %v2401, 0
    %v2455 = vsel %vm63, %v2402, 0
    %v2458 = vsel %vm63, %v2403, 0
    %v2461 = vsel %vm63, %v2404, 0
    %2463 = vmatpush.msra.mxu0 0.0
    %2464 = vmatpush.msra.mxu0 0.0
    %2465 = vmatpush.msra.mxu0 0.0
    %2466 = vmatpush.msra.mxu0 0.0
    %2467 = vmatpush.msra.mxu0 0.0
    %2468 = vmatpush.msra.mxu0 0.0
    %2469 = vmatpush.msra.mxu0 0.0
    %2470 = vmatpush.msra.mxu0 0.0
    %2471 = vmatpush.msra.mxu0 0.0
    %2472 = vmatpush.msra.mxu0 0.0
    %2473 = vmatpush.msra.mxu0 0.0
    %2474 = vmatpush.msra.mxu0 0.0
    %2475 = vmatpush.msra.mxu0 %v2394
    %2476 = vmatpush.msra.mxu0 %v2393
    %2477 = vmatpush.msra.mxu0 %v2392
    %2478 = vmatpush.msra.mxu0 %v2391
    %2479 = vmatmul.f32.gmra.mxu0 %v2452
    %v2480 = vpop.f32.mrf.mxu0
    %v2481 = vadd.f32 0.0, %v2480
    %2482 = vmatmul.f32.gmra.mxu0 %v2455
    %v2483 = vpop.f32.mrf.mxu0
    %v2484 = vadd.f32 0.0, %v2483
    %2485 = vmatmul.f32.gmra.mxu0 %v2458
    %v2486 = vpop.f32.mrf.mxu0
    %v2487 = vadd.f32 0.0, %v2486
    %2488 = vmatmul.f32.gmra.mxu0 %v2461
    %v2489 = vpop.f32.mrf.mxu0
    %v2490 = vadd.f32 0.0, %v2489
    %2491 = vdwg.mxu0
    %v2493 = vsel %vm1802, %v2481, 0
    %v2496 = vsel %vm1802, %v2484, 0
    %v2499 = vsel %vm1802, %v2487, 0
    %v2502 = vsel %vm1802, %v2490, 0
    %2504 = vmatpush.msra.mxu0 0.0
    %2505 = vmatpush.msra.mxu0 0.0
    %2506 = vmatpush.msra.mxu0 0.0
    %2507 = vmatpush.msra.mxu0 0.0
    %2508 = vmatpush.msra.mxu0 0.0
    %2509 = vmatpush.msra.mxu0 0.0
    %2510 = vmatpush.msra.mxu0 0.0
    %2511 = vmatpush.msra.mxu0 0.0
    %2512 = vmatpush.msra.mxu0 0.0
    %2513 = vmatpush.msra.mxu0 0.0
    %2514 = vmatpush.msra.mxu0 0.0
    %2515 = vmatpush.msra.mxu0 0.0
    %2516 = vmatpush.msra.mxu0 0.0
    %2517 = vmatpush.msra.mxu0 0.0
    %2518 = vmatpush.msra.mxu0 %v1791
    %2519 = vmatpush.msra.mxu0 %v134
    %2520 = vmatmul.f32.gmra.mxu0 %v2493
    %v2521 = vpop.f32.mrf.mxu0
    %v2522 = vadd.f32 0.0, %v2521
    %2523 = vmatmul.f32.gmra.mxu0 %v2496
    %v2524 = vpop.f32.mrf.mxu0
    %v2525 = vadd.f32 0.0, %v2524
    %2526 = vmatmul.f32.gmra.mxu0 %v2499
    %v2527 = vpop.f32.mrf.mxu0
    %v2528 = vadd.f32 0.0, %v2527
    %2529 = vmatmul.f32.gmra.mxu0 %v2502
    %v2530 = vpop.f32.mrf.mxu0
    %v2531 = vadd.f32 0.0, %v2530
    %2532 = vdwg.mxu0
    %v2534 = vsel %vm1802, %v2440, 0
    %v2537 = vsel %vm1802, %v2443, 0
    %v2540 = vsel %vm1802, %v2446, 0
    %v2543 = vsel %vm1802, %v2449, 0
    %2545 = vmatpush.msra.mxu0 0.0
    %2546 = vmatpush.msra.mxu0 0.0
    %2547 = vmatpush.msra.mxu0 0.0
    %2548 = vmatpush.msra.mxu0 0.0
    %2549 = vmatpush.msra.mxu0 0.0
    %2550 = vmatpush.msra.mxu0 0.0
    %2551 = vmatpush.msra.mxu0 0.0
    %2552 = vmatpush.msra.mxu0 0.0
    %2553 = vmatpush.msra.mxu0 0.0
    %2554 = vmatpush.msra.mxu0 0.0
    %2555 = vmatpush.msra.mxu0 0.0
    %2556 = vmatpush.msra.mxu0 0.0
    %2557 = vmatpush.msra.mxu0 0.0
    %2558 = vmatpush.msra.mxu0 0.0
    %2559 = vmatpush.msra.mxu0 %v1787
    %2560 = vmatpush.msra.mxu0 %v130
    %2561 = vmatmul.f32.gmra.mxu0 %v2534
    %v2562 = vpop.f32.mrf.mxu0
    %v2563 = vadd.f32 %v2522, %v2562
    %2564 = vmatmul.f32.gmra.mxu0 %v2537
    %v2565 = vpop.f32.mrf.mxu0
    %v2566 = vadd.f32 %v2525, %v2565
    %2567 = vmatmul.f32.gmra.mxu0 %v2540
    %v2568 = vpop.f32.mrf.mxu0
    %v2569 = vadd.f32 %v2528, %v2568
    %2570 = vmatmul.f32.gmra.mxu0 %v2543
    %v2571 = vpop.f32.mrf.mxu0
    %v2572 = vadd.f32 %v2531, %v2571
    %2573 = vdwg.mxu0
    %2575 = vset.pattern.permute.xlu0 0
    %2576 = vperm.xlu0 %2575, %v2406
    %v2577 = vpop.permute.xlu0 %2576
    %2580 = vset.pattern.permute.xlu0 0
    %2581 = vperm.xlu0 %2580, %v2407
    %v2582 = vpop.permute.xlu0 %2581
    %2585 = vset.pattern.permute.xlu0 0
    %2586 = vperm.xlu0 %2585, %v2408
    %v2587 = vpop.permute.xlu0 %2586
    %2590 = vset.pattern.permute.xlu0 0
    %2591 = vperm.xlu0 %2590, %v2409
    %v2592 = vpop.permute.xlu0 %2591
    %v2594 = vadd.f32 %v2563, %v2577
    %v2595 = vadd.f32 %v2566, %v2582
    %v2596 = vadd.f32 %v2569, %v2587
    %v2597 = vadd.f32 %v2572, %v2592
    %v2598 = vadd.s32 %v106, 16
    %v2599 = vadd.s32 %v106, 24
    %vm2600 = vcmp.eq.s32.totalorder %v108, 16
    %vm2601 = vmor %vm109, %vm2600
    %vm2602 = vcmp.eq.s32.totalorder %v108, 31
    %vm2603 = vmor %vm1766, %vm2602
    %vm2604 = vcmp.eq.s32.totalorder %v2598, %v115
    %vm2605 = vcmp.eq.s32.totalorder %v2599, %v115
    %vm2606 = vmxor %vm2601, 1
    %vm2607 = vmand %vm116, %vm2606
    %vm2608 = vmand %vm1768, %vm2606
    %vm2609 = vmand %vm2604, %vm2606
    %vm2610 = vmand %vm2605, %vm2606
    %v2611 = vsel %vm2607, 1, 0
    %v2612 = vsel %vm2608, 1, 0
    %v2613 = vsel %vm2609, 1, 0
    %v2614 = vsel %vm2610, 1, 0
    %v2615 = vcvt.s32.f32 %v2611
    %v2616 = vcvt.s32.f32 %v2612
    %v2617 = vcvt.s32.f32 %v2613
    %v2618 = vcvt.s32.f32 %v2614
    %vm2619 = vcmp.eq.s32.totalorder %v2598, %v121
    %vm2620 = vcmp.eq.s32.totalorder %v2599, %v121
    %vm2621 = vmxor %vm2603, 1
    %vm2622 = vmand %vm122, %vm2621
    %vm2623 = vmand %vm1776, %vm2621
    %vm2624 = vmand %vm2619, %vm2621
    %vm2625 = vmand %vm2620, %vm2621
    %v2626 = vsel %vm2622, 1, 0
    %v2627 = vsel %vm2623, 1, 0
    %v2628 = vsel %vm2624, 1, 0
    %v2629 = vsel %vm2625, 1, 0
    %v2630 = vcvt.s32.f32 %v2626
    %v2631 = vcvt.s32.f32 %v2627
    %v2632 = vcvt.s32.f32 %v2628
    %v2633 = vcvt.s32.f32 %v2629
    %v2634 = vmul.u32 %v2598, 2
    %v2635 = vmul.u32 %v2599, 2
    %vm2636 = vcmp.eq.s32.totalorder %v108, %v2634
    %vm2637 = vcmp.eq.s32.totalorder %v108, %v2635
    %v2638 = vsel %vm2636, 1, 0
    %v2639 = vsel %vm2637, 1, 0
    %v2640 = vcvt.s32.f32 %v2638
    %v2641 = vcvt.s32.f32 %v2639
    %v2642 = vadd.s32 %v2634, 1
    %v2643 = vadd.s32 %v2635, 1
    %vm2644 = vcmp.eq.s32.totalorder %v108, %v2642
    %vm2645 = vcmp.eq.s32.totalorder %v108, %v2643
    %v2646 = vsel %vm2644, 1, 0
    %v2647 = vsel %vm2645, 1, 0
    %v2648 = vcvt.s32.f32 %v2646
    %v2649 = vcvt.s32.f32 %v2647
    %s2650 = scalar_lea.vmem %s3, 96
    %v2651 = vld [vmem:[%s2650] sm:$0xff]
    %v2652 = vld [vmem:[%s2650 + $0x8] sm:$0xff]
    %v2653 = vld [vmem:[%s2650 + $0x10] sm:$0xff]
    %v2654 = vld [vmem:[%s2650 + $0x18] sm:$0xff]
    %s2655 = scalar_lea.vmem %s4, 96
    %v2656 = vld [vmem:[%s2655] sm:$0xff]
    %v2657 = vld [vmem:[%s2655 + $0x8] sm:$0xff]
    %v2658 = vld [vmem:[%s2655 + $0x10] sm:$0xff]
    %v2659 = vld [vmem:[%s2655 + $0x18] sm:$0xff]
    %v2661 = vsel %vm63, %v2594, 0
    %v2664 = vsel %vm63, %v2595, 0
    %v2667 = vsel %vm63, %v2596, 0
    %v2670 = vsel %vm63, %v2597, 0
    %2672 = vmatpush.msra.mxu0 0.0
    %2673 = vmatpush.msra.mxu0 0.0
    %2674 = vmatpush.msra.mxu0 0.0
    %2675 = vmatpush.msra.mxu0 0.0
    %2676 = vmatpush.msra.mxu0 0.0
    %2677 = vmatpush.msra.mxu0 0.0
    %2678 = vmatpush.msra.mxu0 0.0
    %2679 = vmatpush.msra.mxu0 0.0
    %2680 = vmatpush.msra.mxu0 0.0
    %2681 = vmatpush.msra.mxu0 0.0
    %2682 = vmatpush.msra.mxu0 0.0
    %2683 = vmatpush.msra.mxu0 0.0
    %2684 = vmatpush.msra.mxu0 %v2618
    %2685 = vmatpush.msra.mxu0 %v2617
    %2686 = vmatpush.msra.mxu0 %v2616
    %2687 = vmatpush.msra.mxu0 %v2615
    %2688 = vmatmul.f32.gmra.mxu0 %v2661
    %v2689 = vpop.f32.mrf.mxu0
    %v2690 = vadd.f32 0.0, %v2689
    %2691 = vmatmul.f32.gmra.mxu0 %v2664
    %v2692 = vpop.f32.mrf.mxu0
    %v2693 = vadd.f32 0.0, %v2692
    %2694 = vmatmul.f32.gmra.mxu0 %v2667
    %v2695 = vpop.f32.mrf.mxu0
    %v2696 = vadd.f32 0.0, %v2695
    %2697 = vmatmul.f32.gmra.mxu0 %v2670
    %v2698 = vpop.f32.mrf.mxu0
    %v2699 = vadd.f32 0.0, %v2698
    %2700 = vdwg.mxu0
    %2701 = vmatpush.msra.mxu0 0.0
    %2702 = vmatpush.msra.mxu0 0.0
    %2703 = vmatpush.msra.mxu0 0.0
    %2704 = vmatpush.msra.mxu0 0.0
    %2705 = vmatpush.msra.mxu0 0.0
    %2706 = vmatpush.msra.mxu0 0.0
    %2707 = vmatpush.msra.mxu0 0.0
    %2708 = vmatpush.msra.mxu0 0.0
    %2709 = vmatpush.msra.mxu0 0.0
    %2710 = vmatpush.msra.mxu0 0.0
    %2711 = vmatpush.msra.mxu0 0.0
    %2712 = vmatpush.msra.mxu0 0.0
    %2713 = vmatpush.msra.mxu0 %v2633
    %2714 = vmatpush.msra.mxu0 %v2632
    %2715 = vmatpush.msra.mxu0 %v2631
    %2716 = vmatpush.msra.mxu0 %v2630
    %2717 = vmatmul.f32.gmra.mxu0 %v2661
    %v2718 = vpop.f32.mrf.mxu0
    %v2719 = vadd.f32 0.0, %v2718
    %2720 = vmatmul.f32.gmra.mxu0 %v2664
    %v2721 = vpop.f32.mrf.mxu0
    %v2722 = vadd.f32 0.0, %v2721
    %2723 = vmatmul.f32.gmra.mxu0 %v2667
    %v2724 = vpop.f32.mrf.mxu0
    %v2725 = vadd.f32 0.0, %v2724
    %2726 = vmatmul.f32.gmra.mxu0 %v2670
    %v2727 = vpop.f32.mrf.mxu0
    %v2728 = vadd.f32 0.0, %v2727
    %2729 = vdwg.mxu0
    %2731 = vset.pattern.permute.xlu0 0
    %2732 = vperm.xlu0 %2731, %v2656
    %v2733 = vpop.permute.xlu0 %2732
    %2736 = vset.pattern.permute.xlu0 0
    %2737 = vperm.xlu0 %2736, %v2657
    %v2738 = vpop.permute.xlu0 %2737
    %2741 = vset.pattern.permute.xlu0 0
    %2742 = vperm.xlu0 %2741, %v2658
    %v2743 = vpop.permute.xlu0 %2742
    %2746 = vset.pattern.permute.xlu0 0
    %2747 = vperm.xlu0 %2746, %v2659
    %v2748 = vpop.permute.xlu0 %2747
    %v2751 = vsel %vm241, %v2651, 0
    %v2754 = vsel %vm241, %v2652, 0
    %v2757 = vsel %vm241, %v2653, 0
    %v2760 = vsel %vm241, %v2654, 0
    %2762 = vmatpush.msra.mxu0 0.0
    %2763 = vmatpush.msra.mxu0 0.0
    %2764 = vmatpush.msra.mxu0 0.0
    %2765 = vmatpush.msra.mxu0 0.0
    %2766 = vmatpush.msra.mxu0 %v2728
    %2767 = vmatpush.msra.mxu0 %v2725
    %2768 = vmatpush.msra.mxu0 %v2722
    %2769 = vmatpush.msra.mxu0 %v2719
    %2770 = vmatpush.msra.mxu0 %v2597
    %2771 = vmatpush.msra.mxu0 %v2596
    %2772 = vmatpush.msra.mxu0 %v2595
    %2773 = vmatpush.msra.mxu0 %v2594
    %2774 = vmatpush.msra.mxu0 %v2699
    %2775 = vmatpush.msra.mxu0 %v2696
    %2776 = vmatpush.msra.mxu0 %v2693
    %2777 = vmatpush.msra.mxu0 %v2690
    %2778 = vmatmul.f32.gmra.mxu0 %v2751
    %v2779 = vpop.f32.mrf.mxu0
    %v2780 = vadd.f32 %v2733, %v2779
    %2781 = vmatmul.f32.gmra.mxu0 %v2754
    %v2782 = vpop.f32.mrf.mxu0
    %v2783 = vadd.f32 %v2738, %v2782
    %2784 = vmatmul.f32.gmra.mxu0 %v2757
    %v2785 = vpop.f32.mrf.mxu0
    %v2786 = vadd.f32 %v2743, %v2785
    %2787 = vmatmul.f32.gmra.mxu0 %v2760
    %v2788 = vpop.f32.mrf.mxu0
    %v2789 = vadd.f32 %v2748, %v2788
    %2790 = vdwg.mxu0
    %s2791 = scalar_lea.vmem %s5, 96
    %v2792 = vld [vmem:[%s2791] sm:$0xff]
    %v2793 = vld [vmem:[%s2791 + $0x8] sm:$0xff]
    %v2794 = vld [vmem:[%s2791 + $0x10] sm:$0xff]
    %v2795 = vld [vmem:[%s2791 + $0x18] sm:$0xff]
    %s2796 = scalar_lea.vmem %s6, 96
    %v2797 = vld [vmem:[%s2796] sm:$0xff]
    %v2798 = vld [vmem:[%s2796 + $0x8] sm:$0xff]
    %v2799 = vld [vmem:[%s2796 + $0x10] sm:$0xff]
    %v2800 = vld [vmem:[%s2796 + $0x18] sm:$0xff]
    %v2801 = vsel %vm63, %v2780, 0.0
    %2802 = vadd.xlane.f32.xlu0 %v2801
    %v2803 = vpop.xlane.xlu0 %2802
    %v2804 = vsel %vm63, %v2783, 0.0
    %2805 = vadd.xlane.f32.xlu0 %v2804
    %v2806 = vpop.xlane.xlu0 %2805
    %v2807 = vsel %vm63, %v2786, 0.0
    %2808 = vadd.xlane.f32.xlu0 %v2807
    %v2809 = vpop.xlane.xlu0 %2808
    %v2810 = vsel %vm63, %v2789, 0.0
    %2811 = vadd.xlane.f32.xlu0 %v2810
    %v2812 = vpop.xlane.xlu0 %2811
    %v2813 = vmul.f32 %v2803, 0.03125
    %v2814 = vmul.f32 %v2806, 0.03125
    %v2815 = vmul.f32 %v2809, 0.03125
    %v2816 = vmul.f32 %v2812, 0.03125
    %v2817 = vsub.f32 %v2780, %v2813
    %v2818 = vsub.f32 %v2783, %v2814
    %v2819 = vsub.f32 %v2786, %v2815
    %v2820 = vsub.f32 %v2789, %v2816
    %v2821 = vmul.f32 %v2817, %v2817
    %v2822 = vmul.f32 %v2818, %v2818
    %v2823 = vmul.f32 %v2819, %v2819
    %v2824 = vmul.f32 %v2820, %v2820
    %v2825 = vsel %vm63, %v2821, 0.0
    %2826 = vadd.xlane.f32.xlu0 %v2825
    %v2827 = vpop.xlane.xlu0 %2826
    %v2828 = vsel %vm63, %v2822, 0.0
    %2829 = vadd.xlane.f32.xlu0 %v2828
    %v2830 = vpop.xlane.xlu0 %2829
    %v2831 = vsel %vm63, %v2823, 0.0
    %2832 = vadd.xlane.f32.xlu0 %v2831
    %v2833 = vpop.xlane.xlu0 %2832
    %v2834 = vsel %vm63, %v2824, 0.0
    %2835 = vadd.xlane.f32.xlu0 %v2834
    %v2836 = vpop.xlane.xlu0 %2835
    %v2837 = vmul.f32 %v2827, 0.03125
    %v2838 = vmul.f32 %v2830, 0.03125
    %v2839 = vmul.f32 %v2833, 0.03125
    %v2840 = vmul.f32 %v2836, 0.03125
    %v2841 = vadd.f32 %v2837, 1e-05
    %v2842 = vadd.f32 %v2838, 1e-05
    %v2843 = vadd.f32 %v2839, 1e-05
    %v2844 = vadd.f32 %v2840, 1e-05
    %v2845 = vrsqrt.pop %v2841
    %v2846 = vmul.f32 %v2845, %v2841
    %v2847 = vmul.f32 %v2846, %v2845
    %v2848 = vmul.f32 0.5, %v2847
    %v2849 = vsub.f32 1.5, %v2848
    %v2850 = vmul.f32 %v2845, %v2849
    %vm2851 = vweird.f32 %v2841
    %vm2852 = vweird.f32 %v2845
    %vm2853 = vmor %vm2851, %vm2852
    %v2854 = vsel %vm2853, %v2845, %v2850
    %v2855 = vrsqrt.pop %v2842
    %v2856 = vmul.f32 %v2855, %v2842
    %v2857 = vmul.f32 %v2856, %v2855
    %v2858 = vmul.f32 0.5, %v2857
    %v2859 = vsub.f32 1.5, %v2858
    %v2860 = vmul.f32 %v2855, %v2859
    %vm2861 = vweird.f32 %v2842
    %vm2862 = vweird.f32 %v2855
    %vm2863 = vmor %vm2861, %vm2862
    %v2864 = vsel %vm2863, %v2855, %v2860
    %v2865 = vrsqrt.pop %v2843
    %v2866 = vmul.f32 %v2865, %v2843
    %v2867 = vmul.f32 %v2866, %v2865
    %v2868 = vmul.f32 0.5, %v2867
    %v2869 = vsub.f32 1.5, %v2868
    %v2870 = vmul.f32 %v2865, %v2869
    %vm2871 = vweird.f32 %v2843
    %vm2872 = vweird.f32 %v2865
    %vm2873 = vmor %vm2871, %vm2872
    %v2874 = vsel %vm2873, %v2865, %v2870
    %v2875 = vrsqrt.pop %v2844
    %v2876 = vmul.f32 %v2875, %v2844
    %v2877 = vmul.f32 %v2876, %v2875
    %v2878 = vmul.f32 0.5, %v2877
    %v2879 = vsub.f32 1.5, %v2878
    %v2880 = vmul.f32 %v2875, %v2879
    %vm2881 = vweird.f32 %v2844
    %vm2882 = vweird.f32 %v2875
    %vm2883 = vmor %vm2881, %vm2882
    %v2884 = vsel %vm2883, %v2875, %v2880
    %v2885 = vmul.f32 %v2792, %v2854
    %v2886 = vmul.f32 %v2793, %v2864
    %v2887 = vmul.f32 %v2794, %v2874
    %v2888 = vmul.f32 %v2795, %v2884
    %2890 = vset.pattern.permute.xlu0 0
    %2891 = vperm.xlu0 %2890, %v2885
    %v2892 = vpop.permute.xlu0 %2891
    %2895 = vset.pattern.permute.xlu0 0
    %2896 = vperm.xlu0 %2895, %v2886
    %v2897 = vpop.permute.xlu0 %2896
    %2900 = vset.pattern.permute.xlu0 0
    %2901 = vperm.xlu0 %2900, %v2887
    %v2902 = vpop.permute.xlu0 %2901
    %2905 = vset.pattern.permute.xlu0 0
    %2906 = vperm.xlu0 %2905, %v2888
    %v2907 = vpop.permute.xlu0 %2906
    %v2909 = vmul.f32 %v2817, %v2892
    %v2910 = vmul.f32 %v2818, %v2897
    %v2911 = vmul.f32 %v2819, %v2902
    %v2912 = vmul.f32 %v2820, %v2907
    %2914 = vset.pattern.permute.xlu0 0
    %2915 = vperm.xlu0 %2914, %v2797
    %v2916 = vpop.permute.xlu0 %2915
    %2919 = vset.pattern.permute.xlu0 0
    %2920 = vperm.xlu0 %2919, %v2798
    %v2921 = vpop.permute.xlu0 %2920
    %2924 = vset.pattern.permute.xlu0 0
    %2925 = vperm.xlu0 %2924, %v2799
    %v2926 = vpop.permute.xlu0 %2925
    %2929 = vset.pattern.permute.xlu0 0
    %2930 = vperm.xlu0 %2929, %v2800
    %v2931 = vpop.permute.xlu0 %2930
    %v2933 = vadd.f32 %v2909, %v2916
    %v2934 = vadd.f32 %v2910, %v2921
    %v2935 = vadd.f32 %v2911, %v2926
    %v2936 = vadd.f32 %v2912, %v2931
    %vm2937 = vcmp.gt.f32.partialorder %v2933, 0.0
    %vm2938 = vcmp.gt.f32.partialorder %v2934, 0.0
    %vm2939 = vcmp.gt.f32.partialorder %v2935, 0.0
    %vm2940 = vcmp.gt.f32.partialorder %v2936, 0.0
    %v2941 = vmul.f32 %v2933, 0.01
    %v2942 = vmul.f32 %v2934, 0.01
    %v2943 = vmul.f32 %v2935, 0.01
    %v2944 = vmul.f32 %v2936, 0.01
    %v2945 = vsel %vm2937, %v2933, %v2941
    %v2946 = vsel %vm2938, %v2934, %v2942
    %v2947 = vsel %vm2939, %v2935, %v2943
    %v2948 = vsel %vm2940, %v2936, %v2944
    %s2949 = scalar_lea.vmem %s7, 96
    %v2950 = vld [vmem:[%s2949] sm:$0xff]
    %v2951 = vld [vmem:[%s2949 + $0x8] sm:$0xff]
    %v2952 = vld [vmem:[%s2949 + $0x10] sm:$0xff]
    %v2953 = vld [vmem:[%s2949 + $0x18] sm:$0xff]
    %s2954 = scalar_lea.vmem %s8, 96
    %v2955 = vld [vmem:[%s2954] sm:$0xff]
    %v2956 = vld [vmem:[%s2954 + $0x8] sm:$0xff]
    %v2957 = vld [vmem:[%s2954 + $0x10] sm:$0xff]
    %v2958 = vld [vmem:[%s2954 + $0x18] sm:$0xff]
    %v2960 = vsel %vm63, %v2945, 0
    %v2963 = vsel %vm63, %v2946, 0
    %v2966 = vsel %vm63, %v2947, 0
    %v2969 = vsel %vm63, %v2948, 0
    %2971 = vmatpush.msra.mxu0 0.0
    %2972 = vmatpush.msra.mxu0 0.0
    %2973 = vmatpush.msra.mxu0 0.0
    %2974 = vmatpush.msra.mxu0 0.0
    %2975 = vmatpush.msra.mxu0 0.0
    %2976 = vmatpush.msra.mxu0 0.0
    %2977 = vmatpush.msra.mxu0 0.0
    %2978 = vmatpush.msra.mxu0 0.0
    %2979 = vmatpush.msra.mxu0 0.0
    %2980 = vmatpush.msra.mxu0 0.0
    %2981 = vmatpush.msra.mxu0 0.0
    %2982 = vmatpush.msra.mxu0 0.0
    %2983 = vmatpush.msra.mxu0 %v2618
    %2984 = vmatpush.msra.mxu0 %v2617
    %2985 = vmatpush.msra.mxu0 %v2616
    %2986 = vmatpush.msra.mxu0 %v2615
    %2987 = vmatmul.f32.gmra.mxu0 %v2960
    %v2988 = vpop.f32.mrf.mxu0
    %v2989 = vadd.f32 0.0, %v2988
    %2990 = vmatmul.f32.gmra.mxu0 %v2963
    %v2991 = vpop.f32.mrf.mxu0
    %v2992 = vadd.f32 0.0, %v2991
    %2993 = vmatmul.f32.gmra.mxu0 %v2966
    %v2994 = vpop.f32.mrf.mxu0
    %v2995 = vadd.f32 0.0, %v2994
    %2996 = vmatmul.f32.gmra.mxu0 %v2969
    %v2997 = vpop.f32.mrf.mxu0
    %v2998 = vadd.f32 0.0, %v2997
    %2999 = vdwg.mxu0
    %3000 = vmatpush.msra.mxu0 0.0
    %3001 = vmatpush.msra.mxu0 0.0
    %3002 = vmatpush.msra.mxu0 0.0
    %3003 = vmatpush.msra.mxu0 0.0
    %3004 = vmatpush.msra.mxu0 0.0
    %3005 = vmatpush.msra.mxu0 0.0
    %3006 = vmatpush.msra.mxu0 0.0
    %3007 = vmatpush.msra.mxu0 0.0
    %3008 = vmatpush.msra.mxu0 0.0
    %3009 = vmatpush.msra.mxu0 0.0
    %3010 = vmatpush.msra.mxu0 0.0
    %3011 = vmatpush.msra.mxu0 0.0
    %3012 = vmatpush.msra.mxu0 %v2633
    %3013 = vmatpush.msra.mxu0 %v2632
    %3014 = vmatpush.msra.mxu0 %v2631
    %3015 = vmatpush.msra.mxu0 %v2630
    %3016 = vmatmul.f32.gmra.mxu0 %v2960
    %v3017 = vpop.f32.mrf.mxu0
    %v3018 = vadd.f32 0.0, %v3017
    %3019 = vmatmul.f32.gmra.mxu0 %v2963
    %v3020 = vpop.f32.mrf.mxu0
    %v3021 = vadd.f32 0.0, %v3020
    %3022 = vmatmul.f32.gmra.mxu0 %v2966
    %v3023 = vpop.f32.mrf.mxu0
    %v3024 = vadd.f32 0.0, %v3023
    %3025 = vmatmul.f32.gmra.mxu0 %v2969
    %v3026 = vpop.f32.mrf.mxu0
    %v3027 = vadd.f32 0.0, %v3026
    %3028 = vdwg.mxu0
    %3030 = vset.pattern.permute.xlu0 0
    %3031 = vperm.xlu0 %3030, %v2955
    %v3032 = vpop.permute.xlu0 %3031
    %3035 = vset.pattern.permute.xlu0 0
    %3036 = vperm.xlu0 %3035, %v2956
    %v3037 = vpop.permute.xlu0 %3036
    %3040 = vset.pattern.permute.xlu0 0
    %3041 = vperm.xlu0 %3040, %v2957
    %v3042 = vpop.permute.xlu0 %3041
    %3045 = vset.pattern.permute.xlu0 0
    %3046 = vperm.xlu0 %3045, %v2958
    %v3047 = vpop.permute.xlu0 %3046
    %v3050 = vsel %vm241, %v2950, 0
    %v3053 = vsel %vm241, %v2951, 0
    %v3056 = vsel %vm241, %v2952, 0
    %v3059 = vsel %vm241, %v2953, 0
    %3061 = vmatpush.msra.mxu0 0.0
    %3062 = vmatpush.msra.mxu0 0.0
    %3063 = vmatpush.msra.mxu0 0.0
    %3064 = vmatpush.msra.mxu0 0.0
    %3065 = vmatpush.msra.mxu0 %v3027
    %3066 = vmatpush.msra.mxu0 %v3024
    %3067 = vmatpush.msra.mxu0 %v3021
    %3068 = vmatpush.msra.mxu0 %v3018
    %3069 = vmatpush.msra.mxu0 %v2948
    %3070 = vmatpush.msra.mxu0 %v2947
    %3071 = vmatpush.msra.mxu0 %v2946
    %3072 = vmatpush.msra.mxu0 %v2945
    %3073 = vmatpush.msra.mxu0 %v2998
    %3074 = vmatpush.msra.mxu0 %v2995
    %3075 = vmatpush.msra.mxu0 %v2992
    %3076 = vmatpush.msra.mxu0 %v2989
    %3077 = vmatmul.f32.gmra.mxu0 %v3050
    %v3078 = vpop.f32.mrf.mxu0
    %v3079 = vadd.f32 %v3032, %v3078
    %3080 = vmatmul.f32.gmra.mxu0 %v3053
    %v3081 = vpop.f32.mrf.mxu0
    %v3082 = vadd.f32 %v3037, %v3081
    %3083 = vmatmul.f32.gmra.mxu0 %v3056
    %v3084 = vpop.f32.mrf.mxu0
    %v3085 = vadd.f32 %v3042, %v3084
    %3086 = vmatmul.f32.gmra.mxu0 %v3059
    %v3087 = vpop.f32.mrf.mxu0
    %v3088 = vadd.f32 %v3047, %v3087
    %3089 = vdwg.mxu0
    %s3090 = scalar_lea.vmem %s9, 96
    %v3091 = vld [vmem:[%s3090] sm:$0xff]
    %v3092 = vld [vmem:[%s3090 + $0x8] sm:$0xff]
    %v3093 = vld [vmem:[%s3090 + $0x10] sm:$0xff]
    %v3094 = vld [vmem:[%s3090 + $0x18] sm:$0xff]
    %s3095 = scalar_lea.vmem %s10, 96
    %v3096 = vld [vmem:[%s3095] sm:$0xff]
    %v3097 = vld [vmem:[%s3095 + $0x8] sm:$0xff]
    %v3098 = vld [vmem:[%s3095 + $0x10] sm:$0xff]
    %v3099 = vld [vmem:[%s3095 + $0x18] sm:$0xff]
    %v3100 = vsel %vm63, %v3079, 0.0
    %3101 = vadd.xlane.f32.xlu0 %v3100
    %v3102 = vpop.xlane.xlu0 %3101
    %v3103 = vsel %vm63, %v3082, 0.0
    %3104 = vadd.xlane.f32.xlu0 %v3103
    %v3105 = vpop.xlane.xlu0 %3104
    %v3106 = vsel %vm63, %v3085, 0.0
    %3107 = vadd.xlane.f32.xlu0 %v3106
    %v3108 = vpop.xlane.xlu0 %3107
    %v3109 = vsel %vm63, %v3088, 0.0
    %3110 = vadd.xlane.f32.xlu0 %v3109
    %v3111 = vpop.xlane.xlu0 %3110
    %v3112 = vmul.f32 %v3102, 0.03125
    %v3113 = vmul.f32 %v3105, 0.03125
    %v3114 = vmul.f32 %v3108, 0.03125
    %v3115 = vmul.f32 %v3111, 0.03125
    %v3116 = vsub.f32 %v3079, %v3112
    %v3117 = vsub.f32 %v3082, %v3113
    %v3118 = vsub.f32 %v3085, %v3114
    %v3119 = vsub.f32 %v3088, %v3115
    %v3120 = vmul.f32 %v3116, %v3116
    %v3121 = vmul.f32 %v3117, %v3117
    %v3122 = vmul.f32 %v3118, %v3118
    %v3123 = vmul.f32 %v3119, %v3119
    %v3124 = vsel %vm63, %v3120, 0.0
    %3125 = vadd.xlane.f32.xlu0 %v3124
    %v3126 = vpop.xlane.xlu0 %3125
    %v3127 = vsel %vm63, %v3121, 0.0
    %3128 = vadd.xlane.f32.xlu0 %v3127
    %v3129 = vpop.xlane.xlu0 %3128
    %v3130 = vsel %vm63, %v3122, 0.0
    %3131 = vadd.xlane.f32.xlu0 %v3130
    %v3132 = vpop.xlane.xlu0 %3131
    %v3133 = vsel %vm63, %v3123, 0.0
    %3134 = vadd.xlane.f32.xlu0 %v3133
    %v3135 = vpop.xlane.xlu0 %3134
    %v3136 = vmul.f32 %v3126, 0.03125
    %v3137 = vmul.f32 %v3129, 0.03125
    %v3138 = vmul.f32 %v3132, 0.03125
    %v3139 = vmul.f32 %v3135, 0.03125
    %v3140 = vadd.f32 %v3136, 1e-05
    %v3141 = vadd.f32 %v3137, 1e-05
    %v3142 = vadd.f32 %v3138, 1e-05
    %v3143 = vadd.f32 %v3139, 1e-05
    %v3144 = vrsqrt.pop %v3140
    %v3145 = vmul.f32 %v3144, %v3140
    %v3146 = vmul.f32 %v3145, %v3144
    %v3147 = vmul.f32 0.5, %v3146
    %v3148 = vsub.f32 1.5, %v3147
    %v3149 = vmul.f32 %v3144, %v3148
    %vm3150 = vweird.f32 %v3140
    %vm3151 = vweird.f32 %v3144
    %vm3152 = vmor %vm3150, %vm3151
    %v3153 = vsel %vm3152, %v3144, %v3149
    %v3154 = vrsqrt.pop %v3141
    %v3155 = vmul.f32 %v3154, %v3141
    %v3156 = vmul.f32 %v3155, %v3154
    %v3157 = vmul.f32 0.5, %v3156
    %v3158 = vsub.f32 1.5, %v3157
    %v3159 = vmul.f32 %v3154, %v3158
    %vm3160 = vweird.f32 %v3141
    %vm3161 = vweird.f32 %v3154
    %vm3162 = vmor %vm3160, %vm3161
    %v3163 = vsel %vm3162, %v3154, %v3159
    %v3164 = vrsqrt.pop %v3142
    %v3165 = vmul.f32 %v3164, %v3142
    %v3166 = vmul.f32 %v3165, %v3164
    %v3167 = vmul.f32 0.5, %v3166
    %v3168 = vsub.f32 1.5, %v3167
    %v3169 = vmul.f32 %v3164, %v3168
    %vm3170 = vweird.f32 %v3142
    %vm3171 = vweird.f32 %v3164
    %vm3172 = vmor %vm3170, %vm3171
    %v3173 = vsel %vm3172, %v3164, %v3169
    %v3174 = vrsqrt.pop %v3143
    %v3175 = vmul.f32 %v3174, %v3143
    %v3176 = vmul.f32 %v3175, %v3174
    %v3177 = vmul.f32 0.5, %v3176
    %v3178 = vsub.f32 1.5, %v3177
    %v3179 = vmul.f32 %v3174, %v3178
    %vm3180 = vweird.f32 %v3143
    %vm3181 = vweird.f32 %v3174
    %vm3182 = vmor %vm3180, %vm3181
    %v3183 = vsel %vm3182, %v3174, %v3179
    %v3184 = vmul.f32 %v3091, %v3153
    %v3185 = vmul.f32 %v3092, %v3163
    %v3186 = vmul.f32 %v3093, %v3173
    %v3187 = vmul.f32 %v3094, %v3183
    %3189 = vset.pattern.permute.xlu0 0
    %3190 = vperm.xlu0 %3189, %v3184
    %v3191 = vpop.permute.xlu0 %3190
    %3194 = vset.pattern.permute.xlu0 0
    %3195 = vperm.xlu0 %3194, %v3185
    %v3196 = vpop.permute.xlu0 %3195
    %3199 = vset.pattern.permute.xlu0 0
    %3200 = vperm.xlu0 %3199, %v3186
    %v3201 = vpop.permute.xlu0 %3200
    %3204 = vset.pattern.permute.xlu0 0
    %3205 = vperm.xlu0 %3204, %v3187
    %v3206 = vpop.permute.xlu0 %3205
    %v3208 = vmul.f32 %v3116, %v3191
    %v3209 = vmul.f32 %v3117, %v3196
    %v3210 = vmul.f32 %v3118, %v3201
    %v3211 = vmul.f32 %v3119, %v3206
    %3213 = vset.pattern.permute.xlu0 0
    %3214 = vperm.xlu0 %3213, %v3096
    %v3215 = vpop.permute.xlu0 %3214
    %3218 = vset.pattern.permute.xlu0 0
    %3219 = vperm.xlu0 %3218, %v3097
    %v3220 = vpop.permute.xlu0 %3219
    %3223 = vset.pattern.permute.xlu0 0
    %3224 = vperm.xlu0 %3223, %v3098
    %v3225 = vpop.permute.xlu0 %3224
    %3228 = vset.pattern.permute.xlu0 0
    %3229 = vperm.xlu0 %3228, %v3099
    %v3230 = vpop.permute.xlu0 %3229
    %v3232 = vadd.f32 %v3208, %v3215
    %v3233 = vadd.f32 %v3209, %v3220
    %v3234 = vadd.f32 %v3210, %v3225
    %v3235 = vadd.f32 %v3211, %v3230
    %v3236 = vadd.f32 %v3232, %v2594
    %v3237 = vadd.f32 %v3233, %v2595
    %v3238 = vadd.f32 %v3234, %v2596
    %v3239 = vadd.f32 %v3235, %v2597
    %vm3240 = vcmp.gt.f32.partialorder %v3236, 0.0
    %vm3241 = vcmp.gt.f32.partialorder %v3237, 0.0
    %vm3242 = vcmp.gt.f32.partialorder %v3238, 0.0
    %vm3243 = vcmp.gt.f32.partialorder %v3239, 0.0
    %v3244 = vmul.f32 %v3236, 0.01
    %v3245 = vmul.f32 %v3237, 0.01
    %v3246 = vmul.f32 %v3238, 0.01
    %v3247 = vmul.f32 %v3239, 0.01
    %v3248 = vsel %vm3240, %v3236, %v3244
    %v3249 = vsel %vm3241, %v3237, %v3245
    %v3250 = vsel %vm3242, %v3238, %v3246
    %v3251 = vsel %vm3243, %v3239, %v3247
    %s3252 = scalar_lea.vmem %s11, 192
    %v3253 = vld [vmem:[%s3252] sm:$0xff]
    %v3254 = vld [vmem:[%s3252 + $0x8] sm:$0xff]
    %v3255 = vld [vmem:[%s3252 + $0x10] sm:$0xff]
    %v3256 = vld [vmem:[%s3252 + $0x18] sm:$0xff]
    %s3257 = scalar_lea.vmem %s11, 224
    %v3258 = vld [vmem:[%s3257] sm:$0xff]
    %v3259 = vld [vmem:[%s3257 + $0x8] sm:$0xff]
    %v3260 = vld [vmem:[%s3257 + $0x10] sm:$0xff]
    %v3261 = vld [vmem:[%s3257 + $0x18] sm:$0xff]
    %s3262 = scalar_lea.vmem %s12, 96
    %v3263 = vld [vmem:[%s3262] sm:$0xff]
    %v3264 = vld [vmem:[%s3262 + $0x8] sm:$0xff]
    %v3265 = vld [vmem:[%s3262 + $0x10] sm:$0xff]
    %v3266 = vld [vmem:[%s3262 + $0x18] sm:$0xff]
    %v3268 = vsel %vm63, %v3253, 0
    %v3271 = vsel %vm63, %v3254, 0
    %v3274 = vsel %vm63, %v3255, 0
    %v3277 = vsel %vm63, %v3256, 0
    %3279 = vmatpush.msra.mxu0 0.0
    %3280 = vmatpush.msra.mxu0 0.0
    %3281 = vmatpush.msra.mxu0 0.0
    %3282 = vmatpush.msra.mxu0 0.0
    %3283 = vmatpush.msra.mxu0 0.0
    %3284 = vmatpush.msra.mxu0 0.0
    %3285 = vmatpush.msra.mxu0 0.0
    %3286 = vmatpush.msra.mxu0 0.0
    %3287 = vmatpush.msra.mxu0 0.0
    %3288 = vmatpush.msra.mxu0 0.0
    %3289 = vmatpush.msra.mxu0 0.0
    %3290 = vmatpush.msra.mxu0 0.0
    %3291 = vmatpush.msra.mxu0 %v3251
    %3292 = vmatpush.msra.mxu0 %v3250
    %3293 = vmatpush.msra.mxu0 %v3249
    %3294 = vmatpush.msra.mxu0 %v3248
    %3295 = vmatmul.f32.gmra.mxu0 %v3268
    %v3296 = vpop.f32.mrf.mxu0
    %v3297 = vadd.f32 0.0, %v3296
    %3298 = vmatmul.f32.gmra.mxu0 %v3271
    %v3299 = vpop.f32.mrf.mxu0
    %v3300 = vadd.f32 0.0, %v3299
    %3301 = vmatmul.f32.gmra.mxu0 %v3274
    %v3302 = vpop.f32.mrf.mxu0
    %v3303 = vadd.f32 0.0, %v3302
    %3304 = vmatmul.f32.gmra.mxu0 %v3277
    %v3305 = vpop.f32.mrf.mxu0
    %v3306 = vadd.f32 0.0, %v3305
    %3307 = vdwg.mxu0
    %v3309 = vsel %vm63, %v3258, 0
    %v3312 = vsel %vm63, %v3259, 0
    %v3315 = vsel %vm63, %v3260, 0
    %v3318 = vsel %vm63, %v3261, 0
    %3320 = vmatpush.msra.mxu0 0.0
    %3321 = vmatpush.msra.mxu0 0.0
    %3322 = vmatpush.msra.mxu0 0.0
    %3323 = vmatpush.msra.mxu0 0.0
    %3324 = vmatpush.msra.mxu0 0.0
    %3325 = vmatpush.msra.mxu0 0.0
    %3326 = vmatpush.msra.mxu0 0.0
    %3327 = vmatpush.msra.mxu0 0.0
    %3328 = vmatpush.msra.mxu0 0.0
    %3329 = vmatpush.msra.mxu0 0.0
    %3330 = vmatpush.msra.mxu0 0.0
    %3331 = vmatpush.msra.mxu0 0.0
    %3332 = vmatpush.msra.mxu0 %v3251
    %3333 = vmatpush.msra.mxu0 %v3250
    %3334 = vmatpush.msra.mxu0 %v3249
    %3335 = vmatpush.msra.mxu0 %v3248
    %3336 = vmatmul.f32.gmra.mxu0 %v3309
    %v3337 = vpop.f32.mrf.mxu0
    %v3338 = vadd.f32 0.0, %v3337
    %3339 = vmatmul.f32.gmra.mxu0 %v3312
    %v3340 = vpop.f32.mrf.mxu0
    %v3341 = vadd.f32 0.0, %v3340
    %3342 = vmatmul.f32.gmra.mxu0 %v3315
    %v3343 = vpop.f32.mrf.mxu0
    %v3344 = vadd.f32 0.0, %v3343
    %3345 = vmatmul.f32.gmra.mxu0 %v3318
    %v3346 = vpop.f32.mrf.mxu0
    %v3347 = vadd.f32 0.0, %v3346
    %3348 = vdwg.mxu0
    %v3350 = vsel %vm63, %v3338, 0
    %v3353 = vsel %vm63, %v3341, 0
    %v3356 = vsel %vm63, %v3344, 0
    %v3359 = vsel %vm63, %v3347, 0
    %3361 = vmatpush.msra.mxu0 0.0
    %3362 = vmatpush.msra.mxu0 0.0
    %3363 = vmatpush.msra.mxu0 0.0
    %3364 = vmatpush.msra.mxu0 0.0
    %3365 = vmatpush.msra.mxu0 0.0
    %3366 = vmatpush.msra.mxu0 0.0
    %3367 = vmatpush.msra.mxu0 0.0
    %3368 = vmatpush.msra.mxu0 0.0
    %3369 = vmatpush.msra.mxu0 0.0
    %3370 = vmatpush.msra.mxu0 0.0
    %3371 = vmatpush.msra.mxu0 0.0
    %3372 = vmatpush.msra.mxu0 0.0
    %3373 = vmatpush.msra.mxu0 %v2649
    %3374 = vmatpush.msra.mxu0 %v2648
    %3375 = vmatpush.msra.mxu0 %v1791
    %3376 = vmatpush.msra.mxu0 %v134
    %3377 = vmatmul.f32.gmra.mxu0 %v3350
    %v3378 = vpop.f32.mrf.mxu0
    %v3379 = vadd.f32 0.0, %v3378
    %3380 = vmatmul.f32.gmra.mxu0 %v3353
    %v3381 = vpop.f32.mrf.mxu0
    %v3382 = vadd.f32 0.0, %v3381
    %3383 = vmatmul.f32.gmra.mxu0 %v3356
    %v3384 = vpop.f32.mrf.mxu0
    %v3385 = vadd.f32 0.0, %v3384
    %3386 = vmatmul.f32.gmra.mxu0 %v3359
    %v3387 = vpop.f32.mrf.mxu0
    %v3388 = vadd.f32 0.0, %v3387
    %3389 = vdwg.mxu0
    %v3391 = vsel %vm63, %v3297, 0
    %v3394 = vsel %vm63, %v3300, 0
    %v3397 = vsel %vm63, %v3303, 0
    %v3400 = vsel %vm63, %v3306, 0
    %3402 = vmatpush.msra.mxu0 0.0
    %3403 = vmatpush.msra.mxu0 0.0
    %3404 = vmatpush.msra.mxu0 0.0
    %3405 = vmatpush.msra.mxu0 0.0
    %3406 = vmatpush.msra.mxu0 0.0
    %3407 = vmatpush.msra.mxu0 0.0
    %3408 = vmatpush.msra.mxu0 0.0
    %3409 = vmatpush.msra.mxu0 0.0
    %3410 = vmatpush.msra.mxu0 0.0
    %3411 = vmatpush.msra.mxu0 0.0
    %3412 = vmatpush.msra.mxu0 0.0
    %3413 = vmatpush.msra.mxu0 0.0
    %3414 = vmatpush.msra.mxu0 %v2641
    %3415 = vmatpush.msra.mxu0 %v2640
    %3416 = vmatpush.msra.mxu0 %v1787
    %3417 = vmatpush.msra.mxu0 %v130
    %3418 = vmatmul.f32.gmra.mxu0 %v3391
    %v3419 = vpop.f32.mrf.mxu0
    %v3420 = vadd.f32 %v3379, %v3419
    %3421 = vmatmul.f32.gmra.mxu0 %v3394
    %v3422 = vpop.f32.mrf.mxu0
    %v3423 = vadd.f32 %v3382, %v3422
    %3424 = vmatmul.f32.gmra.mxu0 %v3397
    %v3425 = vpop.f32.mrf.mxu0
    %v3426 = vadd.f32 %v3385, %v3425
    %3427 = vmatmul.f32.gmra.mxu0 %v3400
    %v3428 = vpop.f32.mrf.mxu0
    %v3429 = vadd.f32 %v3388, %v3428
    %3430 = vdwg.mxu0
    %3432 = vset.pattern.permute.xlu0 0
    %3433 = vperm.xlu0 %3432, %v3263
    %v3434 = vpop.permute.xlu0 %3433
    %3437 = vset.pattern.permute.xlu0 0
    %3438 = vperm.xlu0 %3437, %v3264
    %v3439 = vpop.permute.xlu0 %3438
    %3442 = vset.pattern.permute.xlu0 0
    %3443 = vperm.xlu0 %3442, %v3265
    %v3444 = vpop.permute.xlu0 %3443
    %3447 = vset.pattern.permute.xlu0 0
    %3448 = vperm.xlu0 %3447, %v3266
    %v3449 = vpop.permute.xlu0 %3448
    %v3451 = vadd.f32 %v3420, %v3434
    %v3452 = vadd.f32 %v3423, %v3439
    %v3453 = vadd.f32 %v3426, %v3444
    %v3454 = vadd.f32 %v3429, %v3449
    %v3455 = vadd.s32 %v106, 32
    %v3456 = vadd.s32 %v106, 40
    %v3457 = vadd.s32 %v106, 48
    %v3458 = vadd.s32 %v106, 56
    %vm3459 = vcmp.eq.s32.totalorder %v108, 32
    %vm3460 = vmor %vm109, %vm3459
    %vm3461 = vcmp.eq.s32.totalorder %v108, 63
    %vm3462 = vmor %vm2602, %vm3461
    %vm3463 = vcmp.eq.s32.totalorder %v3455, %v115
    %vm3464 = vcmp.eq.s32.totalorder %v3456, %v115
    %vm3465 = vcmp.eq.s32.totalorder %v3457, %v115
    %vm3466 = vcmp.eq.s32.totalorder %v3458, %v115
    %vm3467 = vmxor %vm3460, 1
    %vm3468 = vmand %vm116, %vm3467
    %vm3469 = vmand %vm1768, %vm3467
    %vm3470 = vmand %vm2604, %vm3467
    %vm3471 = vmand %vm2605, %vm3467
    %vm3472 = vmand %vm3463, %vm3467
    %vm3473 = vmand %vm3464, %vm3467
    %vm3474 = vmand %vm3465, %vm3467
    %vm3475 = vmand %vm3466, %vm3467
    %v3476 = vsel %vm3468, 1, 0
    %v3477 = vsel %vm3469, 1, 0
    %v3478 = vsel %vm3470, 1, 0
    %v3479 = vsel %vm3471, 1, 0
    %v3480 = vsel %vm3472, 1, 0
    %v3481 = vsel %vm3473, 1, 0
    %v3482 = vsel %vm3474, 1, 0
    %v3483 = vsel %vm3475, 1, 0
    %v3484 = vcvt.s32.f32 %v3476
    %v3485 = vcvt.s32.f32 %v3477
    %v3486 = vcvt.s32.f32 %v3478
    %v3487 = vcvt.s32.f32 %v3479
    %v3488 = vcvt.s32.f32 %v3480
    %v3489 = vcvt.s32.f32 %v3481
    %v3490 = vcvt.s32.f32 %v3482
    %v3491 = vcvt.s32.f32 %v3483
    %vm3492 = vcmp.eq.s32.totalorder %v3455, %v121
    %vm3493 = vcmp.eq.s32.totalorder %v3456, %v121
    %vm3494 = vcmp.eq.s32.totalorder %v3457, %v121
    %vm3495 = vcmp.eq.s32.totalorder %v3458, %v121
    %vm3496 = vmxor %vm3462, 1
    %vm3497 = vmand %vm122, %vm3496
    %vm3498 = vmand %vm1776, %vm3496
    %vm3499 = vmand %vm2619, %vm3496
    %vm3500 = vmand %vm2620, %vm3496
    %vm3501 = vmand %vm3492, %vm3496
    %vm3502 = vmand %vm3493, %vm3496
    %vm3503 = vmand %vm3494, %vm3496
    %vm3504 = vmand %vm3495, %vm3496
    %v3505 = vsel %vm3497, 1, 0
    %v3506 = vsel %vm3498, 1, 0
    %v3507 = vsel %vm3499, 1, 0
    %v3508 = vsel %vm3500, 1, 0
    %v3509 = vsel %vm3501, 1, 0
    %v3510 = vsel %vm3502, 1, 0
    %v3511 = vsel %vm3503, 1, 0
    %v3512 = vsel %vm3504, 1, 0
    %v3513 = vcvt.s32.f32 %v3505
    %v3514 = vcvt.s32.f32 %v3506
    %v3515 = vcvt.s32.f32 %v3507
    %v3516 = vcvt.s32.f32 %v3508
    %v3517 = vcvt.s32.f32 %v3509
    %v3518 = vcvt.s32.f32 %v3510
    %v3519 = vcvt.s32.f32 %v3511
    %v3520 = vcvt.s32.f32 %v3512
    %v3521 = vmul.u32 %v3455, 2
    %v3522 = vmul.u32 %v3456, 2
    %v3523 = vmul.u32 %v3457, 2
    %v3524 = vmul.u32 %v3458, 2
    %vm3525 = vcmp.eq.s32.totalorder %v108, %v3521
    %vm3526 = vcmp.eq.s32.totalorder %v108, %v3522
    %vm3527 = vcmp.eq.s32.totalorder %v108, %v3523
    %vm3528 = vcmp.eq.s32.totalorder %v108, %v3524
    %v3529 = vsel %vm3525, 1, 0
    %v3530 = vsel %vm3526, 1, 0
    %v3531 = vsel %vm3527, 1, 0
    %v3532 = vsel %vm3528, 1, 0
    %v3533 = vcvt.s32.f32 %v3529
    %v3534 = vcvt.s32.f32 %v3530
    %v3535 = vcvt.s32.f32 %v3531
    %v3536 = vcvt.s32.f32 %v3532
    %v3537 = vadd.s32 %v3521, 1
    %v3538 = vadd.s32 %v3522, 1
    %v3539 = vadd.s32 %v3523, 1
    %v3540 = vadd.s32 %v3524, 1
    %vm3541 = vcmp.eq.s32.totalorder %v108, %v3537
    %vm3542 = vcmp.eq.s32.totalorder %v108, %v3538
    %vm3543 = vcmp.eq.s32.totalorder %v108, %v3539
    %vm3544 = vcmp.eq.s32.totalorder %v108, %v3540
    %v3545 = vsel %vm3541, 1, 0
    %v3546 = vsel %vm3542, 1, 0
    %v3547 = vsel %vm3543, 1, 0
    %v3548 = vsel %vm3544, 1, 0
    %v3549 = vcvt.s32.f32 %v3545
    %v3550 = vcvt.s32.f32 %v3546
    %v3551 = vcvt.s32.f32 %v3547
    %v3552 = vcvt.s32.f32 %v3548
    %s3553 = scalar_lea.vmem %s3, 128
    %v3554 = vld [vmem:[%s3553] sm:$0xff]
    %v3555 = vld [vmem:[%s3553 + $0x8] sm:$0xff]
    %v3556 = vld [vmem:[%s3553 + $0x10] sm:$0xff]
    %v3557 = vld [vmem:[%s3553 + $0x18] sm:$0xff]
    %s3558 = scalar_lea.vmem %s4, 128
    %v3559 = vld [vmem:[%s3558] sm:$0xff]
    %v3560 = vld [vmem:[%s3558 + $0x8] sm:$0xff]
    %v3561 = vld [vmem:[%s3558 + $0x10] sm:$0xff]
    %v3562 = vld [vmem:[%s3558 + $0x18] sm:$0xff]
    %vm3563 = vcmask 523264
    %v3565 = vsel %vm3563, %v3451, 0
    %v3568 = vsel %vm3563, %v3452, 0
    %v3571 = vsel %vm3563, %v3453, 0
    %v3574 = vsel %vm3563, %v3454, 0
    %3576 = vmatpush.msra.mxu0 0.0
    %3577 = vmatpush.msra.mxu0 0.0
    %3578 = vmatpush.msra.mxu0 0.0
    %3579 = vmatpush.msra.mxu0 0.0
    %3580 = vmatpush.msra.mxu0 0.0
    %3581 = vmatpush.msra.mxu0 0.0
    %3582 = vmatpush.msra.mxu0 0.0
    %3583 = vmatpush.msra.mxu0 0.0
    %3584 = vmatpush.msra.mxu0 %v3491
    %3585 = vmatpush.msra.mxu0 %v3490
    %3586 = vmatpush.msra.mxu0 %v3489
    %3587 = vmatpush.msra.mxu0 %v3488
    %3588 = vmatpush.msra.mxu0 %v3487
    %3589 = vmatpush.msra.mxu0 %v3486
    %3590 = vmatpush.msra.mxu0 %v3485
    %3591 = vmatpush.msra.mxu0 %v3484
    %3592 = vmatmul.f32.gmra.mxu0 %v3565
    %v3593 = vpop.f32.mrf.mxu0
    %v3594 = vadd.f32 0.0, %v3593
    %3595 = vmatmul.f32.gmra.mxu0 %v3568
    %v3596 = vpop.f32.mrf.mxu0
    %v3597 = vadd.f32 0.0, %v3596
    %3598 = vmatmul.f32.gmra.mxu0 %v3571
    %v3599 = vpop.f32.mrf.mxu0
    %v3600 = vadd.f32 0.0, %v3599
    %3601 = vmatmul.f32.gmra.mxu0 %v3574
    %v3602 = vpop.f32.mrf.mxu0
    %v3603 = vadd.f32 0.0, %v3602
    %3604 = vdwg.mxu0
    %3605 = vmatpush.msra.mxu0 0.0
    %3606 = vmatpush.msra.mxu0 0.0
    %3607 = vmatpush.msra.mxu0 0.0
    %3608 = vmatpush.msra.mxu0 0.0
    %3609 = vmatpush.msra.mxu0 0.0
    %3610 = vmatpush.msra.mxu0 0.0
    %3611 = vmatpush.msra.mxu0 0.0
    %3612 = vmatpush.msra.mxu0 0.0
    %3613 = vmatpush.msra.mxu0 %v3520
    %3614 = vmatpush.msra.mxu0 %v3519
    %3615 = vmatpush.msra.mxu0 %v3518
    %3616 = vmatpush.msra.mxu0 %v3517
    %3617 = vmatpush.msra.mxu0 %v3516
    %3618 = vmatpush.msra.mxu0 %v3515
    %3619 = vmatpush.msra.mxu0 %v3514
    %3620 = vmatpush.msra.mxu0 %v3513
    %3621 = vmatmul.f32.gmra.mxu0 %v3565
    %v3622 = vpop.f32.mrf.mxu0
    %v3623 = vadd.f32 0.0, %v3622
    %3624 = vmatmul.f32.gmra.mxu0 %v3568
    %v3625 = vpop.f32.mrf.mxu0
    %v3626 = vadd.f32 0.0, %v3625
    %3627 = vmatmul.f32.gmra.mxu0 %v3571
    %v3628 = vpop.f32.mrf.mxu0
    %v3629 = vadd.f32 0.0, %v3628
    %3630 = vmatmul.f32.gmra.mxu0 %v3574
    %v3631 = vpop.f32.mrf.mxu0
    %v3632 = vadd.f32 0.0, %v3631
    %3633 = vdwg.mxu0
    %3635 = vset.pattern.permute.xlu0 0
    %3636 = vperm.xlu0 %3635, %v3559
    %v3637 = vpop.permute.xlu0 %3636
    %3640 = vset.pattern.permute.xlu0 0
    %3641 = vperm.xlu0 %3640, %v3560
    %v3642 = vpop.permute.xlu0 %3641
    %3645 = vset.pattern.permute.xlu0 0
    %3646 = vperm.xlu0 %3645, %v3561
    %v3647 = vpop.permute.xlu0 %3646
    %3650 = vset.pattern.permute.xlu0 0
    %3651 = vperm.xlu0 %3650, %v3562
    %v3652 = vpop.permute.xlu0 %3651
    %v3655 = vsel %vm241, %v3554, 0
    %v3658 = vsel %vm241, %v3555, 0
    %v3661 = vsel %vm241, %v3556, 0
    %v3664 = vsel %vm241, %v3557, 0
    %3666 = vmatpush.msra.mxu0 0.0
    %3667 = vmatpush.msra.mxu0 0.0
    %3668 = vmatpush.msra.mxu0 0.0
    %3669 = vmatpush.msra.mxu0 0.0
    %3670 = vmatpush.msra.mxu0 %v3632
    %3671 = vmatpush.msra.mxu0 %v3629
    %3672 = vmatpush.msra.mxu0 %v3626
    %3673 = vmatpush.msra.mxu0 %v3623
    %3674 = vmatpush.msra.mxu0 %v3454
    %3675 = vmatpush.msra.mxu0 %v3453
    %3676 = vmatpush.msra.mxu0 %v3452
    %3677 = vmatpush.msra.mxu0 %v3451
    %3678 = vmatpush.msra.mxu0 %v3603
    %3679 = vmatpush.msra.mxu0 %v3600
    %3680 = vmatpush.msra.mxu0 %v3597
    %3681 = vmatpush.msra.mxu0 %v3594
    %3682 = vmatmul.f32.gmra.mxu0 %v3655
    %v3683 = vpop.f32.mrf.mxu0
    %v3684 = vadd.f32 %v3637, %v3683
    %3685 = vmatmul.f32.gmra.mxu0 %v3658
    %v3686 = vpop.f32.mrf.mxu0
    %v3687 = vadd.f32 %v3642, %v3686
    %3688 = vmatmul.f32.gmra.mxu0 %v3661
    %v3689 = vpop.f32.mrf.mxu0
    %v3690 = vadd.f32 %v3647, %v3689
    %3691 = vmatmul.f32.gmra.mxu0 %v3664
    %v3692 = vpop.f32.mrf.mxu0
    %v3693 = vadd.f32 %v3652, %v3692
    %3694 = vdwg.mxu0
    %s3695 = scalar_lea.vmem %s5, 128
    %v3696 = vld [vmem:[%s3695] sm:$0xff]
    %v3697 = vld [vmem:[%s3695 + $0x8] sm:$0xff]
    %v3698 = vld [vmem:[%s3695 + $0x10] sm:$0xff]
    %v3699 = vld [vmem:[%s3695 + $0x18] sm:$0xff]
    %s3700 = scalar_lea.vmem %s6, 128
    %v3701 = vld [vmem:[%s3700] sm:$0xff]
    %v3702 = vld [vmem:[%s3700 + $0x8] sm:$0xff]
    %v3703 = vld [vmem:[%s3700 + $0x10] sm:$0xff]
    %v3704 = vld [vmem:[%s3700 + $0x18] sm:$0xff]
    %v3705 = vsel %vm3563, %v3684, 0.0
    %3706 = vadd.xlane.f32.xlu0 %v3705
    %v3707 = vpop.xlane.xlu0 %3706
    %v3708 = vsel %vm3563, %v3687, 0.0
    %3709 = vadd.xlane.f32.xlu0 %v3708
    %v3710 = vpop.xlane.xlu0 %3709
    %v3711 = vsel %vm3563, %v3690, 0.0
    %3712 = vadd.xlane.f32.xlu0 %v3711
    %v3713 = vpop.xlane.xlu0 %3712
    %v3714 = vsel %vm3563, %v3693, 0.0
    %3715 = vadd.xlane.f32.xlu0 %v3714
    %v3716 = vpop.xlane.xlu0 %3715
    %v3717 = vmul.f32 %v3707, 0.015625
    %v3718 = vmul.f32 %v3710, 0.015625
    %v3719 = vmul.f32 %v3713, 0.015625
    %v3720 = vmul.f32 %v3716, 0.015625
    %v3721 = vsub.f32 %v3684, %v3717
    %v3722 = vsub.f32 %v3687, %v3718
    %v3723 = vsub.f32 %v3690, %v3719
    %v3724 = vsub.f32 %v3693, %v3720
    %v3725 = vmul.f32 %v3721, %v3721
    %v3726 = vmul.f32 %v3722, %v3722
    %v3727 = vmul.f32 %v3723, %v3723
    %v3728 = vmul.f32 %v3724, %v3724
    %v3729 = vsel %vm3563, %v3725, 0.0
    %3730 = vadd.xlane.f32.xlu0 %v3729
    %v3731 = vpop.xlane.xlu0 %3730
    %v3732 = vsel %vm3563, %v3726, 0.0
    %3733 = vadd.xlane.f32.xlu0 %v3732
    %v3734 = vpop.xlane.xlu0 %3733
    %v3735 = vsel %vm3563, %v3727, 0.0
    %3736 = vadd.xlane.f32.xlu0 %v3735
    %v3737 = vpop.xlane.xlu0 %3736
    %v3738 = vsel %vm3563, %v3728, 0.0
    %3739 = vadd.xlane.f32.xlu0 %v3738
    %v3740 = vpop.xlane.xlu0 %3739
    %v3741 = vmul.f32 %v3731, 0.015625
    %v3742 = vmul.f32 %v3734, 0.015625
    %v3743 = vmul.f32 %v3737, 0.015625
    %v3744 = vmul.f32 %v3740, 0.015625
    %v3745 = vadd.f32 %v3741, 1e-05
    %v3746 = vadd.f32 %v3742, 1e-05
    %v3747 = vadd.f32 %v3743, 1e-05
    %v3748 = vadd.f32 %v3744, 1e-05
    %v3749 = vrsqrt.pop %v3745
    %v3750 = vmul.f32 %v3749, %v3745
    %v3751 = vmul.f32 %v3750, %v3749
    %v3752 = vmul.f32 0.5, %v3751
    %v3753 = vsub.f32 1.5, %v3752
    %v3754 = vmul.f32 %v3749, %v3753
    %vm3755 = vweird.f32 %v3745
    %vm3756 = vweird.f32 %v3749
    %vm3757 = vmor %vm3755, %vm3756
    %v3758 = vsel %vm3757, %v3749, %v3754
    %v3759 = vrsqrt.pop %v3746
    %v3760 = vmul.f32 %v3759, %v3746
    %v3761 = vmul.f32 %v3760, %v3759
    %v3762 = vmul.f32 0.5, %v3761
    %v3763 = vsub.f32 1.5, %v3762
    %v3764 = vmul.f32 %v3759, %v3763
    %vm3765 = vweird.f32 %v3746
    %vm3766 = vweird.f32 %v3759
    %vm3767 = vmor %vm3765, %vm3766
    %v3768 = vsel %vm3767, %v3759, %v3764
    %v3769 = vrsqrt.pop %v3747
    %v3770 = vmul.f32 %v3769, %v3747
    %v3771 = vmul.f32 %v3770, %v3769
    %v3772 = vmul.f32 0.5, %v3771
    %v3773 = vsub.f32 1.5, %v3772
    %v3774 = vmul.f32 %v3769, %v3773
    %vm3775 = vweird.f32 %v3747
    %vm3776 = vweird.f32 %v3769
    %vm3777 = vmor %vm3775, %vm3776
    %v3778 = vsel %vm3777, %v3769, %v3774
    %v3779 = vrsqrt.pop %v3748
    %v3780 = vmul.f32 %v3779, %v3748
    %v3781 = vmul.f32 %v3780, %v3779
    %v3782 = vmul.f32 0.5, %v3781
    %v3783 = vsub.f32 1.5, %v3782
    %v3784 = vmul.f32 %v3779, %v3783
    %vm3785 = vweird.f32 %v3748
    %vm3786 = vweird.f32 %v3779
    %vm3787 = vmor %vm3785, %vm3786
    %v3788 = vsel %vm3787, %v3779, %v3784
    %v3789 = vmul.f32 %v3696, %v3758
    %v3790 = vmul.f32 %v3697, %v3768
    %v3791 = vmul.f32 %v3698, %v3778
    %v3792 = vmul.f32 %v3699, %v3788
    %3794 = vset.pattern.permute.xlu0 0
    %3795 = vperm.xlu0 %3794, %v3789
    %v3796 = vpop.permute.xlu0 %3795
    %3799 = vset.pattern.permute.xlu0 0
    %3800 = vperm.xlu0 %3799, %v3790
    %v3801 = vpop.permute.xlu0 %3800
    %3804 = vset.pattern.permute.xlu0 0
    %3805 = vperm.xlu0 %3804, %v3791
    %v3806 = vpop.permute.xlu0 %3805
    %3809 = vset.pattern.permute.xlu0 0
    %3810 = vperm.xlu0 %3809, %v3792
    %v3811 = vpop.permute.xlu0 %3810
    %v3813 = vmul.f32 %v3721, %v3796
    %v3814 = vmul.f32 %v3722, %v3801
    %v3815 = vmul.f32 %v3723, %v3806
    %v3816 = vmul.f32 %v3724, %v3811
    %3818 = vset.pattern.permute.xlu0 0
    %3819 = vperm.xlu0 %3818, %v3701
    %v3820 = vpop.permute.xlu0 %3819
    %3823 = vset.pattern.permute.xlu0 0
    %3824 = vperm.xlu0 %3823, %v3702
    %v3825 = vpop.permute.xlu0 %3824
    %3828 = vset.pattern.permute.xlu0 0
    %3829 = vperm.xlu0 %3828, %v3703
    %v3830 = vpop.permute.xlu0 %3829
    %3833 = vset.pattern.permute.xlu0 0
    %3834 = vperm.xlu0 %3833, %v3704
    %v3835 = vpop.permute.xlu0 %3834
    %v3837 = vadd.f32 %v3813, %v3820
    %v3838 = vadd.f32 %v3814, %v3825
    %v3839 = vadd.f32 %v3815, %v3830
    %v3840 = vadd.f32 %v3816, %v3835
    %vm3841 = vcmp.gt.f32.partialorder %v3837, 0.0
    %vm3842 = vcmp.gt.f32.partialorder %v3838, 0.0
    %vm3843 = vcmp.gt.f32.partialorder %v3839, 0.0
    %vm3844 = vcmp.gt.f32.partialorder %v3840, 0.0
    %v3845 = vmul.f32 %v3837, 0.01
    %v3846 = vmul.f32 %v3838, 0.01
    %v3847 = vmul.f32 %v3839, 0.01
    %v3848 = vmul.f32 %v3840, 0.01
    %v3849 = vsel %vm3841, %v3837, %v3845
    %v3850 = vsel %vm3842, %v3838, %v3846
    %v3851 = vsel %vm3843, %v3839, %v3847
    %v3852 = vsel %vm3844, %v3840, %v3848
    %s3853 = scalar_lea.vmem %s7, 128
    %v3854 = vld [vmem:[%s3853] sm:$0xff]
    %v3855 = vld [vmem:[%s3853 + $0x8] sm:$0xff]
    %v3856 = vld [vmem:[%s3853 + $0x10] sm:$0xff]
    %v3857 = vld [vmem:[%s3853 + $0x18] sm:$0xff]
    %s3858 = scalar_lea.vmem %s8, 128
    %v3859 = vld [vmem:[%s3858] sm:$0xff]
    %v3860 = vld [vmem:[%s3858 + $0x8] sm:$0xff]
    %v3861 = vld [vmem:[%s3858 + $0x10] sm:$0xff]
    %v3862 = vld [vmem:[%s3858 + $0x18] sm:$0xff]
    %v3864 = vsel %vm3563, %v3849, 0
    %v3867 = vsel %vm3563, %v3850, 0
    %v3870 = vsel %vm3563, %v3851, 0
    %v3873 = vsel %vm3563, %v3852, 0
    %3875 = vmatpush.msra.mxu0 0.0
    %3876 = vmatpush.msra.mxu0 0.0
    %3877 = vmatpush.msra.mxu0 0.0
    %3878 = vmatpush.msra.mxu0 0.0
    %3879 = vmatpush.msra.mxu0 0.0
    %3880 = vmatpush.msra.mxu0 0.0
    %3881 = vmatpush.msra.mxu0 0.0
    %3882 = vmatpush.msra.mxu0 0.0
    %3883 = vmatpush.msra.mxu0 %v3491
    %3884 = vmatpush.msra.mxu0 %v3490
    %3885 = vmatpush.msra.mxu0 %v3489
    %3886 = vmatpush.msra.mxu0 %v3488
    %3887 = vmatpush.msra.mxu0 %v3487
    %3888 = vmatpush.msra.mxu0 %v3486
    %3889 = vmatpush.msra.mxu0 %v3485
    %3890 = vmatpush.msra.mxu0 %v3484
    %3891 = vmatmul.f32.gmra.mxu0 %v3864
    %v3892 = vpop.f32.mrf.mxu0
    %v3893 = vadd.f32 0.0, %v3892
    %3894 = vmatmul.f32.gmra.mxu0 %v3867
    %v3895 = vpop.f32.mrf.mxu0
    %v3896 = vadd.f32 0.0, %v3895
    %3897 = vmatmul.f32.gmra.mxu0 %v3870
    %v3898 = vpop.f32.mrf.mxu0
    %v3899 = vadd.f32 0.0, %v3898
    %3900 = vmatmul.f32.gmra.mxu0 %v3873
    %v3901 = vpop.f32.mrf.mxu0
    %v3902 = vadd.f32 0.0, %v3901
    %3903 = vdwg.mxu0
    %3904 = vmatpush.msra.mxu0 0.0
    %3905 = vmatpush.msra.mxu0 0.0
    %3906 = vmatpush.msra.mxu0 0.0
    %3907 = vmatpush.msra.mxu0 0.0
    %3908 = vmatpush.msra.mxu0 0.0
    %3909 = vmatpush.msra.mxu0 0.0
    %3910 = vmatpush.msra.mxu0 0.0
    %3911 = vmatpush.msra.mxu0 0.0
    %3912 = vmatpush.msra.mxu0 %v3520
    %3913 = vmatpush.msra.mxu0 %v3519
    %3914 = vmatpush.msra.mxu0 %v3518
    %3915 = vmatpush.msra.mxu0 %v3517
    %3916 = vmatpush.msra.mxu0 %v3516
    %3917 = vmatpush.msra.mxu0 %v3515
    %3918 = vmatpush.msra.mxu0 %v3514
    %3919 = vmatpush.msra.mxu0 %v3513
    %3920 = vmatmul.f32.gmra.mxu0 %v3864
    %v3921 = vpop.f32.mrf.mxu0
    %v3922 = vadd.f32 0.0, %v3921
    %3923 = vmatmul.f32.gmra.mxu0 %v3867
    %v3924 = vpop.f32.mrf.mxu0
    %v3925 = vadd.f32 0.0, %v3924
    %3926 = vmatmul.f32.gmra.mxu0 %v3870
    %v3927 = vpop.f32.mrf.mxu0
    %v3928 = vadd.f32 0.0, %v3927
    %3929 = vmatmul.f32.gmra.mxu0 %v3873
    %v3930 = vpop.f32.mrf.mxu0
    %v3931 = vadd.f32 0.0, %v3930
    %3932 = vdwg.mxu0
    %3934 = vset.pattern.permute.xlu0 0
    %3935 = vperm.xlu0 %3934, %v3859
    %v3936 = vpop.permute.xlu0 %3935
    %3939 = vset.pattern.permute.xlu0 0
    %3940 = vperm.xlu0 %3939, %v3860
    %v3941 = vpop.permute.xlu0 %3940
    %3944 = vset.pattern.permute.xlu0 0
    %3945 = vperm.xlu0 %3944, %v3861
    %v3946 = vpop.permute.xlu0 %3945
    %3949 = vset.pattern.permute.xlu0 0
    %3950 = vperm.xlu0 %3949, %v3862
    %v3951 = vpop.permute.xlu0 %3950
    %v3954 = vsel %vm241, %v3854, 0
    %v3957 = vsel %vm241, %v3855, 0
    %v3960 = vsel %vm241, %v3856, 0
    %v3963 = vsel %vm241, %v3857, 0
    %3965 = vmatpush.msra.mxu0 0.0
    %3966 = vmatpush.msra.mxu0 0.0
    %3967 = vmatpush.msra.mxu0 0.0
    %3968 = vmatpush.msra.mxu0 0.0
    %3969 = vmatpush.msra.mxu0 %v3931
    %3970 = vmatpush.msra.mxu0 %v3928
    %3971 = vmatpush.msra.mxu0 %v3925
    %3972 = vmatpush.msra.mxu0 %v3922
    %3973 = vmatpush.msra.mxu0 %v3852
    %3974 = vmatpush.msra.mxu0 %v3851
    %3975 = vmatpush.msra.mxu0 %v3850
    %3976 = vmatpush.msra.mxu0 %v3849
    %3977 = vmatpush.msra.mxu0 %v3902
    %3978 = vmatpush.msra.mxu0 %v3899
    %3979 = vmatpush.msra.mxu0 %v3896
    %3980 = vmatpush.msra.mxu0 %v3893
    %3981 = vmatmul.f32.gmra.mxu0 %v3954
    %v3982 = vpop.f32.mrf.mxu0
    %v3983 = vadd.f32 %v3936, %v3982
    %3984 = vmatmul.f32.gmra.mxu0 %v3957
    %v3985 = vpop.f32.mrf.mxu0
    %v3986 = vadd.f32 %v3941, %v3985
    %3987 = vmatmul.f32.gmra.mxu0 %v3960
    %v3988 = vpop.f32.mrf.mxu0
    %v3989 = vadd.f32 %v3946, %v3988
    %3990 = vmatmul.f32.gmra.mxu0 %v3963
    %v3991 = vpop.f32.mrf.mxu0
    %v3992 = vadd.f32 %v3951, %v3991
    %3993 = vdwg.mxu0
    %s3994 = scalar_lea.vmem %s9, 128
    %v3995 = vld [vmem:[%s3994] sm:$0xff]
    %v3996 = vld [vmem:[%s3994 + $0x8] sm:$0xff]
    %v3997 = vld [vmem:[%s3994 + $0x10] sm:$0xff]
    %v3998 = vld [vmem:[%s3994 + $0x18] sm:$0xff]
    %s3999 = scalar_lea.vmem %s10, 128
    %v4000 = vld [vmem:[%s3999] sm:$0xff]
    %v4001 = vld [vmem:[%s3999 + $0x8] sm:$0xff]
    %v4002 = vld [vmem:[%s3999 + $0x10] sm:$0xff]
    %v4003 = vld [vmem:[%s3999 + $0x18] sm:$0xff]
    %v4004 = vsel %vm3563, %v3983, 0.0
    %4005 = vadd.xlane.f32.xlu0 %v4004
    %v4006 = vpop.xlane.xlu0 %4005
    %v4007 = vsel %vm3563, %v3986, 0.0
    %4008 = vadd.xlane.f32.xlu0 %v4007
    %v4009 = vpop.xlane.xlu0 %4008
    %v4010 = vsel %vm3563, %v3989, 0.0
    %4011 = vadd.xlane.f32.xlu0 %v4010
    %v4012 = vpop.xlane.xlu0 %4011
    %v4013 = vsel %vm3563, %v3992, 0.0
    %4014 = vadd.xlane.f32.xlu0 %v4013
    %v4015 = vpop.xlane.xlu0 %4014
    %v4016 = vmul.f32 %v4006, 0.015625
    %v4017 = vmul.f32 %v4009, 0.015625
    %v4018 = vmul.f32 %v4012, 0.015625
    %v4019 = vmul.f32 %v4015, 0.015625
    %v4020 = vsub.f32 %v3983, %v4016
    %v4021 = vsub.f32 %v3986, %v4017
    %v4022 = vsub.f32 %v3989, %v4018
    %v4023 = vsub.f32 %v3992, %v4019
    %v4024 = vmul.f32 %v4020, %v4020
    %v4025 = vmul.f32 %v4021, %v4021
    %v4026 = vmul.f32 %v4022, %v4022
    %v4027 = vmul.f32 %v4023, %v4023
    %v4028 = vsel %vm3563, %v4024, 0.0
    %4029 = vadd.xlane.f32.xlu0 %v4028
    %v4030 = vpop.xlane.xlu0 %4029
    %v4031 = vsel %vm3563, %v4025, 0.0
    %4032 = vadd.xlane.f32.xlu0 %v4031
    %v4033 = vpop.xlane.xlu0 %4032
    %v4034 = vsel %vm3563, %v4026, 0.0
    %4035 = vadd.xlane.f32.xlu0 %v4034
    %v4036 = vpop.xlane.xlu0 %4035
    %v4037 = vsel %vm3563, %v4027, 0.0
    %4038 = vadd.xlane.f32.xlu0 %v4037
    %v4039 = vpop.xlane.xlu0 %4038
    %v4040 = vmul.f32 %v4030, 0.015625
    %v4041 = vmul.f32 %v4033, 0.015625
    %v4042 = vmul.f32 %v4036, 0.015625
    %v4043 = vmul.f32 %v4039, 0.015625
    %v4044 = vadd.f32 %v4040, 1e-05
    %v4045 = vadd.f32 %v4041, 1e-05
    %v4046 = vadd.f32 %v4042, 1e-05
    %v4047 = vadd.f32 %v4043, 1e-05
    %v4048 = vrsqrt.pop %v4044
    %v4049 = vmul.f32 %v4048, %v4044
    %v4050 = vmul.f32 %v4049, %v4048
    %v4051 = vmul.f32 0.5, %v4050
    %v4052 = vsub.f32 1.5, %v4051
    %v4053 = vmul.f32 %v4048, %v4052
    %vm4054 = vweird.f32 %v4044
    %vm4055 = vweird.f32 %v4048
    %vm4056 = vmor %vm4054, %vm4055
    %v4057 = vsel %vm4056, %v4048, %v4053
    %v4058 = vrsqrt.pop %v4045
    %v4059 = vmul.f32 %v4058, %v4045
    %v4060 = vmul.f32 %v4059, %v4058
    %v4061 = vmul.f32 0.5, %v4060
    %v4062 = vsub.f32 1.5, %v4061
    %v4063 = vmul.f32 %v4058, %v4062
    %vm4064 = vweird.f32 %v4045
    %vm4065 = vweird.f32 %v4058
    %vm4066 = vmor %vm4064, %vm4065
    %v4067 = vsel %vm4066, %v4058, %v4063
    %v4068 = vrsqrt.pop %v4046
    %v4069 = vmul.f32 %v4068, %v4046
    %v4070 = vmul.f32 %v4069, %v4068
    %v4071 = vmul.f32 0.5, %v4070
    %v4072 = vsub.f32 1.5, %v4071
    %v4073 = vmul.f32 %v4068, %v4072
    %vm4074 = vweird.f32 %v4046
    %vm4075 = vweird.f32 %v4068
    %vm4076 = vmor %vm4074, %vm4075
    %v4077 = vsel %vm4076, %v4068, %v4073
    %v4078 = vrsqrt.pop %v4047
    %v4079 = vmul.f32 %v4078, %v4047
    %v4080 = vmul.f32 %v4079, %v4078
    %v4081 = vmul.f32 0.5, %v4080
    %v4082 = vsub.f32 1.5, %v4081
    %v4083 = vmul.f32 %v4078, %v4082
    %vm4084 = vweird.f32 %v4047
    %vm4085 = vweird.f32 %v4078
    %vm4086 = vmor %vm4084, %vm4085
    %v4087 = vsel %vm4086, %v4078, %v4083
    %v4088 = vmul.f32 %v3995, %v4057
    %v4089 = vmul.f32 %v3996, %v4067
    %v4090 = vmul.f32 %v3997, %v4077
    %v4091 = vmul.f32 %v3998, %v4087
    %4093 = vset.pattern.permute.xlu0 0
    %4094 = vperm.xlu0 %4093, %v4088
    %v4095 = vpop.permute.xlu0 %4094
    %4098 = vset.pattern.permute.xlu0 0
    %4099 = vperm.xlu0 %4098, %v4089
    %v4100 = vpop.permute.xlu0 %4099
    %4103 = vset.pattern.permute.xlu0 0
    %4104 = vperm.xlu0 %4103, %v4090
    %v4105 = vpop.permute.xlu0 %4104
    %4108 = vset.pattern.permute.xlu0 0
    %4109 = vperm.xlu0 %4108, %v4091
    %v4110 = vpop.permute.xlu0 %4109
    %v4112 = vmul.f32 %v4020, %v4095
    %v4113 = vmul.f32 %v4021, %v4100
    %v4114 = vmul.f32 %v4022, %v4105
    %v4115 = vmul.f32 %v4023, %v4110
    %4117 = vset.pattern.permute.xlu0 0
    %4118 = vperm.xlu0 %4117, %v4000
    %v4119 = vpop.permute.xlu0 %4118
    %4122 = vset.pattern.permute.xlu0 0
    %4123 = vperm.xlu0 %4122, %v4001
    %v4124 = vpop.permute.xlu0 %4123
    %4127 = vset.pattern.permute.xlu0 0
    %4128 = vperm.xlu0 %4127, %v4002
    %v4129 = vpop.permute.xlu0 %4128
    %4132 = vset.pattern.permute.xlu0 0
    %4133 = vperm.xlu0 %4132, %v4003
    %v4134 = vpop.permute.xlu0 %4133
    %v4136 = vadd.f32 %v4112, %v4119
    %v4137 = vadd.f32 %v4113, %v4124
    %v4138 = vadd.f32 %v4114, %v4129
    %v4139 = vadd.f32 %v4115, %v4134
    %v4140 = vadd.f32 %v4136, %v3451
    %v4141 = vadd.f32 %v4137, %v3452
    %v4142 = vadd.f32 %v4138, %v3453
    %v4143 = vadd.f32 %v4139, %v3454
    %vm4144 = vcmp.gt.f32.partialorder %v4140, 0.0
    %vm4145 = vcmp.gt.f32.partialorder %v4141, 0.0
    %vm4146 = vcmp.gt.f32.partialorder %v4142, 0.0
    %vm4147 = vcmp.gt.f32.partialorder %v4143, 0.0
    %v4148 = vmul.f32 %v4140, 0.01
    %v4149 = vmul.f32 %v4141, 0.01
    %v4150 = vmul.f32 %v4142, 0.01
    %v4151 = vmul.f32 %v4143, 0.01
    %v4152 = vsel %vm4144, %v4140, %v4148
    %v4153 = vsel %vm4145, %v4141, %v4149
    %v4154 = vsel %vm4146, %v4142, %v4150
    %v4155 = vsel %vm4147, %v4143, %v4151
    %s4156 = scalar_lea.vmem %s11, 256
    %v4157 = vld [vmem:[%s4156] sm:$0xff]
    %v4158 = vld [vmem:[%s4156 + $0x8] sm:$0xff]
    %v4159 = vld [vmem:[%s4156 + $0x10] sm:$0xff]
    %v4160 = vld [vmem:[%s4156 + $0x18] sm:$0xff]
    %s4161 = scalar_lea.vmem %s11, 288
    %v4162 = vld [vmem:[%s4161] sm:$0xff]
    %v4163 = vld [vmem:[%s4161 + $0x8] sm:$0xff]
    %v4164 = vld [vmem:[%s4161 + $0x10] sm:$0xff]
    %v4165 = vld [vmem:[%s4161 + $0x18] sm:$0xff]
    %s4166 = scalar_lea.vmem %s12, 128
    %v4167 = vld [vmem:[%s4166] sm:$0xff]
    %v4168 = vld [vmem:[%s4166 + $0x8] sm:$0xff]
    %v4169 = vld [vmem:[%s4166 + $0x10] sm:$0xff]
    %v4170 = vld [vmem:[%s4166 + $0x18] sm:$0xff]
    %v4172 = vsel %vm63, %v4157, 0
    %v4175 = vsel %vm63, %v4158, 0
    %v4178 = vsel %vm63, %v4159, 0
    %v4181 = vsel %vm63, %v4160, 0
    %4183 = vmatpush.msra.mxu0 0.0
    %4184 = vmatpush.msra.mxu0 0.0
    %4185 = vmatpush.msra.mxu0 0.0
    %4186 = vmatpush.msra.mxu0 0.0
    %4187 = vmatpush.msra.mxu0 0.0
    %4188 = vmatpush.msra.mxu0 0.0
    %4189 = vmatpush.msra.mxu0 0.0
    %4190 = vmatpush.msra.mxu0 0.0
    %4191 = vmatpush.msra.mxu0 0.0
    %4192 = vmatpush.msra.mxu0 0.0
    %4193 = vmatpush.msra.mxu0 0.0
    %4194 = vmatpush.msra.mxu0 0.0
    %4195 = vmatpush.msra.mxu0 %v4155
    %4196 = vmatpush.msra.mxu0 %v4154
    %4197 = vmatpush.msra.mxu0 %v4153
    %4198 = vmatpush.msra.mxu0 %v4152
    %4199 = vmatmul.f32.gmra.mxu0 %v4172
    %v4200 = vpop.f32.mrf.mxu0
    %v4201 = vadd.f32 0.0, %v4200
    %4202 = vmatmul.f32.gmra.mxu0 %v4175
    %v4203 = vpop.f32.mrf.mxu0
    %v4204 = vadd.f32 0.0, %v4203
    %4205 = vmatmul.f32.gmra.mxu0 %v4178
    %v4206 = vpop.f32.mrf.mxu0
    %v4207 = vadd.f32 0.0, %v4206
    %4208 = vmatmul.f32.gmra.mxu0 %v4181
    %v4209 = vpop.f32.mrf.mxu0
    %v4210 = vadd.f32 0.0, %v4209
    %4211 = vdwg.mxu0
    %v4213 = vsel %vm63, %v4162, 0
    %v4216 = vsel %vm63, %v4163, 0
    %v4219 = vsel %vm63, %v4164, 0
    %v4222 = vsel %vm63, %v4165, 0
    %4224 = vmatpush.msra.mxu0 0.0
    %4225 = vmatpush.msra.mxu0 0.0
    %4226 = vmatpush.msra.mxu0 0.0
    %4227 = vmatpush.msra.mxu0 0.0
    %4228 = vmatpush.msra.mxu0 0.0
    %4229 = vmatpush.msra.mxu0 0.0
    %4230 = vmatpush.msra.mxu0 0.0
    %4231 = vmatpush.msra.mxu0 0.0
    %4232 = vmatpush.msra.mxu0 0.0
    %4233 = vmatpush.msra.mxu0 0.0
    %4234 = vmatpush.msra.mxu0 0.0
    %4235 = vmatpush.msra.mxu0 0.0
    %4236 = vmatpush.msra.mxu0 %v4155
    %4237 = vmatpush.msra.mxu0 %v4154
    %4238 = vmatpush.msra.mxu0 %v4153
    %4239 = vmatpush.msra.mxu0 %v4152
    %4240 = vmatmul.f32.gmra.mxu0 %v4213
    %v4241 = vpop.f32.mrf.mxu0
    %v4242 = vadd.f32 0.0, %v4241
    %4243 = vmatmul.f32.gmra.mxu0 %v4216
    %v4244 = vpop.f32.mrf.mxu0
    %v4245 = vadd.f32 0.0, %v4244
    %4246 = vmatmul.f32.gmra.mxu0 %v4219
    %v4247 = vpop.f32.mrf.mxu0
    %v4248 = vadd.f32 0.0, %v4247
    %4249 = vmatmul.f32.gmra.mxu0 %v4222
    %v4250 = vpop.f32.mrf.mxu0
    %v4251 = vadd.f32 0.0, %v4250
    %4252 = vdwg.mxu0
    %v4254 = vsel %vm3563, %v4242, 0
    %v4257 = vsel %vm3563, %v4245, 0
    %v4260 = vsel %vm3563, %v4248, 0
    %v4263 = vsel %vm3563, %v4251, 0
    %4265 = vmatpush.msra.mxu0 0.0
    %4266 = vmatpush.msra.mxu0 0.0
    %4267 = vmatpush.msra.mxu0 0.0
    %4268 = vmatpush.msra.mxu0 0.0
    %4269 = vmatpush.msra.mxu0 0.0
    %4270 = vmatpush.msra.mxu0 0.0
    %4271 = vmatpush.msra.mxu0 0.0
    %4272 = vmatpush.msra.mxu0 0.0
    %4273 = vmatpush.msra.mxu0 %v3552
    %4274 = vmatpush.msra.mxu0 %v3551
    %4275 = vmatpush.msra.mxu0 %v3550
    %4276 = vmatpush.msra.mxu0 %v3549
    %4277 = vmatpush.msra.mxu0 %v2649
    %4278 = vmatpush.msra.mxu0 %v2648
    %4279 = vmatpush.msra.mxu0 %v1791
    %4280 = vmatpush.msra.mxu0 %v134
    %4281 = vmatmul.f32.gmra.mxu0 %v4254
    %v4282 = vpop.f32.mrf.mxu0
    %v4283 = vadd.f32 0.0, %v4282
    %4284 = vmatmul.f32.gmra.mxu0 %v4257
    %v4285 = vpop.f32.mrf.mxu0
    %v4286 = vadd.f32 0.0, %v4285
    %4287 = vmatmul.f32.gmra.mxu0 %v4260
    %v4288 = vpop.f32.mrf.mxu0
    %v4289 = vadd.f32 0.0, %v4288
    %4290 = vmatmul.f32.gmra.mxu0 %v4263
    %v4291 = vpop.f32.mrf.mxu0
    %v4292 = vadd.f32 0.0, %v4291
    %4293 = vdwg.mxu0
    %v4295 = vsel %vm3563, %v4201, 0
    %v4298 = vsel %vm3563, %v4204, 0
    %v4301 = vsel %vm3563, %v4207, 0
    %v4304 = vsel %vm3563, %v4210, 0
    %4306 = vmatpush.msra.mxu0 0.0
    %4307 = vmatpush.msra.mxu0 0.0
    %4308 = vmatpush.msra.mxu0 0.0
    %4309 = vmatpush.msra.mxu0 0.0
    %4310 = vmatpush.msra.mxu0 0.0
    %4311 = vmatpush.msra.mxu0 0.0
    %4312 = vmatpush.msra.mxu0 0.0
    %4313 = vmatpush.msra.mxu0 0.0
    %4314 = vmatpush.msra.mxu0 %v3536
    %4315 = vmatpush.msra.mxu0 %v3535
    %4316 = vmatpush.msra.mxu0 %v3534
    %4317 = vmatpush.msra.mxu0 %v3533
    %4318 = vmatpush.msra.mxu0 %v2641
    %4319 = vmatpush.msra.mxu0 %v2640
    %4320 = vmatpush.msra.mxu0 %v1787
    %4321 = vmatpush.msra.mxu0 %v130
    %4322 = vmatmul.f32.gmra.mxu0 %v4295
    %v4323 = vpop.f32.mrf.mxu0
    %v4324 = vadd.f32 %v4283, %v4323
    %4325 = vmatmul.f32.gmra.mxu0 %v4298
    %v4326 = vpop.f32.mrf.mxu0
    %v4327 = vadd.f32 %v4286, %v4326
    %4328 = vmatmul.f32.gmra.mxu0 %v4301
    %v4329 = vpop.f32.mrf.mxu0
    %v4330 = vadd.f32 %v4289, %v4329
    %4331 = vmatmul.f32.gmra.mxu0 %v4304
    %v4332 = vpop.f32.mrf.mxu0
    %v4333 = vadd.f32 %v4292, %v4332
    %4334 = vdwg.mxu0
    %4336 = vset.pattern.permute.xlu0 0
    %4337 = vperm.xlu0 %4336, %v4167
    %v4338 = vpop.permute.xlu0 %4337
    %4341 = vset.pattern.permute.xlu0 0
    %4342 = vperm.xlu0 %4341, %v4168
    %v4343 = vpop.permute.xlu0 %4342
    %4346 = vset.pattern.permute.xlu0 0
    %4347 = vperm.xlu0 %4346, %v4169
    %v4348 = vpop.permute.xlu0 %4347
    %4351 = vset.pattern.permute.xlu0 0
    %4352 = vperm.xlu0 %4351, %v4170
    %v4353 = vpop.permute.xlu0 %4352
    %v4355 = vadd.f32 %v4324, %v4338
    %v4356 = vadd.f32 %v4327, %v4343
    %v4357 = vadd.f32 %v4330, %v4348
    %v4358 = vadd.f32 %v4333, %v4353
    %v4359 = vadd.s32 %v106, 64
    %v4360 = vadd.s32 %v106, 72
    %v4361 = vadd.s32 %v106, 80
    %v4362 = vadd.s32 %v106, 88
    %v4363 = vadd.s32 %v106, 96
    %v4364 = vadd.s32 %v106, 104
    %v4365 = vadd.s32 %v106, 112
    %v4366 = vadd.s32 %v106, 120
    %vm4367 = vcmp.eq.s32.totalorder %v108, 64
    %vm4368 = vmor %vm109, %vm4367
    %vm4369 = vcmp.eq.s32.totalorder %v108, 127
    %vm4370 = vmor %vm3461, %vm4369
    %vm4371 = vcmp.eq.s32.totalorder %v4359, %v115
    %vm4372 = vcmp.eq.s32.totalorder %v4360, %v115
    %vm4373 = vcmp.eq.s32.totalorder %v4361, %v115
    %vm4374 = vcmp.eq.s32.totalorder %v4362, %v115
    %vm4375 = vcmp.eq.s32.totalorder %v4363, %v115
    %vm4376 = vcmp.eq.s32.totalorder %v4364, %v115
    %vm4377 = vcmp.eq.s32.totalorder %v4365, %v115
    %vm4378 = vcmp.eq.s32.totalorder %v4366, %v115
    %vm4379 = vmxor %vm4368, 1
    %vm4380 = vmand %vm116, %vm4379
    %vm4381 = vmand %vm1768, %vm4379
    %vm4382 = vmand %vm2604, %vm4379
    %vm4383 = vmand %vm2605, %vm4379
    %vm4384 = vmand %vm3463, %vm4379
    %vm4385 = vmand %vm3464, %vm4379
    %vm4386 = vmand %vm3465, %vm4379
    %vm4387 = vmand %vm3466, %vm4379
    %vm4388 = vmand %vm4371, %vm4379
    %vm4389 = vmand %vm4372, %vm4379
    %vm4390 = vmand %vm4373, %vm4379
    %vm4391 = vmand %vm4374, %vm4379
    %vm4392 = vmand %vm4375, %vm4379
    %vm4393 = vmand %vm4376, %vm4379
    %vm4394 = vmand %vm4377, %vm4379
    %vm4395 = vmand %vm4378, %vm4379
    %v4396 = vsel %vm4380, 1, 0
    %v4397 = vsel %vm4381, 1, 0
    %v4398 = vsel %vm4382, 1, 0
    %v4399 = vsel %vm4383, 1, 0
    %v4400 = vsel %vm4384, 1, 0
    %v4401 = vsel %vm4385, 1, 0
    %v4402 = vsel %vm4386, 1, 0
    %v4403 = vsel %vm4387, 1, 0
    %v4404 = vsel %vm4388, 1, 0
    %v4405 = vsel %vm4389, 1, 0
    %v4406 = vsel %vm4390, 1, 0
    %v4407 = vsel %vm4391, 1, 0
    %v4408 = vsel %vm4392, 1, 0
    %v4409 = vsel %vm4393, 1, 0
    %v4410 = vsel %vm4394, 1, 0
    %v4411 = vsel %vm4395, 1, 0
    %v4412 = vcvt.s32.f32 %v4396
    %v4413 = vcvt.s32.f32 %v4397
    %v4414 = vcvt.s32.f32 %v4398
    %v4415 = vcvt.s32.f32 %v4399
    %v4416 = vcvt.s32.f32 %v4400
    %v4417 = vcvt.s32.f32 %v4401
    %v4418 = vcvt.s32.f32 %v4402
    %v4419 = vcvt.s32.f32 %v4403
    %v4420 = vcvt.s32.f32 %v4404
    %v4421 = vcvt.s32.f32 %v4405
    %v4422 = vcvt.s32.f32 %v4406
    %v4423 = vcvt.s32.f32 %v4407
    %v4424 = vcvt.s32.f32 %v4408
    %v4425 = vcvt.s32.f32 %v4409
    %v4426 = vcvt.s32.f32 %v4410
    %v4427 = vcvt.s32.f32 %v4411
    %vm4428 = vcmp.eq.s32.totalorder %v4359, %v121
    %vm4429 = vcmp.eq.s32.totalorder %v4360, %v121
    %vm4430 = vcmp.eq.s32.totalorder %v4361, %v121
    %vm4431 = vcmp.eq.s32.totalorder %v4362, %v121
    %vm4432 = vcmp.eq.s32.totalorder %v4363, %v121
    %vm4433 = vcmp.eq.s32.totalorder %v4364, %v121
    %vm4434 = vcmp.eq.s32.totalorder %v4365, %v121
    %vm4435 = vcmp.eq.s32.totalorder %v4366, %v121
    %vm4436 = vmxor %vm4370, 1
    %vm4437 = vmand %vm122, %vm4436
    %vm4438 = vmand %vm1776, %vm4436
    %vm4439 = vmand %vm2619, %vm4436
    %vm4440 = vmand %vm2620, %vm4436
    %vm4441 = vmand %vm3492, %vm4436
    %vm4442 = vmand %vm3493, %vm4436
    %vm4443 = vmand %vm3494, %vm4436
    %vm4444 = vmand %vm3495, %vm4436
    %vm4445 = vmand %vm4428, %vm4436
    %vm4446 = vmand %vm4429, %vm4436
    %vm4447 = vmand %vm4430, %vm4436
    %vm4448 = vmand %vm4431, %vm4436
    %vm4449 = vmand %vm4432, %vm4436
    %vm4450 = vmand %vm4433, %vm4436
    %vm4451 = vmand %vm4434, %vm4436
    %vm4452 = vmand %vm4435, %vm4436
    %v4453 = vsel %vm4437, 1, 0
    %v4454 = vsel %vm4438, 1, 0
    %v4455 = vsel %vm4439, 1, 0
    %v4456 = vsel %vm4440, 1, 0
    %v4457 = vsel %vm4441, 1, 0
    %v4458 = vsel %vm4442, 1, 0
    %v4459 = vsel %vm4443, 1, 0
    %v4460 = vsel %vm4444, 1, 0
    %v4461 = vsel %vm4445, 1, 0
    %v4462 = vsel %vm4446, 1, 0
    %v4463 = vsel %vm4447, 1, 0
    %v4464 = vsel %vm4448, 1, 0
    %v4465 = vsel %vm4449, 1, 0
    %v4466 = vsel %vm4450, 1, 0
    %v4467 = vsel %vm4451, 1, 0
    %v4468 = vsel %vm4452, 1, 0
    %v4469 = vcvt.s32.f32 %v4453
    %v4470 = vcvt.s32.f32 %v4454
    %v4471 = vcvt.s32.f32 %v4455
    %v4472 = vcvt.s32.f32 %v4456
    %v4473 = vcvt.s32.f32 %v4457
    %v4474 = vcvt.s32.f32 %v4458
    %v4475 = vcvt.s32.f32 %v4459
    %v4476 = vcvt.s32.f32 %v4460
    %v4477 = vcvt.s32.f32 %v4461
    %v4478 = vcvt.s32.f32 %v4462
    %v4479 = vcvt.s32.f32 %v4463
    %v4480 = vcvt.s32.f32 %v4464
    %v4481 = vcvt.s32.f32 %v4465
    %v4482 = vcvt.s32.f32 %v4466
    %v4483 = vcvt.s32.f32 %v4467
    %v4484 = vcvt.s32.f32 %v4468
    %v4485 = vld [vmem:[%s13] sm:$0xf]
    %v4486 = vld [vmem:[%s14] sm:$0xf]
    %4487 = vmatpush.msra.mxu0 %v4427
    %4488 = vmatpush.msra.mxu0 %v4426
    %4489 = vmatpush.msra.mxu0 %v4425
    %4490 = vmatpush.msra.mxu0 %v4424
    %4491 = vmatpush.msra.mxu0 %v4423
    %4492 = vmatpush.msra.mxu0 %v4422
    %4493 = vmatpush.msra.mxu0 %v4421
    %4494 = vmatpush.msra.mxu0 %v4420
    %4495 = vmatpush.msra.mxu0 %v4419
    %4496 = vmatpush.msra.mxu0 %v4418
    %4497 = vmatpush.msra.mxu0 %v4417
    %4498 = vmatpush.msra.mxu0 %v4416
    %4499 = vmatpush.msra.mxu0 %v4415
    %4500 = vmatpush.msra.mxu0 %v4414
    %4501 = vmatpush.msra.mxu0 %v4413
    %4502 = vmatpush.msra.mxu0 %v4412
    %4503 = vmatmul.f32.gmra.mxu0 %v4355
    %v4504 = vpop.f32.mrf.mxu0
    %v4505 = vadd.f32 0.0, %v4504
    %4506 = vmatmul.f32.gmra.mxu0 %v4356
    %v4507 = vpop.f32.mrf.mxu0
    %v4508 = vadd.f32 0.0, %v4507
    %4509 = vmatmul.f32.gmra.mxu0 %v4357
    %v4510 = vpop.f32.mrf.mxu0
    %v4511 = vadd.f32 0.0, %v4510
    %4512 = vmatmul.f32.gmra.mxu0 %v4358
    %v4513 = vpop.f32.mrf.mxu0
    %v4514 = vadd.f32 0.0, %v4513
    %4515 = vdwg.mxu0
    %4516 = vmatpush.msra.mxu0 %v4484
    %4517 = vmatpush.msra.mxu0 %v4483
    %4518 = vmatpush.msra.mxu0 %v4482
    %4519 = vmatpush.msra.mxu0 %v4481
    %4520 = vmatpush.msra.mxu0 %v4480
    %4521 = vmatpush.msra.mxu0 %v4479
    %4522 = vmatpush.msra.mxu0 %v4478
    %4523 = vmatpush.msra.mxu0 %v4477
    %4524 = vmatpush.msra.mxu0 %v4476
    %4525 = vmatpush.msra.mxu0 %v4475
    %4526 = vmatpush.msra.mxu0 %v4474
    %4527 = vmatpush.msra.mxu0 %v4473
    %4528 = vmatpush.msra.mxu0 %v4472
    %4529 = vmatpush.msra.mxu0 %v4471
    %4530 = vmatpush.msra.mxu0 %v4470
    %4531 = vmatpush.msra.mxu0 %v4469
    %4532 = vmatmul.f32.gmra.mxu0 %v4355
    %v4533 = vpop.f32.mrf.mxu0
    %v4534 = vadd.f32 0.0, %v4533
    %4535 = vmatmul.f32.gmra.mxu0 %v4356
    %v4536 = vpop.f32.mrf.mxu0
    %v4537 = vadd.f32 0.0, %v4536
    %4538 = vmatmul.f32.gmra.mxu0 %v4357
    %v4539 = vpop.f32.mrf.mxu0
    %v4540 = vadd.f32 0.0, %v4539
    %4541 = vmatmul.f32.gmra.mxu0 %v4358
    %v4542 = vpop.f32.mrf.mxu0
    %v4543 = vadd.f32 0.0, %v4542
    %4544 = vdwg.mxu0
    %4546 = vset.pattern.permute.xlu0 0
    %4547 = vperm.xlu0 %4546, %v4486
    %v4548 = vpop.permute.xlu0 %4547
    %v4551 = vsel %vm241, %v4485, 0
    %4553 = vmatpush.msra.mxu0 0.0
    %4554 = vmatpush.msra.mxu0 0.0
    %4555 = vmatpush.msra.mxu0 0.0
    %4556 = vmatpush.msra.mxu0 0.0
    %4557 = vmatpush.msra.mxu0 %v4543
    %4558 = vmatpush.msra.mxu0 %v4540
    %4559 = vmatpush.msra.mxu0 %v4537
    %4560 = vmatpush.msra.mxu0 %v4534
    %4561 = vmatpush.msra.mxu0 %v4358
    %4562 = vmatpush.msra.mxu0 %v4357
    %4563 = vmatpush.msra.mxu0 %v4356
    %4564 = vmatpush.msra.mxu0 %v4355
    %4565 = vmatpush.msra.mxu0 %v4514
    %4566 = vmatpush.msra.mxu0 %v4511
    %4567 = vmatpush.msra.mxu0 %v4508
    %4568 = vmatpush.msra.mxu0 %v4505
    %4569 = vmatmul.f32.gmra.mxu0 %v4551
    %v4570 = vpop.f32.mrf.mxu0
    %v4571 = vadd.f32 %v4548, %v4570
    %4572 = vdwg.mxu0
    %4573 = vst [vmem:[#allocation2] sm:$0xf] %v4571
    // Predicated region
    $region62: #{tpu_custom_call.1} parent=1 // pred_check
      _
    $region63: #{tpu_custom_call.1} parent=1 // pred_check_branch
      %4575 = sbr.rel (0) target = $region65
    $region64: #{tpu_custom_call.1} parent=1 // pred_region
      %4577 = vsyncadd [#allocation3], 0
      %s4579 = sshll.u32 [#allocation2], 4
      %s4580 = int_to_ptr.vmem [resolvable:$true] %s4579
      %s4581 = sshll.u32 %s15, 4
      %s4582 = int_to_ptr.hbm [resolvable:$true] %s4581
      %4584 = dma.vmem_to_hbm [thread:$0]  %s4580, 64, %s4582, [#allocation3]
    $region65: #{tpu_custom_call.1} parent=1 // pred_fallthru
      _
    // Predicated region
    $region66: #{tpu_custom_call.1} parent=1 // pred_check
      _
    $region67: #{tpu_custom_call.1} parent=1 // pred_check_branch
      %4586 = sbr.rel (0) target = $region69
    $region68: #{tpu_custom_call.1} parent=1 // pred_region
      %4588 = dma.done [#allocation3], 64
    $region69: #{tpu_custom_call.1} parent=1 // pred_fallthru
      _
    %4589 = vsyncpa [#allocation3], 1

</llo_original>
